<compile_context>
chip_gen: v6e
topology: v6e:2x2x1
jax: 0.10.0
libtpu: 0.0.40
codegen_flags: <defaults>
</compile_context>

<pallas_src>
import functools

import numpy as np

import jax
import jax.numpy as jnp
from jax.experimental import pallas as pl
from jax.experimental.pallas import tpu as pltpu

_LN_EPS = 1e-5


def _gelu(x):
    # TODO(synk): torch.nn.GELU() defaults to exact erf GELU; Mosaic has no erf
    # lowering, so the tanh approximation is used (== GELU(approximate='tanh')).
    c = 0.7978845608028654  # sqrt(2/pi)
    return 0.5 * x * (1.0 + jnp.tanh(c * (x + 0.044715 * x * x * x)))


def _rup(x, m):
    return ((x + m - 1) // m) * m


# ----------------------------------------------------------------------------
# Fused kernel: basis_fn + window + x_embedder (l == 0)  ->  per-layer
# depthwise Conv (gather/msg/scatter) -> LayerNorm -> MLP -> residual ->
# pooled readout accumulation, all per (graph, layer) grid step.
# ----------------------------------------------------------------------------
def _ponita_kernel(
    # per-graph data (block index = g)
    xin_ref, dist_ref, src_ref, dst_ref, nmask_ref,
    # shared weights
    we_ref, w0_ref, b0_ref, w1b_ref, b1b_ref,
    # per-layer stacked weights (block index = l)
    wk_ref, bk_ref, gamma_ref, beta_ref,
    w1_ref, b1_ref, w2_ref, b2_ref, wr_ref, br_ref,
    # output: pooled readout accumulator, resident across the layer axis
    ro_ref,
    # VMEM scratch, resident across the layer axis
    x_s, kb_s,
    *, radius, hidden_dim, num_layers):
    l = pl.program_id(1)
    e_pad = dist_ref.shape[0]
    n_pad = xin_ref.shape[0]
    h_pad = we_ref.shape[1]

    @pl.when(l == 0)
    def _init():
        # ---- basis_fn + PolynomialCutoff window (computed once per graph) ----
        d = dist_ref[...]                                       # [e_pad, 1] f32
        # Polynomial features of the 1-channel invariant attribute done as
        # VPU broadcast-FMAs against rows of W0 (no [E, P] materialization).
        dp = d
        h0 = b0_ref[...] + dp * w0_ref[0:1, :]
        for p in range(1, w0_ref.shape[0]):
            dp = dp * d
            h0 = h0 + dp * w0_ref[p:p + 1, :]
        h0 = _gelu(h0)                                          # [e_pad, HB]
        kb = _gelu(jnp.dot(h0.astype(jnp.bfloat16), w1b_ref[...],
                           preferred_element_type=jnp.float32) + b1b_ref[...])
        # PolynomialCutoff(r_max=radius, p=6): 1 - 28 u^6 + 48 u^7 - 21 u^8
        u = d * (1.0 / radius)
        u2 = u * u
        u4 = u2 * u2
        u6 = u4 * u2
        u7 = u6 * u
        u8 = u7 * u
        env = 1.0 - 28.0 * u6 + 48.0 * u7 - 21.0 * u8
        win = jnp.where(d < radius, env, 0.0)
        kb_s[...] = (kb * win).astype(kb_s.dtype)               # resident bf16
        # ---- x_embedder (Linear, no bias) ----
        x_s[...] = jnp.dot(xin_ref[...].astype(jnp.bfloat16), we_ref[...],
                           preferred_element_type=jnp.float32)
        # ---- zero the pooled-readout accumulator ----
        ro_ref[...] = jnp.zeros_like(ro_ref)

    x = x_s[...]                                                # [n_pad, H] f32
    # depthwise conv kernel per edge: k = kernel_basis @ Wk
    k = jnp.dot(kb_s[...], wk_ref[...],
                preferred_element_type=jnp.float32)             # [e_pad, H]
    # gather x_j = x[src] via on-the-fly one-hot (block-diagonal per graph)
    gmat = (jax.lax.broadcasted_iota(jnp.int32, (e_pad, n_pad), 1)
            == src_ref[...]).astype(jnp.float32).astype(jnp.bfloat16)
    x_src = jnp.dot(gmat, x.astype(jnp.bfloat16),
                    preferred_element_type=jnp.float32)         # [e_pad, H]
    msg = k * x_src
    # scatter-add the messages at dst via on-the-fly one-hot
    smat = (jax.lax.broadcasted_iota(jnp.int32, (n_pad, e_pad), 0)
            == dst_ref[...]).astype(jnp.float32).astype(jnp.bfloat16)
    conv = jnp.dot(smat, msg.astype(jnp.bfloat16),
                   preferred_element_type=jnp.float32) + bk_ref[...]
    # LayerNorm over the real hidden channels (padded channels of conv are 0)
    ch_mask = (jax.lax.broadcasted_iota(jnp.int32, (1, h_pad), 1)
               < hidden_dim).astype(jnp.float32)
    inv_h = 1.0 / float(hidden_dim)
    mu = jnp.sum(conv, axis=-1, keepdims=True) * inv_h
    cd = conv - mu
    var = jnp.sum(cd * cd * ch_mask, axis=-1, keepdims=True) * inv_h
    ln = cd * jax.lax.rsqrt(var + _LN_EPS) * gamma_ref[...] + beta_ref[...]
    # MLP (Linear H->4H, GELU, Linear 4H->H); layer_scale=None -> plain residual
    h = _gelu(jnp.dot(ln.astype(jnp.bfloat16), w1_ref[...],
                      preferred_element_type=jnp.float32) + b1_ref[...])
    h = jnp.dot(h.astype(jnp.bfloat16), w2_ref[...],
                preferred_element_type=jnp.float32) + b2_ref[...]
    x_new = x + h
    x_s[...] = x_new
    # Readout hoisted behind the pool:
    #   global_add_pool(x_new @ Wr + br) == (sum_n x_new) @ Wr + n_g * br
    pooled = jnp.sum(x_new * nmask_ref[...], axis=0, keepdims=True)  # [1, H]
    pooled8 = pooled + jnp.zeros((8, 1), jnp.float32)                # [8, H]
    n_g = jnp.sum(nmask_ref[...], axis=0, keepdims=True)             # [1, 1]
    ro_l = jnp.dot(pooled8.astype(jnp.bfloat16), wr_ref[...],
                   preferred_element_type=jnp.float32) + n_g * br_ref[...]
    ro_ref[...] = ro_ref[...] + ro_l

    @pl.when(l == pl.num_programs(1) - 1)
    def _finalize():
        # multiple_readouts=True -> mean over the num_layers readouts
        ro_ref[...] = ro_ref[...] * (1.0 / float(num_layers))


def ponita_forward(graph, params, *, radius, hidden_dim, num_layers, output_dim):
    G, n_pad, c_in = graph["xin"].shape
    e_pad = graph["dists"].shape[1]
    h_pad = params["we"].shape[1]
    hb_pad = params["w0"].shape[1]
    b_pad = params["w1b"].shape[1]
    w4_pad = params["w1"].shape[2]
    ro_pad = params["wr"].shape[2]
    p_dim = params["w0"].shape[0]

    kernel = functools.partial(_ponita_kernel, radius=float(radius),
                               hidden_dim=hidden_dim, num_layers=num_layers)

    def gspec(shape):   # per-graph data
        return pl.BlockSpec((None,) + shape,
                            lambda g, l, s=len(shape): (g,) + (0,) * s)

    def wspec(shape):   # shared weights
        return pl.BlockSpec(shape, lambda g, l, s=len(shape): (0,) * s)

    def lspec(shape):   # per-layer stacked weights
        return pl.BlockSpec((None,) + shape,
                            lambda g, l, s=len(shape): (l,) + (0,) * s)

    grid_spec = pltpu.PrefetchScalarGridSpec(
        num_scalar_prefetch=0,
        grid=(G, num_layers),
        in_specs=[
            gspec((n_pad, c_in)),       # xin
            gspec((e_pad, 1)),          # dists
            gspec((e_pad, 1)),          # src (local, column layout)
            gspec((1, e_pad)),          # dst (local, row layout)
            gspec((n_pad, 1)),          # node validity mask
            wspec((c_in, h_pad)),       # We
            wspec((p_dim, hb_pad)),     # basis W0 (f32, used on the VPU)
            wspec((1, hb_pad)),         # basis b0
            wspec((hb_pad, b_pad)),     # basis W1
            wspec((1, b_pad)),          # basis b1
            lspec((b_pad, h_pad)),      # Wk
            lspec((1, h_pad)),          # bk
            lspec((1, h_pad)),          # LN gamma
            lspec((1, h_pad)),          # LN beta
            lspec((h_pad, w4_pad)),     # W1
            lspec((1, w4_pad)),         # b1
            lspec((w4_pad, h_pad)),     # W2
            lspec((1, h_pad)),          # b2
            lspec((h_pad, ro_pad)),     # Wr
            lspec((1, ro_pad)),         # br
        ],
        out_specs=pl.BlockSpec((None, 8, ro_pad), lambda g, l: (g, 0, 0)),
        scratch_shapes=[
            pltpu.VMEM((n_pad, h_pad), jnp.float32),    # resident node features
            pltpu.VMEM((e_pad, b_pad), jnp.bfloat16),   # resident kernel basis
        ],
    )

    ro = pl.pallas_call(
        kernel,
        out_shape=jax.ShapeDtypeStruct((G, 8, ro_pad), jnp.float32),
        grid_spec=grid_spec,
        compiler_params=pltpu.CompilerParams(
            dimension_semantics=("parallel", "arbitrary"),
            vmem_limit_bytes=32 * 1024 * 1024),
    )(graph["xin"], graph["dists"], graph["src"], graph["dst"], graph["nmask"],
      params["we"], params["w0"], params["b0"], params["w1b"], params["b1b"],
      params["wk"], params["bk"], params["gamma"], params["beta"],
      params["w1"], params["b1"], params["w2"], params["b2"],
      params["wr"], params["br"])

    output_scalar = ro[:, 0, :output_dim]
    output_vector = None  # output_dim_vec == 0 and no scatter_projection_index
    return output_scalar, output_vector


# ----------------------------------------------------------------------------
# Pure-JAX reference (mirrors the kernel's bf16 casts) for validation.
# ----------------------------------------------------------------------------
def ponita_reference(graph, params, *, radius, hidden_dim, num_layers,
                     output_dim):
    f32, bf16 = jnp.float32, jnp.bfloat16
    xin = graph["xin"]
    d = graph["dists"]
    src = graph["src"][:, :, 0]
    dst = graph["dst"][:, 0, :]
    nmask = graph["nmask"]
    G, n_pad, _ = xin.shape
    e_pad = d.shape[1]

    w0, b0 = params["w0"], params["b0"]
    dp = d
    h0 = b0[None] + dp * w0[0][None, None, :]
    for p in range(1, w0.shape[0]):
        dp = dp * d
        h0 = h0 + dp * w0[p][None, None, :]
    h0 = _gelu(h0)
    kb = _gelu(jnp.einsum("geh,hb->geb", h0.astype(bf16), params["w1b"],
                          preferred_element_type=f32) + params["b1b"][None])
    u = d / radius
    env = 1.0 - 28.0 * u**6 + 48.0 * u**7 - 21.0 * u**8
    win = jnp.where(d < radius, env, 0.0)
    kb = (kb * win).astype(bf16).astype(f32)

    x = jnp.einsum("gnc,ch->gnh", xin.astype(bf16), params["we"],
                   preferred_element_type=f32)
    onehot_src = (src[:, :, None] == jnp.arange(n_pad)[None, None, :]).astype(f32)
    onehot_dst = (dst[:, :, None] == jnp.arange(n_pad)[None, None, :]).astype(f32)
    ch_mask = (jnp.arange(x.shape[-1]) < hidden_dim).astype(f32)[None, None, :]

    ro_sum = 0.0
    for l in range(num_layers):
        k = jnp.einsum("geb,bh->geh", kb.astype(bf16), params["wk"][l],
                       preferred_element_type=f32)
        x_src = jnp.einsum("gen,gnh->geh", onehot_src,
                           x.astype(bf16).astype(f32))
        msg = (k * x_src).astype(bf16).astype(f32)
        conv = jnp.einsum("gen,geh->gnh", onehot_dst, msg) + params["bk"][l][None]
        mu = jnp.sum(conv, -1, keepdims=True) / hidden_dim
        cd = conv - mu
        var = jnp.sum(cd * cd * ch_mask, -1, keepdims=True) / hidden_dim
        ln = (cd * jax.lax.rsqrt(var + _LN_EPS) * params["gamma"][l][None]
              + params["beta"][l][None])
        h = _gelu(jnp.einsum("gnh,hw->gnw", ln.astype(bf16), params["w1"][l],
                             preferred_element_type=f32) + params["b1"][l][None])
        h = jnp.einsum("gnw,wh->gnh", h.astype(bf16), params["w2"][l],
                       preferred_element_type=f32) + params["b2"][l][None]
        x = x + h
        pooled = jnp.sum(x * nmask, axis=1)
        n_g = jnp.sum(nmask, axis=1)
        ro = jnp.einsum("gh,hr->gr", pooled.astype(bf16), params["wr"][l],
                        preferred_element_type=f32) + n_g * params["br"][l]
        ro_sum = ro_sum + ro
    return (ro_sum / num_layers)[:, :output_dim]


# ----------------------------------------------------------------------------
# Parameter init (nn.Linear-style U(+-1/sqrt(fan_in))), zero-padded to 128
# lanes and pre-cast to bf16 where they feed the MXU.
# ----------------------------------------------------------------------------
def _uniform(key, fan_in, shape):
    bound = 1.0 / (fan_in ** 0.5)
    return jax.random.uniform(key, shape, jnp.float32, -bound, bound)


def _pad_to(a, shape):
    out = jnp.zeros(shape, a.dtype)
    return out.at[tuple(slice(0, s) for s in a.shape)].set(a)


def init_params(key, *, input_dim, hidden_dim, basis_dim, output_dim,
                output_dim_vec, num_layers, degree, widening_factor):
    poly_dim = degree + 1              # 1-channel invariant attribute (dist)
    w4 = widening_factor * hidden_dim
    ro_dim = output_dim + output_dim_vec
    h_pad = _rup(hidden_dim, 128)
    hb_pad = _rup(hidden_dim, 128)
    b_pad = _rup(basis_dim, 128)
    w4_pad = _rup(w4, 128)
    ro_pad = _rup(ro_dim, 128)

    keys = iter(jax.random.split(key, 5 + 8 * num_layers))
    params = {}
    w0 = _uniform(next(keys), poly_dim, (poly_dim, hidden_dim))
    b0 = _uniform(next(keys), poly_dim, (1, hidden_dim))
    w1b = _uniform(next(keys), hidden_dim, (hidden_dim, basis_dim))
    b1b = _uniform(next(keys), hidden_dim, (1, basis_dim))
    we = _uniform(next(keys), input_dim, (input_dim, hidden_dim))
    params["w0"] = _pad_to(w0, (poly_dim, hb_pad))                       # f32
    params["b0"] = _pad_to(b0, (1, hb_pad))
    params["w1b"] = _pad_to(w1b, (hb_pad, b_pad)).astype(jnp.bfloat16)
    params["b1b"] = _pad_to(b1b, (1, b_pad))
    params["we"] = _pad_to(we, (input_dim, h_pad)).astype(jnp.bfloat16)

    acc = {k: [] for k in ("wk", "bk", "gamma", "beta",
                           "w1", "b1", "w2", "b2", "wr", "br")}
    for _ in range(num_layers):
        wk = _uniform(next(keys), basis_dim, (basis_dim, hidden_dim))
        bk = _uniform(next(keys), hidden_dim, (1, hidden_dim))
        w1 = _uniform(next(keys), hidden_dim, (hidden_dim, w4))
        b1 = _uniform(next(keys), hidden_dim, (1, w4))
        w2 = _uniform(next(keys), w4, (w4, hidden_dim))
        b2 = _uniform(next(keys), w4, (1, hidden_dim))
        wr = _uniform(next(keys), hidden_dim, (hidden_dim, ro_dim))
        br = _uniform(next(keys), hidden_dim, (1, ro_dim))
        acc["wk"].append(_pad_to(wk, (b_pad, h_pad)).astype(jnp.bfloat16))
        acc["bk"].append(_pad_to(bk, (1, h_pad)))
        acc["gamma"].append(_pad_to(jnp.ones((1, hidden_dim), jnp.float32),
                                    (1, h_pad)))
        acc["beta"].append(jnp.zeros((1, h_pad), jnp.float32))
        acc["w1"].append(_pad_to(w1, (h_pad, w4_pad)).astype(jnp.bfloat16))
        acc["b1"].append(_pad_to(b1, (1, w4_pad)))
        acc["w2"].append(_pad_to(w2, (w4_pad, h_pad)).astype(jnp.bfloat16))
        acc["b2"].append(_pad_to(b2, (1, h_pad)))
        acc["wr"].append(_pad_to(wr, (h_pad, ro_pad)).astype(jnp.bfloat16))
        acc["br"].append(_pad_to(br, (1, ro_pad)))
    for k, v in acc.items():
        params[k] = jnp.stack(v)     # [L, ...]
    return params


if __name__ == "__main__":
    # --- config (small, consistent with the module defaults) ---
    input_dim, hidden_dim, output_dim, output_dim_vec = 4, 32, 5, 0
    num_layers = 2
    degree = 3
    radius = 2.0
    widening_factor = 4
    basis_dim = hidden_dim
    num_graphs, nodes_per_graph = 2, 12

    key = jax.random.PRNGKey(0)
    k_pos, k_x, k_params = jax.random.split(key, 3)

    N = num_graphs * nodes_per_graph
    pos = jax.random.uniform(k_pos, (N, 3), jnp.float32) * 1.5
    x_in = jax.random.normal(k_x, (N, input_dim), jnp.float32)

    # --- per-graph padded blocks (lift_graph=False: attrs precomputed) ---
    n_pad = _rup(nodes_per_graph, 8)
    e_per_graph = nodes_per_graph * (nodes_per_graph - 1)   # fully connected
    e_pad = _rup(e_per_graph, 8)

    pos_np = np.asarray(pos)
    x_np = np.asarray(x_in)
    xin_pg = np.zeros((num_graphs, n_pad, input_dim), np.float32)
    dists_pg = np.full((num_graphs, e_pad, 1), 2.0 * radius, np.float32)
    src_pg = np.zeros((num_graphs, e_pad, 1), np.int32)
    dst_pg = np.zeros((num_graphs, 1, e_pad), np.int32)
    nmask_pg = np.zeros((num_graphs, n_pad, 1), np.float32)
    for g in range(num_graphs):
        base = g * nodes_per_graph
        xin_pg[g, :nodes_per_graph] = x_np[base:base + nodes_per_graph]
        nmask_pg[g, :nodes_per_graph, 0] = 1.0
        e = 0
        for i in range(nodes_per_graph):
            for j in range(nodes_per_graph):
                if i != j:
                    dists_pg[g, e, 0] = np.linalg.norm(pos_np[base + i]
                                                       - pos_np[base + j])
                    src_pg[g, e, 0] = i
                    dst_pg[g, 0, e] = j
                    e += 1
    graph = {
        "xin": jnp.asarray(xin_pg),
        "dists": jnp.asarray(dists_pg),
        "src": jnp.asarray(src_pg),
        "dst": jnp.asarray(dst_pg),
        "nmask": jnp.asarray(nmask_pg),
    }

    params = init_params(
        k_params, input_dim=input_dim, hidden_dim=hidden_dim,
        basis_dim=basis_dim, output_dim=output_dim,
        output_dim_vec=output_dim_vec, num_layers=num_layers,
        degree=degree, widening_factor=widening_factor)

    out_scalar, out_vector = ponita_forward(
        graph, params, radius=radius, hidden_dim=hidden_dim,
        num_layers=num_layers, output_dim=output_dim)
    jax.block_until_ready(out_scalar)

    assert out_scalar.shape == (num_graphs, output_dim)
    assert out_vector is None
    assert bool(jnp.all(jnp.isfinite(out_scalar)))

    ref = ponita_reference(
        graph, params, radius=radius, hidden_dim=hidden_dim,
        num_layers=num_layers, output_dim=output_dim)
    np.testing.assert_allclose(np.asarray(out_scalar), np.asarray(ref),
                               rtol=5e-2, atol=5e-1)

    print("KERNEL_OK")
</pallas_src>

<mosaic_0001>
module attributes {stable_mosaic.version = 11 : i64} {
  func.func @_ponita_kernel(%arg0: i32, %arg1: i32, %arg2: memref<1x16x4xf32, #tpu.memory_space<vmem>>, %arg3: memref<1x136x1xf32, #tpu.memory_space<vmem>>, %arg4: memref<1x136x1xi32, #tpu.memory_space<vmem>>, %arg5: memref<1x1x136xi32, #tpu.memory_space<vmem>>, %arg6: memref<1x16x1xf32, #tpu.memory_space<vmem>>, %arg7: memref<4x128xbf16, #tpu.memory_space<vmem>>, %arg8: memref<4x128xf32, #tpu.memory_space<vmem>>, %arg9: memref<1x128xf32, #tpu.memory_space<vmem>>, %arg10: memref<128x128xbf16, #tpu.memory_space<vmem>>, %arg11: memref<1x128xf32, #tpu.memory_space<vmem>>, %arg12: memref<1x128x128xbf16, #tpu.memory_space<vmem>>, %arg13: memref<1x1x128xf32, #tpu.memory_space<vmem>>, %arg14: memref<1x1x128xf32, #tpu.memory_space<vmem>>, %arg15: memref<1x1x128xf32, #tpu.memory_space<vmem>>, %arg16: memref<1x128x128xbf16, #tpu.memory_space<vmem>>, %arg17: memref<1x1x128xf32, #tpu.memory_space<vmem>>, %arg18: memref<1x128x128xbf16, #tpu.memory_space<vmem>>, %arg19: memref<1x1x128xf32, #tpu.memory_space<vmem>>, %arg20: memref<1x128x128xbf16, #tpu.memory_space<vmem>>, %arg21: memref<1x1x128xf32, #tpu.memory_space<vmem>>, %arg22: memref<1x8x128xf32, #tpu.memory_space<vmem>>, %arg23: memref<16x128xf32, #tpu.memory_space<vmem>>, %arg24: memref<136x128xbf16, #tpu.memory_space<vmem>>) attributes {dimension_semantics = [#tpu.dimension_semantics<parallel>, #tpu.dimension_semantics<arbitrary>], iteration_bounds = array<i64: 2, 2>, scalar_prefetch = 0 : i64, scratch_operands = 2 : i64, tpu.core_type = #tpu.core_type<tc>, window_params = [{transform_indices = @transform_0, window_bounds = array<i64: 1, 16, 4>}, {transform_indices = @transform_1, window_bounds = array<i64: 1, 136, 1>}, {transform_indices = @transform_2, window_bounds = array<i64: 1, 136, 1>}, {transform_indices = @transform_3, window_bounds = array<i64: 1, 1, 136>}, {transform_indices = @transform_4, window_bounds = array<i64: 1, 16, 1>}, {pipeline_mode = #tpu.pipeline_mode<synchronous>, transform_indices = @transform_5, window_bounds = array<i64: 4, 128>}, {pipeline_mode = #tpu.pipeline_mode<synchronous>, transform_indices = @transform_6, window_bounds = array<i64: 4, 128>}, {pipeline_mode = #tpu.pipeline_mode<synchronous>, transform_indices = @transform_7, window_bounds = array<i64: 1, 128>}, {pipeline_mode = #tpu.pipeline_mode<synchronous>, transform_indices = @transform_8, window_bounds = array<i64: 128, 128>}, {pipeline_mode = #tpu.pipeline_mode<synchronous>, transform_indices = @transform_9, window_bounds = array<i64: 1, 128>}, {transform_indices = @transform_10, window_bounds = array<i64: 1, 128, 128>}, {transform_indices = @transform_11, window_bounds = array<i64: 1, 1, 128>}, {transform_indices = @transform_12, window_bounds = array<i64: 1, 1, 128>}, {transform_indices = @transform_13, window_bounds = array<i64: 1, 1, 128>}, {transform_indices = @transform_14, window_bounds = array<i64: 1, 128, 128>}, {transform_indices = @transform_15, window_bounds = array<i64: 1, 1, 128>}, {transform_indices = @transform_16, window_bounds = array<i64: 1, 128, 128>}, {transform_indices = @transform_17, window_bounds = array<i64: 1, 1, 128>}, {transform_indices = @transform_18, window_bounds = array<i64: 1, 128, 128>}, {transform_indices = @transform_19, window_bounds = array<i64: 1, 1, 128>}, {transform_indices = @transform_20, window_bounds = array<i64: 1, 8, 128>}]} {
    %c0_i32 = arith.constant 0 : i32
    %0 = arith.cmpi eq, %arg1, %c0_i32 : i32
    %1 = arith.extui %0 : i1 to i32
    %c0_i32_0 = arith.constant 0 : i32
    %2 = arith.cmpi ne, %1, %c0_i32_0 : i32
    scf.if %2 {
      %c0_72 = arith.constant 0 : index
      %c0_73 = arith.constant 0 : index
      %c0_74 = arith.constant 0 : index
      %128 = vector.load %arg3[%c0_72, %c0_73, %c0_74] : memref<1x136x1xf32, #tpu.memory_space<vmem>>, vector<1x136x1xf32>
      %129 = vector.shape_cast %128 : vector<1x136x1xf32> to vector<136x1xf32>
      %c0_75 = arith.constant 0 : index
      %c0_76 = arith.constant 0 : index
      %130 = vector.load %arg9[%c0_75, %c0_76] : memref<1x128xf32, #tpu.memory_space<vmem>>, vector<1x128xf32>
      %c0_77 = arith.constant 0 : index
      %c0_78 = arith.constant 0 : index
      %131 = vector.load %arg8[%c0_77, %c0_78] : memref<4x128xf32, #tpu.memory_space<vmem>>, vector<1x128xf32>
      %132 = vector.broadcast %129 : vector<136x1xf32> to vector<136x128xf32>
      %133 = vector.broadcast %131 : vector<1x128xf32> to vector<136x128xf32>
      %134 = arith.mulf %132, %133 : vector<136x128xf32>
      %135 = vector.broadcast %130 : vector<1x128xf32> to vector<136x128xf32>
      %136 = arith.addf %135, %134 : vector<136x128xf32>
      %137 = arith.mulf %129, %129 : vector<136x1xf32>
      %c1 = arith.constant 1 : index
      %c0_79 = arith.constant 0 : index
      %138 = vector.load %arg8[%c1, %c0_79] : memref<4x128xf32, #tpu.memory_space<vmem>>, vector<1x128xf32>
      %139 = vector.broadcast %137 : vector<136x1xf32> to vector<136x128xf32>
      %140 = vector.broadcast %138 : vector<1x128xf32> to vector<136x128xf32>
      %141 = arith.mulf %139, %140 : vector<136x128xf32>
      %142 = arith.addf %136, %141 : vector<136x128xf32>
      %143 = arith.mulf %137, %129 : vector<136x1xf32>
      %c2 = arith.constant 2 : index
      %c0_80 = arith.constant 0 : index
      %144 = vector.load %arg8[%c2, %c0_80] : memref<4x128xf32, #tpu.memory_space<vmem>>, vector<1x128xf32>
      %145 = vector.broadcast %143 : vector<136x1xf32> to vector<136x128xf32>
      %146 = vector.broadcast %144 : vector<1x128xf32> to vector<136x128xf32>
      %147 = arith.mulf %145, %146 : vector<136x128xf32>
      %148 = arith.addf %142, %147 : vector<136x128xf32>
      %149 = arith.mulf %143, %129 : vector<136x1xf32>
      %c3 = arith.constant 3 : index
      %c0_81 = arith.constant 0 : index
      %150 = vector.load %arg8[%c3, %c0_81] : memref<4x128xf32, #tpu.memory_space<vmem>>, vector<1x128xf32>
      %151 = vector.broadcast %149 : vector<136x1xf32> to vector<136x128xf32>
      %152 = vector.broadcast %150 : vector<1x128xf32> to vector<136x128xf32>
      %153 = arith.mulf %151, %152 : vector<136x128xf32>
      %154 = arith.addf %148, %153 : vector<136x128xf32>
      %cst_82 = arith.constant 5.000000e-01 : f32
      %155 = vector.broadcast %cst_82 : f32 to vector<136x128xf32>
      %156 = arith.mulf %155, %154 : vector<136x128xf32>
      %cst_83 = arith.constant 4.471500e-02 : f32
      %157 = vector.broadcast %cst_83 : f32 to vector<136x128xf32>
      %158 = arith.mulf %157, %154 : vector<136x128xf32>
      %159 = arith.mulf %158, %154 : vector<136x128xf32>
      %160 = arith.mulf %159, %154 : vector<136x128xf32>
      %161 = arith.addf %154, %160 : vector<136x128xf32>
      %cst_84 = arith.constant 0.797884583 : f32
      %162 = vector.broadcast %cst_84 : f32 to vector<136x128xf32>
      %163 = arith.mulf %162, %161 : vector<136x128xf32>
      %164 = math.tanh %163 : vector<136x128xf32>
      %cst_85 = arith.constant 1.000000e+00 : f32
      %165 = vector.broadcast %cst_85 : f32 to vector<136x128xf32>
      %166 = arith.addf %165, %164 : vector<136x128xf32>
      %167 = arith.mulf %156, %166 : vector<136x128xf32>
      %168 = arith.truncf %167 : vector<136x128xf32> to vector<136x128xbf16>
      %c0_86 = arith.constant 0 : index
      %c0_87 = arith.constant 0 : index
      %169 = vector.load %arg10[%c0_86, %c0_87] : memref<128x128xbf16, #tpu.memory_space<vmem>>, vector<128x128xbf16>
      %cst_88 = arith.constant dense<0.000000e+00> : vector<136x128xf32>
      %170 = tpu.matmul %168, %169, %cst_88 {dimension_numbers = #tpu.dot_dimension_numbers<[1], [0], [0], [1], [0, 0, 1, 1], [], []>} : vector<136x128xbf16>, vector<128x128xbf16>, vector<136x128xf32> -> vector<136x128xf32>
      %c0_89 = arith.constant 0 : index
      %c0_90 = arith.constant 0 : index
      %171 = vector.load %arg11[%c0_89, %c0_90] : memref<1x128xf32, #tpu.memory_space<vmem>>, vector<1x128xf32>
      %172 = vector.broadcast %171 : vector<1x128xf32> to vector<136x128xf32>
      %173 = arith.addf %170, %172 : vector<136x128xf32>
      %cst_91 = arith.constant 5.000000e-01 : f32
      %174 = vector.broadcast %cst_91 : f32 to vector<136x128xf32>
      %175 = arith.mulf %174, %173 : vector<136x128xf32>
      %cst_92 = arith.constant 4.471500e-02 : f32
      %176 = vector.broadcast %cst_92 : f32 to vector<136x128xf32>
      %177 = arith.mulf %176, %173 : vector<136x128xf32>
      %178 = arith.mulf %177, %173 : vector<136x128xf32>
      %179 = arith.mulf %178, %173 : vector<136x128xf32>
      %180 = arith.addf %173, %179 : vector<136x128xf32>
      %cst_93 = arith.constant 0.797884583 : f32
      %181 = vector.broadcast %cst_93 : f32 to vector<136x128xf32>
      %182 = arith.mulf %181, %180 : vector<136x128xf32>
      %183 = math.tanh %182 : vector<136x128xf32>
      %cst_94 = arith.constant 1.000000e+00 : f32
      %184 = vector.broadcast %cst_94 : f32 to vector<136x128xf32>
      %185 = arith.addf %184, %183 : vector<136x128xf32>
      %186 = arith.mulf %175, %185 : vector<136x128xf32>
      %cst_95 = arith.constant 5.000000e-01 : f32
      %187 = vector.broadcast %cst_95 : f32 to vector<136x1xf32>
      %188 = arith.mulf %129, %187 : vector<136x1xf32>
      %189 = arith.mulf %188, %188 : vector<136x1xf32>
      %190 = arith.mulf %189, %189 : vector<136x1xf32>
      %191 = arith.mulf %190, %189 : vector<136x1xf32>
      %192 = arith.mulf %191, %188 : vector<136x1xf32>
      %193 = arith.mulf %192, %188 : vector<136x1xf32>
      %cst_96 = arith.constant 2.800000e+01 : f32
      %194 = vector.broadcast %cst_96 : f32 to vector<136x1xf32>
      %195 = arith.mulf %194, %191 : vector<136x1xf32>
      %cst_97 = arith.constant 1.000000e+00 : f32
      %196 = vector.broadcast %cst_97 : f32 to vector<136x1xf32>
      %197 = arith.subf %196, %195 : vector<136x1xf32>
      %cst_98 = arith.constant 4.800000e+01 : f32
      %198 = vector.broadcast %cst_98 : f32 to vector<136x1xf32>
      %199 = arith.mulf %198, %192 : vector<136x1xf32>
      %200 = arith.addf %197, %199 : vector<136x1xf32>
      %cst_99 = arith.constant 2.100000e+01 : f32
      %201 = vector.broadcast %cst_99 : f32 to vector<136x1xf32>
      %202 = arith.mulf %201, %193 : vector<136x1xf32>
      %203 = arith.subf %200, %202 : vector<136x1xf32>
      %cst_100 = arith.constant 2.000000e+00 : f32
      %204 = vector.broadcast %cst_100 : f32 to vector<136x1xf32>
      %205 = arith.cmpf olt, %129, %204 : vector<136x1xf32>
      %cst_101 = arith.constant 0.000000e+00 : f32
      %206 = vector.broadcast %cst_101 : f32 to vector<136x1xf32>
      %207 = arith.select %205, %203, %206 : vector<136x1xi1>, vector<136x1xf32>
      %208 = vector.broadcast %207 : vector<136x1xf32> to vector<136x128xf32>
      %209 = arith.mulf %186, %208 : vector<136x128xf32>
      %210 = arith.truncf %209 : vector<136x128xf32> to vector<136x128xbf16>
      %c0_102 = arith.constant 0 : index
      %c0_103 = arith.constant 0 : index
      %211 = vector.load %arg24[%c0_102, %c0_103] : memref<136x128xbf16, #tpu.memory_space<vmem>>, vector<136x128xbf16>
      tpu.vector_store %arg24[%c0_102, %c0_103], %210 {strides = array<i32>} : memref<136x128xbf16, #tpu.memory_space<vmem>>, vector<136x128xbf16>,
      %c0_104 = arith.constant 0 : index
      %c0_105 = arith.constant 0 : index
      %c0_106 = arith.constant 0 : index
      %212 = vector.load %arg2[%c0_104, %c0_105, %c0_106] : memref<1x16x4xf32, #tpu.memory_space<vmem>>, vector<1x16x4xf32>
      %213 = vector.shape_cast %212 : vector<1x16x4xf32> to vector<16x4xf32>
      %214 = arith.truncf %213 : vector<16x4xf32> to vector<16x4xbf16>
      %c0_107 = arith.constant 0 : index
      %c0_108 = arith.constant 0 : index
      %215 = vector.load %arg7[%c0_107, %c0_108] : memref<4x128xbf16, #tpu.memory_space<vmem>>, vector<4x128xbf16>
      %cst_109 = arith.constant dense<0.000000e+00> : vector<16x128xf32>
      %216 = tpu.matmul %214, %215, %cst_109 {dimension_numbers = #tpu.dot_dimension_numbers<[1], [0], [0], [1], [0, 0, 1, 1], [], []>} : vector<16x4xbf16>, vector<4x128xbf16>, vector<16x128xf32> -> vector<16x128xf32>
      %c0_110 = arith.constant 0 : index
      %c0_111 = arith.constant 0 : index
      %217 = vector.load %arg23[%c0_110, %c0_111] : memref<16x128xf32, #tpu.memory_space<vmem>>, vector<16x128xf32>
      tpu.vector_store %arg23[%c0_110, %c0_111], %216 {strides = array<i32>} : memref<16x128xf32, #tpu.memory_space<vmem>>, vector<16x128xf32>,
      %cst_112 = arith.constant 0.000000e+00 : f32
      %218 = vector.broadcast %cst_112 : f32 to vector<8x128xf32>
      %c0_113 = arith.constant 0 : index
      %c0_114 = arith.constant 0 : index
      %c0_115 = arith.constant 0 : index
      %219 = vector.load %arg22[%c0_113, %c0_114, %c0_115] : memref<1x8x128xf32, #tpu.memory_space<vmem>>, vector<1x8x128xf32>
      %220 = vector.shape_cast %219 : vector<1x8x128xf32> to vector<8x128xf32>
      %221 = vector.shape_cast %218 : vector<8x128xf32> to vector<1x8x128xf32>
      tpu.vector_store %arg22[%c0_113, %c0_114, %c0_115], %221 {strides = array<i32>} : memref<1x8x128xf32, #tpu.memory_space<vmem>>, vector<1x8x128xf32>,
    } else {
    }
    %c0 = arith.constant 0 : index
    %c0_1 = arith.constant 0 : index
    %3 = vector.load %arg23[%c0, %c0_1] : memref<16x128xf32, #tpu.memory_space<vmem>>, vector<16x128xf32>
    %c0_2 = arith.constant 0 : index
    %c0_3 = arith.constant 0 : index
    %4 = vector.load %arg24[%c0_2, %c0_3] : memref<136x128xbf16, #tpu.memory_space<vmem>>, vector<136x128xbf16>
    %c0_4 = arith.constant 0 : index
    %c0_5 = arith.constant 0 : index
    %c0_6 = arith.constant 0 : index
    %5 = vector.load %arg12[%c0_4, %c0_5, %c0_6] : memref<1x128x128xbf16, #tpu.memory_space<vmem>>, vector<1x128x128xbf16>
    %6 = vector.shape_cast %5 : vector<1x128x128xbf16> to vector<128x128xbf16>
    %cst = arith.constant dense<0.000000e+00> : vector<136x128xf32>
    %7 = tpu.matmul %4, %6, %cst {dimension_numbers = #tpu.dot_dimension_numbers<[1], [0], [0], [1], [0, 0, 1, 1], [], []>} : vector<136x128xbf16>, vector<128x128xbf16>, vector<136x128xf32> -> vector<136x128xf32>
    %8 = tpu.iota {dimensions = array<i32: 1>} : vector<136x16xi32>
    %c0_7 = arith.constant 0 : index
    %c0_8 = arith.constant 0 : index
    %c0_9 = arith.constant 0 : index
    %9 = vector.load %arg4[%c0_7, %c0_8, %c0_9] : memref<1x136x1xi32, #tpu.memory_space<vmem>>, vector<1x136x1xi32>
    %10 = vector.shape_cast %9 : vector<1x136x1xi32> to vector<136x1xi32>
    %11 = vector.broadcast %10 : vector<136x1xi32> to vector<136x16xi32>
    %12 = arith.cmpi eq, %8, %11 : vector<136x16xi32>
    %13 = arith.extui %12 : vector<136x16xi1> to vector<136x16xi32>
    %14 = arith.sitofp %13 : vector<136x16xi32> to vector<136x16xf32>
    %15 = arith.truncf %14 : vector<136x16xf32> to vector<136x16xbf16>
    %16 = arith.truncf %3 : vector<16x128xf32> to vector<16x128xbf16>
    %cst_10 = arith.constant dense<0.000000e+00> : vector<136x128xf32>
    %17 = tpu.matmul %15, %16, %cst_10 {dimension_numbers = #tpu.dot_dimension_numbers<[1], [0], [0], [1], [0, 0, 1, 1], [], []>} : vector<136x16xbf16>, vector<16x128xbf16>, vector<136x128xf32> -> vector<136x128xf32>
    %18 = arith.mulf %7, %17 : vector<136x128xf32>
    %19 = tpu.iota {dimensions = array<i32: 0>} : vector<16x136xi32>
    %c0_11 = arith.constant 0 : index
    %c0_12 = arith.constant 0 : index
    %c0_13 = arith.constant 0 : index
    %20 = vector.load %arg5[%c0_11, %c0_12, %c0_13] : memref<1x1x136xi32, #tpu.memory_space<vmem>>, vector<1x1x136xi32>
    %21 = vector.shape_cast %20 : vector<1x1x136xi32> to vector<1x136xi32>
    %22 = vector.broadcast %21 : vector<1x136xi32> to vector<16x136xi32>
    %23 = arith.cmpi eq, %19, %22 : vector<16x136xi32>
    %24 = arith.extui %23 : vector<16x136xi1> to vector<16x136xi32>
    %25 = arith.sitofp %24 : vector<16x136xi32> to vector<16x136xf32>
    %26 = arith.truncf %25 : vector<16x136xf32> to vector<16x136xbf16>
    %27 = arith.truncf %18 : vector<136x128xf32> to vector<136x128xbf16>
    %cst_14 = arith.constant dense<0.000000e+00> : vector<16x128xf32>
    %28 = tpu.matmul %26, %27, %cst_14 {dimension_numbers = #tpu.dot_dimension_numbers<[1], [0], [0], [1], [0, 0, 1, 1], [], []>} : vector<16x136xbf16>, vector<136x128xbf16>, vector<16x128xf32> -> vector<16x128xf32>
    %c0_15 = arith.constant 0 : index
    %c0_16 = arith.constant 0 : index
    %c0_17 = arith.constant 0 : index
    %29 = vector.load %arg13[%c0_15, %c0_16, %c0_17] : memref<1x1x128xf32, #tpu.memory_space<vmem>>, vector<1x1x128xf32>
    %30 = vector.shape_cast %29 : vector<1x1x128xf32> to vector<1x128xf32>
    %31 = vector.broadcast %30 : vector<1x128xf32> to vector<16x128xf32>
    %32 = arith.addf %28, %31 : vector<16x128xf32>
    %33 = tpu.iota {dimensions = array<i32: 1>} : vector<1x128xi32>
    %c32_i32 = arith.constant 32 : i32
    %34 = vector.broadcast %c32_i32 : i32 to vector<1x128xi32>
    %35 = arith.cmpi slt, %33, %34 : vector<1x128xi32>
    %36 = arith.extui %35 : vector<1x128xi1> to vector<1x128xi32>
    %37 = arith.sitofp %36 : vector<1x128xi32> to vector<1x128xf32>
    %cst_18 = arith.constant dense<0.000000e+00> : vector<16xf32>
    %38 = vector.multi_reduction <add>, %32, %cst_18 [1] : vector<16x128xf32> to vector<16xf32>
    %39 = vector.shape_cast %38 : vector<16xf32> to vector<16x1xf32>
    %cst_19 = arith.constant 3.125000e-02 : f32
    %40 = vector.broadcast %cst_19 : f32 to vector<16x1xf32>
    %41 = arith.mulf %39, %40 : vector<16x1xf32>
    %42 = vector.broadcast %41 : vector<16x1xf32> to vector<16x128xf32>
    %43 = arith.subf %32, %42 : vector<16x128xf32>
    %44 = arith.mulf %43, %43 : vector<16x128xf32>
    %45 = vector.broadcast %37 : vector<1x128xf32> to vector<16x128xf32>
    %46 = arith.mulf %44, %45 : vector<16x128xf32>
    %cst_20 = arith.constant dense<0.000000e+00> : vector<16xf32>
    %47 = vector.multi_reduction <add>, %46, %cst_20 [1] : vector<16x128xf32> to vector<16xf32>
    %48 = vector.shape_cast %47 : vector<16xf32> to vector<16x1xf32>
    %cst_21 = arith.constant 3.125000e-02 : f32
    %49 = vector.broadcast %cst_21 : f32 to vector<16x1xf32>
    %50 = arith.mulf %48, %49 : vector<16x1xf32>
    %cst_22 = arith.constant 9.99999974E-6 : f32
    %51 = vector.broadcast %cst_22 : f32 to vector<16x1xf32>
    %52 = arith.addf %50, %51 : vector<16x1xf32>
    %53 = math.rsqrt %52 : vector<16x1xf32>
    %54 = vector.broadcast %53 : vector<16x1xf32> to vector<16x128xf32>
    %55 = arith.mulf %43, %54 : vector<16x128xf32>
    %c0_23 = arith.constant 0 : index
    %c0_24 = arith.constant 0 : index
    %c0_25 = arith.constant 0 : index
    %56 = vector.load %arg14[%c0_23, %c0_24, %c0_25] : memref<1x1x128xf32, #tpu.memory_space<vmem>>, vector<1x1x128xf32>
    %57 = vector.shape_cast %56 : vector<1x1x128xf32> to vector<1x128xf32>
    %58 = vector.broadcast %57 : vector<1x128xf32> to vector<16x128xf32>
    %59 = arith.mulf %55, %58 : vector<16x128xf32>
    %c0_26 = arith.constant 0 : index
    %c0_27 = arith.constant 0 : index
    %c0_28 = arith.constant 0 : index
    %60 = vector.load %arg15[%c0_26, %c0_27, %c0_28] : memref<1x1x128xf32, #tpu.memory_space<vmem>>, vector<1x1x128xf32>
    %61 = vector.shape_cast %60 : vector<1x1x128xf32> to vector<1x128xf32>
    %62 = vector.broadcast %61 : vector<1x128xf32> to vector<16x128xf32>
    %63 = arith.addf %59, %62 : vector<16x128xf32>
    %64 = arith.truncf %63 : vector<16x128xf32> to vector<16x128xbf16>
    %c0_29 = arith.constant 0 : index
    %c0_30 = arith.constant 0 : index
    %c0_31 = arith.constant 0 : index
    %65 = vector.load %arg16[%c0_29, %c0_30, %c0_31] : memref<1x128x128xbf16, #tpu.memory_space<vmem>>, vector<1x128x128xbf16>
    %66 = vector.shape_cast %65 : vector<1x128x128xbf16> to vector<128x128xbf16>
    %cst_32 = arith.constant dense<0.000000e+00> : vector<16x128xf32>
    %67 = tpu.matmul %64, %66, %cst_32 {dimension_numbers = #tpu.dot_dimension_numbers<[1], [0], [0], [1], [0, 0, 1, 1], [], []>} : vector<16x128xbf16>, vector<128x128xbf16>, vector<16x128xf32> -> vector<16x128xf32>
    %c0_33 = arith.constant 0 : index
    %c0_34 = arith.constant 0 : index
    %c0_35 = arith.constant 0 : index
    %68 = vector.load %arg17[%c0_33, %c0_34, %c0_35] : memref<1x1x128xf32, #tpu.memory_space<vmem>>, vector<1x1x128xf32>
    %69 = vector.shape_cast %68 : vector<1x1x128xf32> to vector<1x128xf32>
    %70 = vector.broadcast %69 : vector<1x128xf32> to vector<16x128xf32>
    %71 = arith.addf %67, %70 : vector<16x128xf32>
    %cst_36 = arith.constant 5.000000e-01 : f32
    %72 = vector.broadcast %cst_36 : f32 to vector<16x128xf32>
    %73 = arith.mulf %72, %71 : vector<16x128xf32>
    %cst_37 = arith.constant 4.471500e-02 : f32
    %74 = vector.broadcast %cst_37 : f32 to vector<16x128xf32>
    %75 = arith.mulf %74, %71 : vector<16x128xf32>
    %76 = arith.mulf %75, %71 : vector<16x128xf32>
    %77 = arith.mulf %76, %71 : vector<16x128xf32>
    %78 = arith.addf %71, %77 : vector<16x128xf32>
    %cst_38 = arith.constant 0.797884583 : f32
    %79 = vector.broadcast %cst_38 : f32 to vector<16x128xf32>
    %80 = arith.mulf %79, %78 : vector<16x128xf32>
    %81 = math.tanh %80 : vector<16x128xf32>
    %cst_39 = arith.constant 1.000000e+00 : f32
    %82 = vector.broadcast %cst_39 : f32 to vector<16x128xf32>
    %83 = arith.addf %82, %81 : vector<16x128xf32>
    %84 = arith.mulf %73, %83 : vector<16x128xf32>
    %85 = arith.truncf %84 : vector<16x128xf32> to vector<16x128xbf16>
    %c0_40 = arith.constant 0 : index
    %c0_41 = arith.constant 0 : index
    %c0_42 = arith.constant 0 : index
    %86 = vector.load %arg18[%c0_40, %c0_41, %c0_42] : memref<1x128x128xbf16, #tpu.memory_space<vmem>>, vector<1x128x128xbf16>
    %87 = vector.shape_cast %86 : vector<1x128x128xbf16> to vector<128x128xbf16>
    %cst_43 = arith.constant dense<0.000000e+00> : vector<16x128xf32>
    %88 = tpu.matmul %85, %87, %cst_43 {dimension_numbers = #tpu.dot_dimension_numbers<[1], [0], [0], [1], [0, 0, 1, 1], [], []>} : vector<16x128xbf16>, vector<128x128xbf16>, vector<16x128xf32> -> vector<16x128xf32>
    %c0_44 = arith.constant 0 : index
    %c0_45 = arith.constant 0 : index
    %c0_46 = arith.constant 0 : index
    %89 = vector.load %arg19[%c0_44, %c0_45, %c0_46] : memref<1x1x128xf32, #tpu.memory_space<vmem>>, vector<1x1x128xf32>
    %90 = vector.shape_cast %89 : vector<1x1x128xf32> to vector<1x128xf32>
    %91 = vector.broadcast %90 : vector<1x128xf32> to vector<16x128xf32>
    %92 = arith.addf %88, %91 : vector<16x128xf32>
    %93 = arith.addf %3, %92 : vector<16x128xf32>
    %c0_47 = arith.constant 0 : index
    %c0_48 = arith.constant 0 : index
    %94 = vector.load %arg23[%c0_47, %c0_48] : memref<16x128xf32, #tpu.memory_space<vmem>>, vector<16x128xf32>
    tpu.vector_store %arg23[%c0_47, %c0_48], %93 {strides = array<i32>} : memref<16x128xf32, #tpu.memory_space<vmem>>, vector<16x128xf32>,
    %c0_49 = arith.constant 0 : index
    %c0_50 = arith.constant 0 : index
    %c0_51 = arith.constant 0 : index
    %95 = vector.load %arg6[%c0_49, %c0_50, %c0_51] : memref<1x16x1xf32, #tpu.memory_space<vmem>>, vector<1x16x1xf32>
    %96 = vector.shape_cast %95 : vector<1x16x1xf32> to vector<16x1xf32>
    %97 = vector.broadcast %96 : vector<16x1xf32> to vector<16x128xf32>
    %98 = arith.mulf %93, %97 : vector<16x128xf32>
    %cst_52 = arith.constant dense<0.000000e+00> : vector<128xf32>
    %99 = vector.multi_reduction <add>, %98, %cst_52 [0] : vector<16x128xf32> to vector<128xf32>
    %100 = vector.shape_cast %99 : vector<128xf32> to vector<1x128xf32>
    %cst_53 = arith.constant 0.000000e+00 : f32
    %101 = vector.broadcast %cst_53 : f32 to vector<8x1xf32>
    %102 = vector.broadcast %100 : vector<1x128xf32> to vector<8x128xf32>
    %103 = vector.broadcast %101 : vector<8x1xf32> to vector<8x128xf32>
    %104 = arith.addf %102, %103 : vector<8x128xf32>
    %c0_54 = arith.constant 0 : index
    %c0_55 = arith.constant 0 : index
    %c0_56 = arith.constant 0 : index
    %105 = vector.load %arg6[%c0_54, %c0_55, %c0_56] : memref<1x16x1xf32, #tpu.memory_space<vmem>>, vector<1x16x1xf32>
    %106 = vector.shape_cast %105 : vector<1x16x1xf32> to vector<16x1xf32>
    %cst_57 = arith.constant dense<0.000000e+00> : vector<1xf32>
    %107 = vector.multi_reduction <add>, %106, %cst_57 [0] : vector<16x1xf32> to vector<1xf32>
    %108 = vector.shape_cast %107 : vector<1xf32> to vector<1x1xf32>
    %109 = arith.truncf %104 : vector<8x128xf32> to vector<8x128xbf16>
    %c0_58 = arith.constant 0 : index
    %c0_59 = arith.constant 0 : index
    %c0_60 = arith.constant 0 : index
    %110 = vector.load %arg20[%c0_58, %c0_59, %c0_60] : memref<1x128x128xbf16, #tpu.memory_space<vmem>>, vector<1x128x128xbf16>
    %111 = vector.shape_cast %110 : vector<1x128x128xbf16> to vector<128x128xbf16>
    %cst_61 = arith.constant dense<0.000000e+00> : vector<8x128xf32>
    %112 = tpu.matmul %109, %111, %cst_61 {dimension_numbers = #tpu.dot_dimension_numbers<[1], [0], [0], [1], [0, 0, 1, 1], [], []>} : vector<8x128xbf16>, vector<128x128xbf16>, vector<8x128xf32> -> vector<8x128xf32>
    %c0_62 = arith.constant 0 : index
    %c0_63 = arith.constant 0 : index
    %c0_64 = arith.constant 0 : index
    %113 = vector.load %arg21[%c0_62, %c0_63, %c0_64] : memref<1x1x128xf32, #tpu.memory_space<vmem>>, vector<1x1x128xf32>
    %114 = vector.shape_cast %113 : vector<1x1x128xf32> to vector<1x128xf32>
    %115 = vector.broadcast %108 : vector<1x1xf32> to vector<1x128xf32>
    %116 = arith.mulf %115, %114 : vector<1x128xf32>
    %117 = vector.broadcast %116 : vector<1x128xf32> to vector<8x128xf32>
    %118 = arith.addf %112, %117 : vector<8x128xf32>
    %c0_65 = arith.constant 0 : index
    %c0_66 = arith.constant 0 : index
    %c0_67 = arith.constant 0 : index
    %119 = vector.load %arg22[%c0_65, %c0_66, %c0_67] : memref<1x8x128xf32, #tpu.memory_space<vmem>>, vector<1x8x128xf32>
    %120 = vector.shape_cast %119 : vector<1x8x128xf32> to vector<8x128xf32>
    %121 = arith.addf %120, %118 : vector<8x128xf32>
    %c0_68 = arith.constant 0 : index
    %c0_69 = arith.constant 0 : index
    %c0_70 = arith.constant 0 : index
    %122 = vector.load %arg22[%c0_68, %c0_69, %c0_70] : memref<1x8x128xf32, #tpu.memory_space<vmem>>, vector<1x8x128xf32>
    %123 = vector.shape_cast %122 : vector<1x8x128xf32> to vector<8x128xf32>
    %124 = vector.shape_cast %121 : vector<8x128xf32> to vector<1x8x128xf32>
    tpu.vector_store %arg22[%c0_68, %c0_69, %c0_70], %124 {strides = array<i32>} : memref<1x8x128xf32, #tpu.memory_space<vmem>>, vector<1x8x128xf32>,
    %c1_i32 = arith.constant 1 : i32
    %125 = arith.cmpi eq, %arg1, %c1_i32 : i32
    %126 = arith.extui %125 : i1 to i32
    %c0_i32_71 = arith.constant 0 : i32
    %127 = arith.cmpi ne, %126, %c0_i32_71 : i32
    scf.if %127 {
      %c0_72 = arith.constant 0 : index
      %c0_73 = arith.constant 0 : index
      %c0_74 = arith.constant 0 : index
      %128 = vector.load %arg22[%c0_72, %c0_73, %c0_74] : memref<1x8x128xf32, #tpu.memory_space<vmem>>, vector<1x8x128xf32>
      %129 = vector.shape_cast %128 : vector<1x8x128xf32> to vector<8x128xf32>
      %cst_75 = arith.constant 5.000000e-01 : f32
      %130 = vector.broadcast %cst_75 : f32 to vector<8x128xf32>
      %131 = arith.mulf %129, %130 : vector<8x128xf32>
      %c0_76 = arith.constant 0 : index
      %c0_77 = arith.constant 0 : index
      %c0_78 = arith.constant 0 : index
      %132 = vector.load %arg22[%c0_76, %c0_77, %c0_78] : memref<1x8x128xf32, #tpu.memory_space<vmem>>, vector<1x8x128xf32>
      %133 = vector.shape_cast %132 : vector<1x8x128xf32> to vector<8x128xf32>
      %134 = vector.shape_cast %131 : vector<8x128xf32> to vector<1x8x128xf32>
      tpu.vector_store %arg22[%c0_76, %c0_77, %c0_78], %134 {strides = array<i32>} : memref<1x8x128xf32, #tpu.memory_space<vmem>>, vector<1x8x128xf32>,
    } else {
    }
    return
  }
  func.func @transform_0(%arg0: i32, %arg1: i32) -> (i32, i32, i32) {
    %c0_i32 = arith.constant 0 : i32
    %c0_i32_0 = arith.constant 0 : i32
    %c0_i32_1 = arith.constant 0 : i32
    return %arg0, %c0_i32, %c0_i32_0 : i32, i32, i32
  }
  func.func @transform_1(%arg0: i32, %arg1: i32) -> (i32, i32, i32) {
    %c0_i32 = arith.constant 0 : i32
    %c0_i32_0 = arith.constant 0 : i32
    %c0_i32_1 = arith.constant 0 : i32
    return %arg0, %c0_i32, %c0_i32_0 : i32, i32, i32
  }
  func.func @transform_2(%arg0: i32, %arg1: i32) -> (i32, i32, i32) {
    %c0_i32 = arith.constant 0 : i32
    %c0_i32_0 = arith.constant 0 : i32
    %c0_i32_1 = arith.constant 0 : i32
    return %arg0, %c0_i32, %c0_i32_0 : i32, i32, i32
  }
  func.func @transform_3(%arg0: i32, %arg1: i32) -> (i32, i32, i32) {
    %c0_i32 = arith.constant 0 : i32
    %c0_i32_0 = arith.constant 0 : i32
    %c0_i32_1 = arith.constant 0 : i32
    return %arg0, %c0_i32, %c0_i32_0 : i32, i32, i32
  }
  func.func @transform_4(%arg0: i32, %arg1: i32) -> (i32, i32, i32) {
    %c0_i32 = arith.constant 0 : i32
    %c0_i32_0 = arith.constant 0 : i32
    %c0_i32_1 = arith.constant 0 : i32
    return %arg0, %c0_i32, %c0_i32_0 : i32, i32, i32
  }
  func.func @transform_5(%arg0: i32, %arg1: i32) -> (i32, i32) {
    %c0_i32 = arith.constant 0 : i32
    %c0_i32_0 = arith.constant 0 : i32
    %c0_i32_1 = arith.constant 0 : i32
    return %c0_i32, %c0_i32_0 : i32, i32
  }
  func.func @transform_6(%arg0: i32, %arg1: i32) -> (i32, i32) {
    %c0_i32 = arith.constant 0 : i32
    %c0_i32_0 = arith.constant 0 : i32
    %c0_i32_1 = arith.constant 0 : i32
    return %c0_i32, %c0_i32_0 : i32, i32
  }
  func.func @transform_7(%arg0: i32, %arg1: i32) -> (i32, i32) {
    %c0_i32 = arith.constant 0 : i32
    %c0_i32_0 = arith.constant 0 : i32
    %c0_i32_1 = arith.constant 0 : i32
    return %c0_i32, %c0_i32_0 : i32, i32
  }
  func.func @transform_8(%arg0: i32, %arg1: i32) -> (i32, i32) {
    %c0_i32 = arith.constant 0 : i32
    %c0_i32_0 = arith.constant 0 : i32
    %c0_i32_1 = arith.constant 0 : i32
    return %c0_i32, %c0_i32_0 : i32, i32
  }
  func.func @transform_9(%arg0: i32, %arg1: i32) -> (i32, i32) {
    %c0_i32 = arith.constant 0 : i32
    %c0_i32_0 = arith.constant 0 : i32
    %c0_i32_1 = arith.constant 0 : i32
    return %c0_i32, %c0_i32_0 : i32, i32
  }
  func.func @transform_10(%arg0: i32, %arg1: i32) -> (i32, i32, i32) {
    %c0_i32 = arith.constant 0 : i32
    %c0_i32_0 = arith.constant 0 : i32
    %c0_i32_1 = arith.constant 0 : i32
    return %arg1, %c0_i32, %c0_i32_0 : i32, i32, i32
  }
  func.func @transform_11(%arg0: i32, %arg1: i32) -> (i32, i32, i32) {
    %c0_i32 = arith.constant 0 : i32
    %c0_i32_0 = arith.constant 0 : i32
    %c0_i32_1 = arith.constant 0 : i32
    return %arg1, %c0_i32, %c0_i32_0 : i32, i32, i32
  }
  func.func @transform_12(%arg0: i32, %arg1: i32) -> (i32, i32, i32) {
    %c0_i32 = arith.constant 0 : i32
    %c0_i32_0 = arith.constant 0 : i32
    %c0_i32_1 = arith.constant 0 : i32
    return %arg1, %c0_i32, %c0_i32_0 : i32, i32, i32
  }
  func.func @transform_13(%arg0: i32, %arg1: i32) -> (i32, i32, i32) {
    %c0_i32 = arith.constant 0 : i32
    %c0_i32_0 = arith.constant 0 : i32
    %c0_i32_1 = arith.constant 0 : i32
    return %arg1, %c0_i32, %c0_i32_0 : i32, i32, i32
  }
  func.func @transform_14(%arg0: i32, %arg1: i32) -> (i32, i32, i32) {
    %c0_i32 = arith.constant 0 : i32
    %c0_i32_0 = arith.constant 0 : i32
    %c0_i32_1 = arith.constant 0 : i32
    return %arg1, %c0_i32, %c0_i32_0 : i32, i32, i32
  }
  func.func @transform_15(%arg0: i32, %arg1: i32) -> (i32, i32, i32) {
    %c0_i32 = arith.constant 0 : i32
    %c0_i32_0 = arith.constant 0 : i32
    %c0_i32_1 = arith.constant 0 : i32
    return %arg1, %c0_i32, %c0_i32_0 : i32, i32, i32
  }
  func.func @transform_16(%arg0: i32, %arg1: i32) -> (i32, i32, i32) {
    %c0_i32 = arith.constant 0 : i32
    %c0_i32_0 = arith.constant 0 : i32
    %c0_i32_1 = arith.constant 0 : i32
    return %arg1, %c0_i32, %c0_i32_0 : i32, i32, i32
  }
  func.func @transform_17(%arg0: i32, %arg1: i32) -> (i32, i32, i32) {
    %c0_i32 = arith.constant 0 : i32
    %c0_i32_0 = arith.constant 0 : i32
    %c0_i32_1 = arith.constant 0 : i32
    return %arg1, %c0_i32, %c0_i32_0 : i32, i32, i32
  }
  func.func @transform_18(%arg0: i32, %arg1: i32) -> (i32, i32, i32) {
    %c0_i32 = arith.constant 0 : i32
    %c0_i32_0 = arith.constant 0 : i32
    %c0_i32_1 = arith.constant 0 : i32
    return %arg1, %c0_i32, %c0_i32_0 : i32, i32, i32
  }
  func.func @transform_19(%arg0: i32, %arg1: i32) -> (i32, i32, i32) {
    %c0_i32 = arith.constant 0 : i32
    %c0_i32_0 = arith.constant 0 : i32
    %c0_i32_1 = arith.constant 0 : i32
    return %arg1, %c0_i32, %c0_i32_0 : i32, i32, i32
  }
  func.func @transform_20(%arg0: i32, %arg1: i32) -> (i32, i32, i32) {
    %c0_i32 = arith.constant 0 : i32
    %c0_i32_0 = arith.constant 0 : i32
    %c0_i32_1 = arith.constant 0 : i32
    return %arg0, %c0_i32, %c0_i32_0 : i32, i32, i32
  }
}

</mosaic_0001>

<llo_original>
// kernel: tpu_custom_call.1
$region0: #{tpu_custom_call.1}
  #allocation0 [shape = 'u32[]', space=smem, size = 0x4, offset = 0x4, fixed_abs, tag = 'smem constant byte address 0x4 - core index']
  #allocation1 [shape = 'u32[144,128]{1,0:T(1,128)}', space=vmem, size = 0x12000, scoped, tag = 'internal scratch']
  #allocation2 [shape = 'f32[16,128]{1,0:T(8,128)}', space=vmem, size = 0x2000, scoped, tag = 'scratch operand']
  #allocation3 [shape = 'bf16[136,128]{1,0:T(8,128)(2,1)}', space=vmem, size = 0x8800, scoped, tag = 'scratch operand']
  %s0 = inlined_call_operand.vmem [shape: f32[2,16,4], index: 0, kind: input, shape index: {}]
  %s1 = inlined_call_operand.vmem [shape: f32[2,136,1], index: 1, kind: input, shape index: {}]
  %s2 = inlined_call_operand.vmem [shape: s32[2,136,1], index: 2, kind: input, shape index: {}]
  %s3 = inlined_call_operand.vmem [shape: s32[2,1,136], index: 3, kind: input, shape index: {}]
  %s4 = inlined_call_operand.vmem [shape: f32[2,16,1], index: 4, kind: input, shape index: {}]
  %s5 = inlined_call_operand.vmem [shape: bf16[4,128], index: 5, kind: input, shape index: {}]
  %s6 = inlined_call_operand.vmem [shape: f32[4,128], index: 6, kind: input, shape index: {}]
  %s7 = inlined_call_operand.vmem [shape: f32[1,128], index: 7, kind: input, shape index: {}]
  %s8 = inlined_call_operand.vmem [shape: bf16[128,128], index: 8, kind: input, shape index: {}]
  %s9 = inlined_call_operand.vmem [shape: f32[1,128], index: 9, kind: input, shape index: {}]
  %s10 = inlined_call_operand.vmem [shape: bf16[2,128,128], index: 10, kind: input, shape index: {}]
  %s11 = inlined_call_operand.vmem [shape: f32[2,1,128], index: 11, kind: input, shape index: {}]
  %s12 = inlined_call_operand.vmem [shape: f32[2,1,128], index: 12, kind: input, shape index: {}]
  %s13 = inlined_call_operand.vmem [shape: f32[2,1,128], index: 13, kind: input, shape index: {}]
  %s14 = inlined_call_operand.vmem [shape: bf16[2,128,128], index: 14, kind: input, shape index: {}]
  %s15 = inlined_call_operand.vmem [shape: f32[2,1,128], index: 15, kind: input, shape index: {}]
  %s16 = inlined_call_operand.vmem [shape: bf16[2,128,128], index: 16, kind: input, shape index: {}]
  %s17 = inlined_call_operand.vmem [shape: f32[2,1,128], index: 17, kind: input, shape index: {}]
  %s18 = inlined_call_operand.vmem [shape: bf16[2,128,128], index: 18, kind: input, shape index: {}]
  %s19 = inlined_call_operand.vmem [shape: f32[2,1,128], index: 19, kind: input, shape index: {}]
  %s20 = inlined_call_operand.hbm [shape: f32[2,8,128], index: 20, kind: output, shape index: {}]
  %s21 = sld [smem:[#allocation0]]
  $region121: #{tpu_custom_call.1} parent=0
    _
  %s23 = ssub.s32 1, %s21
  %s24 = scalar_select 0, %s23, %s21
  $region1: #{tpu_custom_call.1} parent=0
    #allocation4 [shape = 'u8[8192]{0}', space=vmem, size = 0x2000, scoped, tag = 'output window, operand 0']
    #allocation5 [shape = 's32[2]{0}', space=sflag, size = 0x8, scoped, tag = 'scoped memory for tpu_custom_call.1']
    %25 = vsyncpa [#allocation5], 0
    %s26 = scalar_lea.sflag [#allocation5], 1
    %27 = vsyncpa %s26, 0
    loop: start=0, step=1, limit=6
    $region2: #{tpu_custom_call.1} parent=1 // loop_pre_header
      _
    $region3: #{tpu_custom_call.1} parent=1 // loop_header
      %s29 = sphi 0, %s33
      %p30 = scmp.ge.s32.totalorder %s29, 6
      %s36 = sphi 0, %s48
      %s37 = sphi 0, %s44
      %s38 = sphi 0, %s36
      %s39 = sphi 0, %s37
      %s40 = sphi 0, %s38
      %s41 = sphi 0, %s39
      %s51 = sphi 0, %s53
      %s54 = sphi 0, %s51
      %s55 = sphi 0, %s54
      %s71 = sphi 0, %s55
      %s77 = sphi 0, %s79
      %s80 = sphi 0, %s77
      %s81 = sphi 0, %s80
      %s97 = sphi 0, %s81
      %s103 = sphi 0, %s105
      %s106 = sphi 0, %s103
      %s107 = sphi 0, %s106
      %s123 = sphi 0, %s107
      %s129 = sphi 0, %s131
      %s132 = sphi 0, %s129
      %s133 = sphi 0, %s132
      %s149 = sphi 0, %s133
      %s155 = sphi 0, %s157
      %s158 = sphi 0, %s155
      %s159 = sphi 0, %s158
      %s175 = sphi 0, %s159
      %s179 = sphi 0, %s179
      %s181 = sphi 0, %s179
      %s182 = sphi 0, %s181
      %s196 = sphi 0, %s182
      %s200 = sphi 0, %s200
      %s202 = sphi 0, %s200
      %s203 = sphi 0, %s202
      %s217 = sphi 0, %s203
      %s221 = sphi 0, %s221
      %s223 = sphi 0, %s221
      %s224 = sphi 0, %s223
      %s238 = sphi 0, %s224
      %s242 = sphi 0, %s242
      %s244 = sphi 0, %s242
      %s245 = sphi 0, %s244
      %s259 = sphi 0, %s245
      %s263 = sphi 0, %s263
      %s265 = sphi 0, %s263
      %s266 = sphi 0, %s265
      %s280 = sphi 0, %s266
      %s286 = sphi 0, %s288
      %s289 = sphi 0, %s286
      %s290 = sphi 0, %s289
      %s306 = sphi 0, %s290
      %s312 = sphi 0, %s314
      %s315 = sphi 0, %s312
      %s316 = sphi 0, %s315
      %s332 = sphi 0, %s316
      %s338 = sphi 0, %s340
      %s341 = sphi 0, %s338
      %s342 = sphi 0, %s341
      %s358 = sphi 0, %s342
      %s364 = sphi 0, %s366
      %s367 = sphi 0, %s364
      %s368 = sphi 0, %s367
      %s384 = sphi 0, %s368
      %s390 = sphi 0, %s392
      %s393 = sphi 0, %s390
      %s394 = sphi 0, %s393
      %s410 = sphi 0, %s394
      %s416 = sphi 0, %s418
      %s419 = sphi 0, %s416
      %s420 = sphi 0, %s419
      %s436 = sphi 0, %s420
      %s442 = sphi 0, %s444
      %s445 = sphi 0, %s442
      %s446 = sphi 0, %s445
      %s462 = sphi 0, %s446
      %s468 = sphi 0, %s470
      %s471 = sphi 0, %s468
      %s472 = sphi 0, %s471
      %s488 = sphi 0, %s472
      %s494 = sphi 0, %s496
      %s497 = sphi 0, %s494
      %s498 = sphi 0, %s497
      %s514 = sphi 0, %s498
      %s520 = sphi 0, %s522
      %s523 = sphi 0, %s520
      %s524 = sphi 0, %s523
      %s540 = sphi 0, %s524
      %s546 = sphi 0, %s548
      %s549 = sphi 0, %s546
      %s550 = sphi 0, %s549
      %s566 = sphi 0, %s550
    $region4: #{tpu_custom_call.1} parent=1 // loop_header_branch
      %32 = sbr.rel (%p30) target = $region8
    $region5: #{tpu_custom_call.1} parent=1 // loop_body
      %s34 = ssub.s32 %s29, 1
      %s35 = ssub.s32 %s29, 2
      %s42 = sadd.s32 1, %s37
      %p43 = scmp.ge.s32.totalorder %s42, 2
      %s44 = scalar_select %p43, 0, %s42
      %s45 = sadd.s32 1, %s36
      %s46 = scalar_select %p43, %s45, %s36
      %p47 = scmp.ge.s32.totalorder %s46, 2
      %s48 = scalar_select %p47, 0, %s46
      %s49 = ssub.s32 %s36, %s48
      %p50 = scmp.eq.s32.totalorder %s49, 0
      %s52 = sadd.s32 %s51, 1
      %s53 = scalar_select %p50, %s51, %s52
      %p56 = pneg %p50
      %p57 = scmp.eq.s32.totalorder %s29, 3
      %p58 = por %p56, %p57
      %p59 = scmp.ne.s32.totalorder %s51, %s54
      %p60 = scmp.eq.s32.totalorder %s29, 0
      %p61 = por %p59, %p60
      %p62 = scmp.ne.s32.totalorder %s51, %s54
      %p63 = scmp.eq.s32.totalorder %s34, 3
      %p64 = por %p62, %p63
      %p65 = scmp.ne.s32.totalorder %s54, %s55
      %p66 = scmp.eq.s32.totalorder %s34, 0
      %p67 = por %p65, %p66
      %p68 = scmp.ne.s32.totalorder %s54, %s55
      %p69 = scmp.eq.s32.totalorder %s35, 3
      %p70 = por %p68, %p69
      %p72 = scmp.ne.s32.totalorder %s55, %s71
      %p73 = scmp.eq.s32.totalorder %s35, 0
      %p74 = por %p72, %p73
      %s75 = ssub.s32 %s36, %s48
      %p76 = scmp.eq.s32.totalorder %s75, 0
      %s78 = sadd.s32 %s77, 1
      %s79 = scalar_select %p76, %s77, %s78
      %p82 = pneg %p76
      %p83 = scmp.eq.s32.totalorder %s29, 3
      %p84 = por %p82, %p83
      %p85 = scmp.ne.s32.totalorder %s77, %s80
      %p86 = scmp.eq.s32.totalorder %s29, 0
      %p87 = por %p85, %p86
      %p88 = scmp.ne.s32.totalorder %s77, %s80
      %p89 = scmp.eq.s32.totalorder %s34, 3
      %p90 = por %p88, %p89
      %p91 = scmp.ne.s32.totalorder %s80, %s81
      %p92 = scmp.eq.s32.totalorder %s34, 0
      %p93 = por %p91, %p92
      %p94 = scmp.ne.s32.totalorder %s80, %s81
      %p95 = scmp.eq.s32.totalorder %s35, 3
      %p96 = por %p94, %p95
      %p98 = scmp.ne.s32.totalorder %s81, %s97
      %p99 = scmp.eq.s32.totalorder %s35, 0
      %p100 = por %p98, %p99
      %s101 = ssub.s32 %s36, %s48
      %p102 = scmp.eq.s32.totalorder %s101, 0
      %s104 = sadd.s32 %s103, 1
      %s105 = scalar_select %p102, %s103, %s104
      %p108 = pneg %p102
      %p109 = scmp.eq.s32.totalorder %s29, 3
      %p110 = por %p108, %p109
      %p111 = scmp.ne.s32.totalorder %s103, %s106
      %p112 = scmp.eq.s32.totalorder %s29, 0
      %p113 = por %p111, %p112
      %p114 = scmp.ne.s32.totalorder %s103, %s106
      %p115 = scmp.eq.s32.totalorder %s34, 3
      %p116 = por %p114, %p115
      %p117 = scmp.ne.s32.totalorder %s106, %s107
      %p118 = scmp.eq.s32.totalorder %s34, 0
      %p119 = por %p117, %p118
      %p120 = scmp.ne.s32.totalorder %s106, %s107
      %p121 = scmp.eq.s32.totalorder %s35, 3
      %p122 = por %p120, %p121
      %p124 = scmp.ne.s32.totalorder %s107, %s123
      %p125 = scmp.eq.s32.totalorder %s35, 0
      %p126 = por %p124, %p125
      %s127 = ssub.s32 %s36, %s48
      %p128 = scmp.eq.s32.totalorder %s127, 0
      %s130 = sadd.s32 %s129, 1
      %s131 = scalar_select %p128, %s129, %s130
      %p134 = pneg %p128
      %p135 = scmp.eq.s32.totalorder %s29, 3
      %p136 = por %p134, %p135
      %p137 = scmp.ne.s32.totalorder %s129, %s132
      %p138 = scmp.eq.s32.totalorder %s29, 0
      %p139 = por %p137, %p138
      %p140 = scmp.ne.s32.totalorder %s129, %s132
      %p141 = scmp.eq.s32.totalorder %s34, 3
      %p142 = por %p140, %p141
      %p143 = scmp.ne.s32.totalorder %s132, %s133
      %p144 = scmp.eq.s32.totalorder %s34, 0
      %p145 = por %p143, %p144
      %p146 = scmp.ne.s32.totalorder %s132, %s133
      %p147 = scmp.eq.s32.totalorder %s35, 3
      %p148 = por %p146, %p147
      %p150 = scmp.ne.s32.totalorder %s133, %s149
      %p151 = scmp.eq.s32.totalorder %s35, 0
      %p152 = por %p150, %p151
      %s153 = ssub.s32 %s36, %s48
      %p154 = scmp.eq.s32.totalorder %s153, 0
      %s156 = sadd.s32 %s155, 1
      %s157 = scalar_select %p154, %s155, %s156
      %p160 = pneg %p154
      %p161 = scmp.eq.s32.totalorder %s29, 3
      %p162 = por %p160, %p161
      %p163 = scmp.ne.s32.totalorder %s155, %s158
      %p164 = scmp.eq.s32.totalorder %s29, 0
      %p165 = por %p163, %p164
      %p166 = scmp.ne.s32.totalorder %s155, %s158
      %p167 = scmp.eq.s32.totalorder %s34, 3
      %p168 = por %p166, %p167
      %p169 = scmp.ne.s32.totalorder %s158, %s159
      %p170 = scmp.eq.s32.totalorder %s34, 0
      %p171 = por %p169, %p170
      %p172 = scmp.ne.s32.totalorder %s158, %s159
      %p173 = scmp.eq.s32.totalorder %s35, 3
      %p174 = por %p172, %p173
      %p176 = scmp.ne.s32.totalorder %s159, %s175
      %p177 = scmp.eq.s32.totalorder %s35, 0
      %p178 = por %p176, %p177
      %s180 = sadd.s32 %s179, 1
      %p183 = scmp.eq.s32.totalorder %s29, 3
      %p184 = scmp.ne.s32.totalorder %s179, %s181
      %p185 = scmp.eq.s32.totalorder %s29, 0
      %p186 = por %p184, %p185
      %p187 = scmp.ne.s32.totalorder %s179, %s181
      %p188 = scmp.eq.s32.totalorder %s34, 3
      %p189 = por %p187, %p188
      %p190 = scmp.ne.s32.totalorder %s181, %s182
      %p191 = scmp.eq.s32.totalorder %s34, 0
      %p192 = por %p190, %p191
      %p193 = scmp.ne.s32.totalorder %s181, %s182
      %p194 = scmp.eq.s32.totalorder %s35, 3
      %p195 = por %p193, %p194
      %p197 = scmp.ne.s32.totalorder %s182, %s196
      %p198 = scmp.eq.s32.totalorder %s35, 0
      %p199 = por %p197, %p198
      %s201 = sadd.s32 %s200, 1
      %p204 = scmp.eq.s32.totalorder %s29, 3
      %p205 = scmp.ne.s32.totalorder %s200, %s202
      %p206 = scmp.eq.s32.totalorder %s29, 0
      %p207 = por %p205, %p206
      %p208 = scmp.ne.s32.totalorder %s200, %s202
      %p209 = scmp.eq.s32.totalorder %s34, 3
      %p210 = por %p208, %p209
      %p211 = scmp.ne.s32.totalorder %s202, %s203
      %p212 = scmp.eq.s32.totalorder %s34, 0
      %p213 = por %p211, %p212
      %p214 = scmp.ne.s32.totalorder %s202, %s203
      %p215 = scmp.eq.s32.totalorder %s35, 3
      %p216 = por %p214, %p215
      %p218 = scmp.ne.s32.totalorder %s203, %s217
      %p219 = scmp.eq.s32.totalorder %s35, 0
      %p220 = por %p218, %p219
      %s222 = sadd.s32 %s221, 1
      %p225 = scmp.eq.s32.totalorder %s29, 3
      %p226 = scmp.ne.s32.totalorder %s221, %s223
      %p227 = scmp.eq.s32.totalorder %s29, 0
      %p228 = por %p226, %p227
      %p229 = scmp.ne.s32.totalorder %s221, %s223
      %p230 = scmp.eq.s32.totalorder %s34, 3
      %p231 = por %p229, %p230
      %p232 = scmp.ne.s32.totalorder %s223, %s224
      %p233 = scmp.eq.s32.totalorder %s34, 0
      %p234 = por %p232, %p233
      %p235 = scmp.ne.s32.totalorder %s223, %s224
      %p236 = scmp.eq.s32.totalorder %s35, 3
      %p237 = por %p235, %p236
      %p239 = scmp.ne.s32.totalorder %s224, %s238
      %p240 = scmp.eq.s32.totalorder %s35, 0
      %p241 = por %p239, %p240
      %s243 = sadd.s32 %s242, 1
      %p246 = scmp.eq.s32.totalorder %s29, 3
      %p247 = scmp.ne.s32.totalorder %s242, %s244
      %p248 = scmp.eq.s32.totalorder %s29, 0
      %p249 = por %p247, %p248
      %p250 = scmp.ne.s32.totalorder %s242, %s244
      %p251 = scmp.eq.s32.totalorder %s34, 3
      %p252 = por %p250, %p251
      %p253 = scmp.ne.s32.totalorder %s244, %s245
      %p254 = scmp.eq.s32.totalorder %s34, 0
      %p255 = por %p253, %p254
      %p256 = scmp.ne.s32.totalorder %s244, %s245
      %p257 = scmp.eq.s32.totalorder %s35, 3
      %p258 = por %p256, %p257
      %p260 = scmp.ne.s32.totalorder %s245, %s259
      %p261 = scmp.eq.s32.totalorder %s35, 0
      %p262 = por %p260, %p261
      %s264 = sadd.s32 %s263, 1
      %p267 = scmp.eq.s32.totalorder %s29, 3
      %p268 = scmp.ne.s32.totalorder %s263, %s265
      %p269 = scmp.eq.s32.totalorder %s29, 0
      %p270 = por %p268, %p269
      %p271 = scmp.ne.s32.totalorder %s263, %s265
      %p272 = scmp.eq.s32.totalorder %s34, 3
      %p273 = por %p271, %p272
      %p274 = scmp.ne.s32.totalorder %s265, %s266
      %p275 = scmp.eq.s32.totalorder %s34, 0
      %p276 = por %p274, %p275
      %p277 = scmp.ne.s32.totalorder %s265, %s266
      %p278 = scmp.eq.s32.totalorder %s35, 3
      %p279 = por %p277, %p278
      %p281 = scmp.ne.s32.totalorder %s266, %s280
      %p282 = scmp.eq.s32.totalorder %s35, 0
      %p283 = por %p281, %p282
      %s284 = ssub.s32 %s37, %s44
      %p285 = scmp.eq.s32.totalorder %s284, 0
      %s287 = sadd.s32 %s286, 1
      %s288 = scalar_select %p285, %s286, %s287
      %p291 = pneg %p285
      %p292 = scmp.eq.s32.totalorder %s29, 3
      %p293 = por %p291, %p292
      %p294 = scmp.ne.s32.totalorder %s286, %s289
      %p295 = scmp.eq.s32.totalorder %s29, 0
      %p296 = por %p294, %p295
      %p297 = scmp.ne.s32.totalorder %s286, %s289
      %p298 = scmp.eq.s32.totalorder %s34, 3
      %p299 = por %p297, %p298
      %p300 = scmp.ne.s32.totalorder %s289, %s290
      %p301 = scmp.eq.s32.totalorder %s34, 0
      %p302 = por %p300, %p301
      %p303 = scmp.ne.s32.totalorder %s289, %s290
      %p304 = scmp.eq.s32.totalorder %s35, 3
      %p305 = por %p303, %p304
      %p307 = scmp.ne.s32.totalorder %s290, %s306
      %p308 = scmp.eq.s32.totalorder %s35, 0
      %p309 = por %p307, %p308
      %s310 = ssub.s32 %s37, %s44
      %p311 = scmp.eq.s32.totalorder %s310, 0
      %s313 = sadd.s32 %s312, 1
      %s314 = scalar_select %p311, %s312, %s313
      %p317 = pneg %p311
      %p318 = scmp.eq.s32.totalorder %s29, 3
      %p319 = por %p317, %p318
      %p320 = scmp.ne.s32.totalorder %s312, %s315
      %p321 = scmp.eq.s32.totalorder %s29, 0
      %p322 = por %p320, %p321
      %p323 = scmp.ne.s32.totalorder %s312, %s315
      %p324 = scmp.eq.s32.totalorder %s34, 3
      %p325 = por %p323, %p324
      %p326 = scmp.ne.s32.totalorder %s315, %s316
      %p327 = scmp.eq.s32.totalorder %s34, 0
      %p328 = por %p326, %p327
      %p329 = scmp.ne.s32.totalorder %s315, %s316
      %p330 = scmp.eq.s32.totalorder %s35, 3
      %p331 = por %p329, %p330
      %p333 = scmp.ne.s32.totalorder %s316, %s332
      %p334 = scmp.eq.s32.totalorder %s35, 0
      %p335 = por %p333, %p334
      %s336 = ssub.s32 %s37, %s44
      %p337 = scmp.eq.s32.totalorder %s336, 0
      %s339 = sadd.s32 %s338, 1
      %s340 = scalar_select %p337, %s338, %s339
      %p343 = pneg %p337
      %p344 = scmp.eq.s32.totalorder %s29, 3
      %p345 = por %p343, %p344
      %p346 = scmp.ne.s32.totalorder %s338, %s341
      %p347 = scmp.eq.s32.totalorder %s29, 0
      %p348 = por %p346, %p347
      %p349 = scmp.ne.s32.totalorder %s338, %s341
      %p350 = scmp.eq.s32.totalorder %s34, 3
      %p351 = por %p349, %p350
      %p352 = scmp.ne.s32.totalorder %s341, %s342
      %p353 = scmp.eq.s32.totalorder %s34, 0
      %p354 = por %p352, %p353
      %p355 = scmp.ne.s32.totalorder %s341, %s342
      %p356 = scmp.eq.s32.totalorder %s35, 3
      %p357 = por %p355, %p356
      %p359 = scmp.ne.s32.totalorder %s342, %s358
      %p360 = scmp.eq.s32.totalorder %s35, 0
      %p361 = por %p359, %p360
      %s362 = ssub.s32 %s37, %s44
      %p363 = scmp.eq.s32.totalorder %s362, 0
      %s365 = sadd.s32 %s364, 1
      %s366 = scalar_select %p363, %s364, %s365
      %p369 = pneg %p363
      %p370 = scmp.eq.s32.totalorder %s29, 3
      %p371 = por %p369, %p370
      %p372 = scmp.ne.s32.totalorder %s364, %s367
      %p373 = scmp.eq.s32.totalorder %s29, 0
      %p374 = por %p372, %p373
      %p375 = scmp.ne.s32.totalorder %s364, %s367
      %p376 = scmp.eq.s32.totalorder %s34, 3
      %p377 = por %p375, %p376
      %p378 = scmp.ne.s32.totalorder %s367, %s368
      %p379 = scmp.eq.s32.totalorder %s34, 0
      %p380 = por %p378, %p379
      %p381 = scmp.ne.s32.totalorder %s367, %s368
      %p382 = scmp.eq.s32.totalorder %s35, 3
      %p383 = por %p381, %p382
      %p385 = scmp.ne.s32.totalorder %s368, %s384
      %p386 = scmp.eq.s32.totalorder %s35, 0
      %p387 = por %p385, %p386
      %s388 = ssub.s32 %s37, %s44
      %p389 = scmp.eq.s32.totalorder %s388, 0
      %s391 = sadd.s32 %s390, 1
      %s392 = scalar_select %p389, %s390, %s391
      %p395 = pneg %p389
      %p396 = scmp.eq.s32.totalorder %s29, 3
      %p397 = por %p395, %p396
      %p398 = scmp.ne.s32.totalorder %s390, %s393
      %p399 = scmp.eq.s32.totalorder %s29, 0
      %p400 = por %p398, %p399
      %p401 = scmp.ne.s32.totalorder %s390, %s393
      %p402 = scmp.eq.s32.totalorder %s34, 3
      %p403 = por %p401, %p402
      %p404 = scmp.ne.s32.totalorder %s393, %s394
      %p405 = scmp.eq.s32.totalorder %s34, 0
      %p406 = por %p404, %p405
      %p407 = scmp.ne.s32.totalorder %s393, %s394
      %p408 = scmp.eq.s32.totalorder %s35, 3
      %p409 = por %p407, %p408
      %p411 = scmp.ne.s32.totalorder %s394, %s410
      %p412 = scmp.eq.s32.totalorder %s35, 0
      %p413 = por %p411, %p412
      %s414 = ssub.s32 %s37, %s44
      %p415 = scmp.eq.s32.totalorder %s414, 0
      %s417 = sadd.s32 %s416, 1
      %s418 = scalar_select %p415, %s416, %s417
      %p421 = pneg %p415
      %p422 = scmp.eq.s32.totalorder %s29, 3
      %p423 = por %p421, %p422
      %p424 = scmp.ne.s32.totalorder %s416, %s419
      %p425 = scmp.eq.s32.totalorder %s29, 0
      %p426 = por %p424, %p425
      %p427 = scmp.ne.s32.totalorder %s416, %s419
      %p428 = scmp.eq.s32.totalorder %s34, 3
      %p429 = por %p427, %p428
      %p430 = scmp.ne.s32.totalorder %s419, %s420
      %p431 = scmp.eq.s32.totalorder %s34, 0
      %p432 = por %p430, %p431
      %p433 = scmp.ne.s32.totalorder %s419, %s420
      %p434 = scmp.eq.s32.totalorder %s35, 3
      %p435 = por %p433, %p434
      %p437 = scmp.ne.s32.totalorder %s420, %s436
      %p438 = scmp.eq.s32.totalorder %s35, 0
      %p439 = por %p437, %p438
      %s440 = ssub.s32 %s37, %s44
      %p441 = scmp.eq.s32.totalorder %s440, 0
      %s443 = sadd.s32 %s442, 1
      %s444 = scalar_select %p441, %s442, %s443
      %p447 = pneg %p441
      %p448 = scmp.eq.s32.totalorder %s29, 3
      %p449 = por %p447, %p448
      %p450 = scmp.ne.s32.totalorder %s442, %s445
      %p451 = scmp.eq.s32.totalorder %s29, 0
      %p452 = por %p450, %p451
      %p453 = scmp.ne.s32.totalorder %s442, %s445
      %p454 = scmp.eq.s32.totalorder %s34, 3
      %p455 = por %p453, %p454
      %p456 = scmp.ne.s32.totalorder %s445, %s446
      %p457 = scmp.eq.s32.totalorder %s34, 0
      %p458 = por %p456, %p457
      %p459 = scmp.ne.s32.totalorder %s445, %s446
      %p460 = scmp.eq.s32.totalorder %s35, 3
      %p461 = por %p459, %p460
      %p463 = scmp.ne.s32.totalorder %s446, %s462
      %p464 = scmp.eq.s32.totalorder %s35, 0
      %p465 = por %p463, %p464
      %s466 = ssub.s32 %s37, %s44
      %p467 = scmp.eq.s32.totalorder %s466, 0
      %s469 = sadd.s32 %s468, 1
      %s470 = scalar_select %p467, %s468, %s469
      %p473 = pneg %p467
      %p474 = scmp.eq.s32.totalorder %s29, 3
      %p475 = por %p473, %p474
      %p476 = scmp.ne.s32.totalorder %s468, %s471
      %p477 = scmp.eq.s32.totalorder %s29, 0
      %p478 = por %p476, %p477
      %p479 = scmp.ne.s32.totalorder %s468, %s471
      %p480 = scmp.eq.s32.totalorder %s34, 3
      %p481 = por %p479, %p480
      %p482 = scmp.ne.s32.totalorder %s471, %s472
      %p483 = scmp.eq.s32.totalorder %s34, 0
      %p484 = por %p482, %p483
      %p485 = scmp.ne.s32.totalorder %s471, %s472
      %p486 = scmp.eq.s32.totalorder %s35, 3
      %p487 = por %p485, %p486
      %p489 = scmp.ne.s32.totalorder %s472, %s488
      %p490 = scmp.eq.s32.totalorder %s35, 0
      %p491 = por %p489, %p490
      %s492 = ssub.s32 %s37, %s44
      %p493 = scmp.eq.s32.totalorder %s492, 0
      %s495 = sadd.s32 %s494, 1
      %s496 = scalar_select %p493, %s494, %s495
      %p499 = pneg %p493
      %p500 = scmp.eq.s32.totalorder %s29, 3
      %p501 = por %p499, %p500
      %p502 = scmp.ne.s32.totalorder %s494, %s497
      %p503 = scmp.eq.s32.totalorder %s29, 0
      %p504 = por %p502, %p503
      %p505 = scmp.ne.s32.totalorder %s494, %s497
      %p506 = scmp.eq.s32.totalorder %s34, 3
      %p507 = por %p505, %p506
      %p508 = scmp.ne.s32.totalorder %s497, %s498
      %p509 = scmp.eq.s32.totalorder %s34, 0
      %p510 = por %p508, %p509
      %p511 = scmp.ne.s32.totalorder %s497, %s498
      %p512 = scmp.eq.s32.totalorder %s35, 3
      %p513 = por %p511, %p512
      %p515 = scmp.ne.s32.totalorder %s498, %s514
      %p516 = scmp.eq.s32.totalorder %s35, 0
      %p517 = por %p515, %p516
      %s518 = ssub.s32 %s37, %s44
      %p519 = scmp.eq.s32.totalorder %s518, 0
      %s521 = sadd.s32 %s520, 1
      %s522 = scalar_select %p519, %s520, %s521
      %p525 = pneg %p519
      %p526 = scmp.eq.s32.totalorder %s29, 3
      %p527 = por %p525, %p526
      %p528 = scmp.ne.s32.totalorder %s520, %s523
      %p529 = scmp.eq.s32.totalorder %s29, 0
      %p530 = por %p528, %p529
      %p531 = scmp.ne.s32.totalorder %s520, %s523
      %p532 = scmp.eq.s32.totalorder %s34, 3
      %p533 = por %p531, %p532
      %p534 = scmp.ne.s32.totalorder %s523, %s524
      %p535 = scmp.eq.s32.totalorder %s34, 0
      %p536 = por %p534, %p535
      %p537 = scmp.ne.s32.totalorder %s523, %s524
      %p538 = scmp.eq.s32.totalorder %s35, 3
      %p539 = por %p537, %p538
      %p541 = scmp.ne.s32.totalorder %s524, %s540
      %p542 = scmp.eq.s32.totalorder %s35, 0
      %p543 = por %p541, %p542
      %s544 = ssub.s32 %s36, %s48
      %p545 = scmp.eq.s32.totalorder %s544, 0
      %s547 = sadd.s32 %s546, 1
      %s548 = scalar_select %p545, %s546, %s547
      %p551 = pneg %p545
      %p552 = scmp.eq.s32.totalorder %s29, 3
      %p553 = por %p551, %p552
      %p554 = scmp.ne.s32.totalorder %s546, %s549
      %p555 = scmp.eq.s32.totalorder %s29, 0
      %p556 = por %p554, %p555
      %p557 = scmp.ne.s32.totalorder %s546, %s549
      %p558 = scmp.eq.s32.totalorder %s34, 3
      %p559 = por %p557, %p558
      %p560 = scmp.ne.s32.totalorder %s549, %s550
      %p561 = scmp.eq.s32.totalorder %s34, 0
      %p562 = por %p560, %p561
      %p563 = scmp.ne.s32.totalorder %s549, %s550
      %p564 = scmp.eq.s32.totalorder %s35, 3
      %p565 = por %p563, %p564
      %p567 = scmp.ne.s32.totalorder %s550, %s566
      %p568 = scmp.eq.s32.totalorder %s35, 0
      %p569 = por %p567, %p568
      %p570 = scmp.le.s32.totalorder 1, %s29
      %p571 = scmp.lt.s32.totalorder %s29, 5
      %p572 = pnand %p570, %p571
      %p573 = pneg %p572
      // Predicated region
      $region9: #{tpu_custom_call.1} parent=5 // pred_check
        _
      $region10: #{tpu_custom_call.1} parent=5 // pred_check_branch
        %575 = sbr.rel (%p572) target = $region12
      $region11: #{tpu_custom_call.1} parent=5 // pred_region
        %s576 = ssub.s32 %s29, 1
        // Predicated region
        $region13: #{tpu_custom_call.1} parent=11 // pred_check
          %p577 = pneg %p192
        $region14: #{tpu_custom_call.1} parent=11 // pred_check_branch
          %579 = sbr.rel (%p577) target = $region16
        $region15: #{tpu_custom_call.1} parent=11 // pred_region
          _
        $region16: #{tpu_custom_call.1} parent=11 // pred_fallthru
          _
        // Predicated region
        $region17: #{tpu_custom_call.1} parent=11 // pred_check
          %p580 = pneg %p213
        $region18: #{tpu_custom_call.1} parent=11 // pred_check_branch
          %582 = sbr.rel (%p580) target = $region20
        $region19: #{tpu_custom_call.1} parent=11 // pred_region
          _
        $region20: #{tpu_custom_call.1} parent=11 // pred_fallthru
          _
        // Predicated region
        $region21: #{tpu_custom_call.1} parent=11 // pred_check
          %p583 = pneg %p234
        $region22: #{tpu_custom_call.1} parent=11 // pred_check_branch
          %585 = sbr.rel (%p583) target = $region24
        $region23: #{tpu_custom_call.1} parent=11 // pred_region
          _
        $region24: #{tpu_custom_call.1} parent=11 // pred_fallthru
          _
        // Predicated region
        $region25: #{tpu_custom_call.1} parent=11 // pred_check
          %p586 = pneg %p255
        $region26: #{tpu_custom_call.1} parent=11 // pred_check_branch
          %588 = sbr.rel (%p586) target = $region28
        $region27: #{tpu_custom_call.1} parent=11 // pred_region
          _
        $region28: #{tpu_custom_call.1} parent=11 // pred_fallthru
          _
        // Predicated region
        $region29: #{tpu_custom_call.1} parent=11 // pred_check
          %p589 = pneg %p276
        $region30: #{tpu_custom_call.1} parent=11 // pred_check_branch
          %591 = sbr.rel (%p589) target = $region32
        $region31: #{tpu_custom_call.1} parent=11 // pred_region
          _
        $region32: #{tpu_custom_call.1} parent=11 // pred_fallthru
          _
      $region12: #{tpu_custom_call.1} parent=5 // pred_fallthru
        _
      %p592 = scmp.lt.s32.totalorder %s29, 4
      // Predicated region
      $region33: #{tpu_custom_call.1} parent=5 // pred_check
        %p593 = pneg %p592
      $region34: #{tpu_custom_call.1} parent=5 // pred_check_branch
        %595 = sbr.rel (%p593) target = $region36
      $region35: #{tpu_custom_call.1} parent=5 // pred_region
        // Predicated region
        $region37: #{tpu_custom_call.1} parent=35 // pred_check
          %p596 = pneg %p61
        $region38: #{tpu_custom_call.1} parent=35 // pred_check_branch
          %598 = sbr.rel (%p596) target = $region40
        $region39: #{tpu_custom_call.1} parent=35 // pred_region
          %p599 = scmp.lt.s32.totalorder %s36, 1
          %s600 = scalar_select %p599, %s36, 1
          %s601 = smul.addr %s600, 2
          %s602 = smul.addr %s601, 8
          %s603 = scalar_lea.vmem %s0, %s602
        $region40: #{tpu_custom_call.1} parent=35 // pred_fallthru
          _
        // Predicated region
        $region41: #{tpu_custom_call.1} parent=35 // pred_check
          %p604 = pneg %p87
        $region42: #{tpu_custom_call.1} parent=35 // pred_check_branch
          %606 = sbr.rel (%p604) target = $region44
        $region43: #{tpu_custom_call.1} parent=35 // pred_region
          %p607 = scmp.lt.s32.totalorder %s36, 1
          %s608 = scalar_select %p607, %s36, 1
          %s609 = smul.addr %s608, 17
          %s610 = smul.addr %s609, 8
          %s611 = scalar_lea.vmem %s1, %s610
        $region44: #{tpu_custom_call.1} parent=35 // pred_fallthru
          _
        // Predicated region
        $region45: #{tpu_custom_call.1} parent=35 // pred_check
          %p612 = pneg %p113
        $region46: #{tpu_custom_call.1} parent=35 // pred_check_branch
          %614 = sbr.rel (%p612) target = $region48
        $region47: #{tpu_custom_call.1} parent=35 // pred_region
          %p615 = scmp.lt.s32.totalorder %s36, 1
          %s616 = scalar_select %p615, %s36, 1
          %s617 = smul.addr %s616, 17
          %s618 = smul.addr %s617, 8
          %s619 = scalar_lea.vmem %s2, %s618
        $region48: #{tpu_custom_call.1} parent=35 // pred_fallthru
          _
        // Predicated region
        $region49: #{tpu_custom_call.1} parent=35 // pred_check
          %p620 = pneg %p139
        $region50: #{tpu_custom_call.1} parent=35 // pred_check_branch
          %622 = sbr.rel (%p620) target = $region52
        $region51: #{tpu_custom_call.1} parent=35 // pred_region
          %p623 = scmp.lt.s32.totalorder %s36, 1
          %s624 = scalar_select %p623, %s36, 1
          %s625 = smul.addr %s624, 2
          %s626 = scalar_lea.vmem %s3, %s625
        $region52: #{tpu_custom_call.1} parent=35 // pred_fallthru
          _
        // Predicated region
        $region53: #{tpu_custom_call.1} parent=35 // pred_check
          %p627 = pneg %p165
        $region54: #{tpu_custom_call.1} parent=35 // pred_check_branch
          %629 = sbr.rel (%p627) target = $region56
        $region55: #{tpu_custom_call.1} parent=35 // pred_region
          %p630 = scmp.lt.s32.totalorder %s36, 1
          %s631 = scalar_select %p630, %s36, 1
          %s632 = smul.addr %s631, 2
          %s633 = smul.addr %s632, 8
          %s634 = scalar_lea.vmem %s4, %s633
        $region56: #{tpu_custom_call.1} parent=35 // pred_fallthru
          _
        // Predicated region
        $region57: #{tpu_custom_call.1} parent=35 // pred_check
          %p635 = pneg %p296
        $region58: #{tpu_custom_call.1} parent=35 // pred_check_branch
          %637 = sbr.rel (%p635) target = $region60
        $region59: #{tpu_custom_call.1} parent=35 // pred_region
          %p638 = scmp.lt.s32.totalorder %s37, 1
          %s639 = scalar_select %p638, %s37, 1
          %s640 = smul.addr %s639, 16
          %s641 = smul.addr %s640, 4
          %s642 = scalar_lea.vmem %s10, %s641
        $region60: #{tpu_custom_call.1} parent=35 // pred_fallthru
          _
        // Predicated region
        $region61: #{tpu_custom_call.1} parent=35 // pred_check
          %p643 = pneg %p322
        $region62: #{tpu_custom_call.1} parent=35 // pred_check_branch
          %645 = sbr.rel (%p643) target = $region64
        $region63: #{tpu_custom_call.1} parent=35 // pred_region
          %p646 = scmp.lt.s32.totalorder %s37, 1
          %s647 = scalar_select %p646, %s37, 1
          %s648 = scalar_lea.vmem %s11, %s647
        $region64: #{tpu_custom_call.1} parent=35 // pred_fallthru
          _
        // Predicated region
        $region65: #{tpu_custom_call.1} parent=35 // pred_check
          %p649 = pneg %p348
        $region66: #{tpu_custom_call.1} parent=35 // pred_check_branch
          %651 = sbr.rel (%p649) target = $region68
        $region67: #{tpu_custom_call.1} parent=35 // pred_region
          %p652 = scmp.lt.s32.totalorder %s37, 1
          %s653 = scalar_select %p652, %s37, 1
          %s654 = scalar_lea.vmem %s12, %s653
        $region68: #{tpu_custom_call.1} parent=35 // pred_fallthru
          _
        // Predicated region
        $region69: #{tpu_custom_call.1} parent=35 // pred_check
          %p655 = pneg %p374
        $region70: #{tpu_custom_call.1} parent=35 // pred_check_branch
          %657 = sbr.rel (%p655) target = $region72
        $region71: #{tpu_custom_call.1} parent=35 // pred_region
          %p658 = scmp.lt.s32.totalorder %s37, 1
          %s659 = scalar_select %p658, %s37, 1
          %s660 = scalar_lea.vmem %s13, %s659
        $region72: #{tpu_custom_call.1} parent=35 // pred_fallthru
          _
        // Predicated region
        $region73: #{tpu_custom_call.1} parent=35 // pred_check
          %p661 = pneg %p400
        $region74: #{tpu_custom_call.1} parent=35 // pred_check_branch
          %663 = sbr.rel (%p661) target = $region76
        $region75: #{tpu_custom_call.1} parent=35 // pred_region
          %p664 = scmp.lt.s32.totalorder %s37, 1
          %s665 = scalar_select %p664, %s37, 1
          %s666 = smul.addr %s665, 16
          %s667 = smul.addr %s666, 4
          %s668 = scalar_lea.vmem %s14, %s667
        $region76: #{tpu_custom_call.1} parent=35 // pred_fallthru
          _
        // Predicated region
        $region77: #{tpu_custom_call.1} parent=35 // pred_check
          %p669 = pneg %p426
        $region78: #{tpu_custom_call.1} parent=35 // pred_check_branch
          %671 = sbr.rel (%p669) target = $region80
        $region79: #{tpu_custom_call.1} parent=35 // pred_region
          %p672 = scmp.lt.s32.totalorder %s37, 1
          %s673 = scalar_select %p672, %s37, 1
          %s674 = scalar_lea.vmem %s15, %s673
        $region80: #{tpu_custom_call.1} parent=35 // pred_fallthru
          _
        // Predicated region
        $region81: #{tpu_custom_call.1} parent=35 // pred_check
          %p675 = pneg %p452
        $region82: #{tpu_custom_call.1} parent=35 // pred_check_branch
          %677 = sbr.rel (%p675) target = $region84
        $region83: #{tpu_custom_call.1} parent=35 // pred_region
          %p678 = scmp.lt.s32.totalorder %s37, 1
          %s679 = scalar_select %p678, %s37, 1
          %s680 = smul.addr %s679, 16
          %s681 = smul.addr %s680, 4
          %s682 = scalar_lea.vmem %s16, %s681
        $region84: #{tpu_custom_call.1} parent=35 // pred_fallthru
          _
        // Predicated region
        $region85: #{tpu_custom_call.1} parent=35 // pred_check
          %p683 = pneg %p478
        $region86: #{tpu_custom_call.1} parent=35 // pred_check_branch
          %685 = sbr.rel (%p683) target = $region88
        $region87: #{tpu_custom_call.1} parent=35 // pred_region
          %p686 = scmp.lt.s32.totalorder %s37, 1
          %s687 = scalar_select %p686, %s37, 1
          %s688 = scalar_lea.vmem %s17, %s687
        $region88: #{tpu_custom_call.1} parent=35 // pred_fallthru
          _
        // Predicated region
        $region89: #{tpu_custom_call.1} parent=35 // pred_check
          %p689 = pneg %p504
        $region90: #{tpu_custom_call.1} parent=35 // pred_check_branch
          %691 = sbr.rel (%p689) target = $region92
        $region91: #{tpu_custom_call.1} parent=35 // pred_region
          %p692 = scmp.lt.s32.totalorder %s37, 1
          %s693 = scalar_select %p692, %s37, 1
          %s694 = smul.addr %s693, 16
          %s695 = smul.addr %s694, 4
          %s696 = scalar_lea.vmem %s18, %s695
        $region92: #{tpu_custom_call.1} parent=35 // pred_fallthru
          _
        // Predicated region
        $region93: #{tpu_custom_call.1} parent=35 // pred_check
          %p697 = pneg %p530
        $region94: #{tpu_custom_call.1} parent=35 // pred_check_branch
          %699 = sbr.rel (%p697) target = $region96
        $region95: #{tpu_custom_call.1} parent=35 // pred_region
          %p700 = scmp.lt.s32.totalorder %s37, 1
          %s701 = scalar_select %p700, %s37, 1
          %s702 = scalar_lea.vmem %s19, %s701
        $region96: #{tpu_custom_call.1} parent=35 // pred_fallthru
          _
      $region36: #{tpu_custom_call.1} parent=5 // pred_fallthru
        _
      %p703 = scmp.le.s32.totalorder 1, %s29
      %p704 = scmp.lt.s32.totalorder %s29, 5
      %p705 = pnand %p703, %p704
      %p706 = pneg %p705
      // Predicated region
      $region97: #{tpu_custom_call.1} parent=5 // pred_check
        _
      $region98: #{tpu_custom_call.1} parent=5 // pred_check_branch
        %708 = sbr.rel (%p705) target = $region100
      $region99: #{tpu_custom_call.1} parent=5 // pred_region
        %s709 = ssub.s32 %s29, 1
        %p710 = scmp.lt.s32.totalorder %s38, 1
        %s711 = scalar_select %p710, %s38, 1
        %s712 = smul.addr %s711, 2
        %s713 = smul.addr %s712, 8
        %s714 = scalar_lea.vmem %s0, %s713
        %p715 = pneg %p67
        %p716 = pneg %p64
        %p717 = scmp.lt.s32.totalorder %s38, 1
        %s718 = scalar_select %p717, %s38, 1
        %s719 = smul.addr %s718, 17
        %s720 = smul.addr %s719, 8
        %s721 = scalar_lea.vmem %s1, %s720
        %p722 = pneg %p93
        %p723 = pneg %p90
        %p724 = scmp.lt.s32.totalorder %s38, 1
        %s725 = scalar_select %p724, %s38, 1
        %s726 = smul.addr %s725, 17
        %s727 = smul.addr %s726, 8
        %s728 = scalar_lea.vmem %s2, %s727
        %p729 = pneg %p119
        %p730 = pneg %p116
        %p731 = scmp.lt.s32.totalorder %s38, 1
        %s732 = scalar_select %p731, %s38, 1
        %s733 = smul.addr %s732, 2
        %s734 = scalar_lea.vmem %s3, %s733
        %p735 = pneg %p145
        %p736 = pneg %p142
        %p737 = scmp.lt.s32.totalorder %s38, 1
        %s738 = scalar_select %p737, %s38, 1
        %s739 = smul.addr %s738, 2
        %s740 = smul.addr %s739, 8
        %s741 = scalar_lea.vmem %s4, %s740
        %p742 = pneg %p171
        %p743 = pneg %p168
        %p744 = pneg %p192
        %p745 = pneg %p189
        %p746 = pneg %p213
        %p747 = pneg %p210
        %p748 = pneg %p234
        %p749 = pneg %p231
        %p750 = pneg %p255
        %p751 = pneg %p252
        %p752 = pneg %p276
        %p753 = pneg %p273
        %p754 = scmp.lt.s32.totalorder %s39, 1
        %s755 = scalar_select %p754, %s39, 1
        %s756 = smul.addr %s755, 16
        %s757 = smul.addr %s756, 4
        %s758 = scalar_lea.vmem %s10, %s757
        %p759 = pneg %p302
        %p760 = pneg %p299
        %p761 = scmp.lt.s32.totalorder %s39, 1
        %s762 = scalar_select %p761, %s39, 1
        %s763 = scalar_lea.vmem %s11, %s762
        %p764 = pneg %p328
        %p765 = pneg %p325
        %p766 = scmp.lt.s32.totalorder %s39, 1
        %s767 = scalar_select %p766, %s39, 1
        %s768 = scalar_lea.vmem %s12, %s767
        %p769 = pneg %p354
        %p770 = pneg %p351
        %p771 = scmp.lt.s32.totalorder %s39, 1
        %s772 = scalar_select %p771, %s39, 1
        %s773 = scalar_lea.vmem %s13, %s772
        %p774 = pneg %p380
        %p775 = pneg %p377
        %p776 = scmp.lt.s32.totalorder %s39, 1
        %s777 = scalar_select %p776, %s39, 1
        %s778 = smul.addr %s777, 16
        %s779 = smul.addr %s778, 4
        %s780 = scalar_lea.vmem %s14, %s779
        %p781 = pneg %p406
        %p782 = pneg %p403
        %p783 = scmp.lt.s32.totalorder %s39, 1
        %s784 = scalar_select %p783, %s39, 1
        %s785 = scalar_lea.vmem %s15, %s784
        %p786 = pneg %p432
        %p787 = pneg %p429
        %p788 = scmp.lt.s32.totalorder %s39, 1
        %s789 = scalar_select %p788, %s39, 1
        %s790 = smul.addr %s789, 16
        %s791 = smul.addr %s790, 4
        %s792 = scalar_lea.vmem %s16, %s791
        %p793 = pneg %p458
        %p794 = pneg %p455
        %p795 = scmp.lt.s32.totalorder %s39, 1
        %s796 = scalar_select %p795, %s39, 1
        %s797 = scalar_lea.vmem %s17, %s796
        %p798 = pneg %p484
        %p799 = pneg %p481
        %p800 = scmp.lt.s32.totalorder %s39, 1
        %s801 = scalar_select %p800, %s39, 1
        %s802 = smul.addr %s801, 16
        %s803 = smul.addr %s802, 4
        %s804 = scalar_lea.vmem %s18, %s803
        %p805 = pneg %p510
        %p806 = pneg %p507
        %p807 = scmp.lt.s32.totalorder %s39, 1
        %s808 = scalar_select %p807, %s39, 1
        %s809 = scalar_lea.vmem %s19, %s808
        %p810 = pneg %p536
        %p811 = pneg %p533
        %p812 = pneg %p562
        %p813 = pneg %p559
        %s814 = sand.u32 %s549, 1
        %s815 = scalar_lea.sflag [#allocation5], %s814
        %s816 = sand.u32 %s549, 1
        %s817 = smul.addr %s816, 8
        %s818 = scalar_lea.vmem [#allocation4], %s817
        %p819 = scmp.lt.s32.totalorder %s38, 1
        %s820 = scalar_select %p819, %s38, 1
        %s821 = smul.addr %s820, 2
        %s822 = smul.addr %s821, 8
        %s823 = scalar_lea.vmem %s0, %s822
        %p824 = scmp.lt.s32.totalorder %s38, 1
        %s825 = scalar_select %p824, %s38, 1
        %s826 = smul.addr %s825, 17
        %s827 = smul.addr %s826, 8
        %s828 = scalar_lea.vmem %s1, %s827
        %p829 = scmp.lt.s32.totalorder %s38, 1
        %s830 = scalar_select %p829, %s38, 1
        %s831 = smul.addr %s830, 17
        %s832 = smul.addr %s831, 8
        %s833 = scalar_lea.vmem %s2, %s832
        %p834 = scmp.lt.s32.totalorder %s38, 1
        %s835 = scalar_select %p834, %s38, 1
        %s836 = smul.addr %s835, 2
        %s837 = scalar_lea.vmem %s3, %s836
        %p838 = scmp.lt.s32.totalorder %s38, 1
        %s839 = scalar_select %p838, %s38, 1
        %s840 = smul.addr %s839, 2
        %s841 = smul.addr %s840, 8
        %s842 = scalar_lea.vmem %s4, %s841
        %p843 = scmp.lt.s32.totalorder %s39, 1
        %s844 = scalar_select %p843, %s39, 1
        %s845 = smul.addr %s844, 16
        %s846 = smul.addr %s845, 4
        %s847 = scalar_lea.vmem %s10, %s846
        %p848 = scmp.lt.s32.totalorder %s39, 1
        %s849 = scalar_select %p848, %s39, 1
        %s850 = scalar_lea.vmem %s11, %s849
        %p851 = scmp.lt.s32.totalorder %s39, 1
        %s852 = scalar_select %p851, %s39, 1
        %s853 = scalar_lea.vmem %s12, %s852
        %p854 = scmp.lt.s32.totalorder %s39, 1
        %s855 = scalar_select %p854, %s39, 1
        %s856 = scalar_lea.vmem %s13, %s855
        %p857 = scmp.lt.s32.totalorder %s39, 1
        %s858 = scalar_select %p857, %s39, 1
        %s859 = smul.addr %s858, 16
        %s860 = smul.addr %s859, 4
        %s861 = scalar_lea.vmem %s14, %s860
        %p862 = scmp.lt.s32.totalorder %s39, 1
        %s863 = scalar_select %p862, %s39, 1
        %s864 = scalar_lea.vmem %s15, %s863
        %p865 = scmp.lt.s32.totalorder %s39, 1
        %s866 = scalar_select %p865, %s39, 1
        %s867 = smul.addr %s866, 16
        %s868 = smul.addr %s867, 4
        %s869 = scalar_lea.vmem %s16, %s868
        %p870 = scmp.lt.s32.totalorder %s39, 1
        %s871 = scalar_select %p870, %s39, 1
        %s872 = scalar_lea.vmem %s17, %s871
        %p873 = scmp.lt.s32.totalorder %s39, 1
        %s874 = scalar_select %p873, %s39, 1
        %s875 = smul.addr %s874, 16
        %s876 = smul.addr %s875, 4
        %s877 = scalar_lea.vmem %s18, %s876
        %p878 = scmp.lt.s32.totalorder %s39, 1
        %s879 = scalar_select %p878, %s39, 1
        %s880 = scalar_lea.vmem %s19, %s879
        %p882 = scmp.eq.s32.totalorder %s39, 0
        // Predicated region
        $region101: #{tpu_custom_call.1} parent=99 // pred_check
          %p883 = pneg %p882
        $region102: #{tpu_custom_call.1} parent=99 // pred_check_branch
          %885 = sbr.rel (%p883) target = $region104
        $region103: #{tpu_custom_call.1} parent=99 // pred_region
          %v886 = vld [vmem:[%s828] sm:$0xff]
          %v887 = vld [vmem:[%s828 + $0x8] sm:$0xff]
          %v888 = vld [vmem:[%s828 + $0x10] sm:$0xff]
          %v889 = vld [vmem:[%s828 + $0x18] sm:$0xff]
          %v890 = vld [vmem:[%s828 + $0x20] sm:$0xff]
          %v891 = vld [vmem:[%s828 + $0x28] sm:$0xff]
          %v892 = vld [vmem:[%s828 + $0x30] sm:$0xff]
          %v893 = vld [vmem:[%s828 + $0x38] sm:$0xff]
          %v894 = vld [vmem:[%s828 + $0x40] sm:$0xff]
          %v895 = vld [vmem:[%s828 + $0x48] sm:$0xff]
          %v896 = vld [vmem:[%s828 + $0x50] sm:$0xff]
          %v897 = vld [vmem:[%s828 + $0x58] sm:$0xff]
          %v898 = vld [vmem:[%s828 + $0x60] sm:$0xff]
          %v899 = vld [vmem:[%s828 + $0x68] sm:$0xff]
          %v900 = vld [vmem:[%s828 + $0x70] sm:$0xff]
          %v901 = vld [vmem:[%s828 + $0x78] sm:$0xff]
          %v902 = vld [vmem:[%s828 + $0x80] sm:$0xff]
          %v903 = vld [vmem:[%s7] sm:$0x1]
          %v904 = vld [vmem:[%s6] sm:$0x1]
          %906 = vset.pattern.permute.xlu0 0
          %907 = vperm.xlu0 %906, %v886
          %v908 = vpop.permute.xlu0 %907
          %911 = vset.pattern.permute.xlu0 0
          %912 = vperm.xlu0 %911, %v887
          %v913 = vpop.permute.xlu0 %912
          %916 = vset.pattern.permute.xlu0 0
          %917 = vperm.xlu0 %916, %v888
          %v918 = vpop.permute.xlu0 %917
          %921 = vset.pattern.permute.xlu0 0
          %922 = vperm.xlu0 %921, %v889
          %v923 = vpop.permute.xlu0 %922
          %926 = vset.pattern.permute.xlu0 0
          %927 = vperm.xlu0 %926, %v890
          %v928 = vpop.permute.xlu0 %927
          %931 = vset.pattern.permute.xlu0 0
          %932 = vperm.xlu0 %931, %v891
          %v933 = vpop.permute.xlu0 %932
          %936 = vset.pattern.permute.xlu0 0
          %937 = vperm.xlu0 %936, %v892
          %v938 = vpop.permute.xlu0 %937
          %941 = vset.pattern.permute.xlu0 0
          %942 = vperm.xlu0 %941, %v893
          %v943 = vpop.permute.xlu0 %942
          %946 = vset.pattern.permute.xlu0 0
          %947 = vperm.xlu0 %946, %v894
          %v948 = vpop.permute.xlu0 %947
          %951 = vset.pattern.permute.xlu0 0
          %952 = vperm.xlu0 %951, %v895
          %v953 = vpop.permute.xlu0 %952
          %956 = vset.pattern.permute.xlu0 0
          %957 = vperm.xlu0 %956, %v896
          %v958 = vpop.permute.xlu0 %957
          %961 = vset.pattern.permute.xlu0 0
          %962 = vperm.xlu0 %961, %v897
          %v963 = vpop.permute.xlu0 %962
          %966 = vset.pattern.permute.xlu0 0
          %967 = vperm.xlu0 %966, %v898
          %v968 = vpop.permute.xlu0 %967
          %971 = vset.pattern.permute.xlu0 0
          %972 = vperm.xlu0 %971, %v899
          %v973 = vpop.permute.xlu0 %972
          %976 = vset.pattern.permute.xlu0 0
          %977 = vperm.xlu0 %976, %v900
          %v978 = vpop.permute.xlu0 %977
          %981 = vset.pattern.permute.xlu0 0
          %982 = vperm.xlu0 %981, %v901
          %v983 = vpop.permute.xlu0 %982
          %986 = vset.pattern.permute.xlu0 0
          %987 = vperm.xlu0 %986, %v902
          %v988 = vpop.permute.xlu0 %987
          %v990 = vlaneseq
          %v991 = vshrl.u32 %v990, 7
          %v992 = vsub.s32 0, %v991
          %v993 = vrot.slane %v904, %v992
          %v994 = vmul.f32 %v908, %v993
          %v995 = vmul.f32 %v913, %v993
          %v996 = vmul.f32 %v918, %v993
          %v997 = vmul.f32 %v923, %v993
          %v998 = vmul.f32 %v928, %v993
          %v999 = vmul.f32 %v933, %v993
          %v1000 = vmul.f32 %v938, %v993
          %v1001 = vmul.f32 %v943, %v993
          %v1002 = vmul.f32 %v948, %v993
          %v1003 = vmul.f32 %v953, %v993
          %v1004 = vmul.f32 %v958, %v993
          %v1005 = vmul.f32 %v963, %v993
          %v1006 = vmul.f32 %v968, %v993
          %v1007 = vmul.f32 %v973, %v993
          %v1008 = vmul.f32 %v978, %v993
          %v1009 = vmul.f32 %v983, %v993
          %v1010 = vmul.f32 %v988, %v993
          %v1012 = vlaneseq
          %v1013 = vshrl.u32 %v1012, 7
          %v1014 = vsub.s32 0, %v1013
          %v1015 = vrot.slane %v903, %v1014
          %v1017 = vadd.f32 %v1015, %v994
          %v1018 = vadd.f32 %v1015, %v995
          %v1019 = vadd.f32 %v1015, %v996
          %v1020 = vadd.f32 %v1015, %v997
          %v1021 = vadd.f32 %v1015, %v998
          %v1022 = vadd.f32 %v1015, %v999
          %v1023 = vadd.f32 %v1015, %v1000
          %v1024 = vadd.f32 %v1015, %v1001
          %v1025 = vadd.f32 %v1015, %v1002
          %v1026 = vadd.f32 %v1015, %v1003
          %v1027 = vadd.f32 %v1015, %v1004
          %v1028 = vadd.f32 %v1015, %v1005
          %v1029 = vadd.f32 %v1015, %v1006
          %v1030 = vadd.f32 %v1015, %v1007
          %v1031 = vadd.f32 %v1015, %v1008
          %v1032 = vadd.f32 %v1015, %v1009
          %v1033 = vadd.f32 %v1015, %v1010
          %v1034 = vmul.f32 %v886, %v886
          %v1035 = vmul.f32 %v887, %v887
          %v1036 = vmul.f32 %v888, %v888
          %v1037 = vmul.f32 %v889, %v889
          %v1038 = vmul.f32 %v890, %v890
          %v1039 = vmul.f32 %v891, %v891
          %v1040 = vmul.f32 %v892, %v892
          %v1041 = vmul.f32 %v893, %v893
          %v1042 = vmul.f32 %v894, %v894
          %v1043 = vmul.f32 %v895, %v895
          %v1044 = vmul.f32 %v896, %v896
          %v1045 = vmul.f32 %v897, %v897
          %v1046 = vmul.f32 %v898, %v898
          %v1047 = vmul.f32 %v899, %v899
          %v1048 = vmul.f32 %v900, %v900
          %v1049 = vmul.f32 %v901, %v901
          %v1050 = vmul.f32 %v902, %v902
          %v1051 = vld [vmem:[%s6 + $0x1] sm:$0x1]
          %1053 = vset.pattern.permute.xlu0 0
          %1054 = vperm.xlu0 %1053, %v1034
          %v1055 = vpop.permute.xlu0 %1054
          %1058 = vset.pattern.permute.xlu0 0
          %1059 = vperm.xlu0 %1058, %v1035
          %v1060 = vpop.permute.xlu0 %1059
          %1063 = vset.pattern.permute.xlu0 0
          %1064 = vperm.xlu0 %1063, %v1036
          %v1065 = vpop.permute.xlu0 %1064
          %1068 = vset.pattern.permute.xlu0 0
          %1069 = vperm.xlu0 %1068, %v1037
          %v1070 = vpop.permute.xlu0 %1069
          %1073 = vset.pattern.permute.xlu0 0
          %1074 = vperm.xlu0 %1073, %v1038
          %v1075 = vpop.permute.xlu0 %1074
          %1078 = vset.pattern.permute.xlu0 0
          %1079 = vperm.xlu0 %1078, %v1039
          %v1080 = vpop.permute.xlu0 %1079
          %1083 = vset.pattern.permute.xlu0 0
          %1084 = vperm.xlu0 %1083, %v1040
          %v1085 = vpop.permute.xlu0 %1084
          %1088 = vset.pattern.permute.xlu0 0
          %1089 = vperm.xlu0 %1088, %v1041
          %v1090 = vpop.permute.xlu0 %1089
          %1093 = vset.pattern.permute.xlu0 0
          %1094 = vperm.xlu0 %1093, %v1042
          %v1095 = vpop.permute.xlu0 %1094
          %1098 = vset.pattern.permute.xlu0 0
          %1099 = vperm.xlu0 %1098, %v1043
          %v1100 = vpop.permute.xlu0 %1099
          %1103 = vset.pattern.permute.xlu0 0
          %1104 = vperm.xlu0 %1103, %v1044
          %v1105 = vpop.permute.xlu0 %1104
          %1108 = vset.pattern.permute.xlu0 0
          %1109 = vperm.xlu0 %1108, %v1045
          %v1110 = vpop.permute.xlu0 %1109
          %1113 = vset.pattern.permute.xlu0 0
          %1114 = vperm.xlu0 %1113, %v1046
          %v1115 = vpop.permute.xlu0 %1114
          %1118 = vset.pattern.permute.xlu0 0
          %1119 = vperm.xlu0 %1118, %v1047
          %v1120 = vpop.permute.xlu0 %1119
          %1123 = vset.pattern.permute.xlu0 0
          %1124 = vperm.xlu0 %1123, %v1048
          %v1125 = vpop.permute.xlu0 %1124
          %1128 = vset.pattern.permute.xlu0 0
          %1129 = vperm.xlu0 %1128, %v1049
          %v1130 = vpop.permute.xlu0 %1129
          %1133 = vset.pattern.permute.xlu0 0
          %1134 = vperm.xlu0 %1133, %v1050
          %v1135 = vpop.permute.xlu0 %1134
          %v1137 = vlaneseq
          %v1138 = vshrl.u32 %v1137, 7
          %v1139 = vsub.s32 0, %v1138
          %v1140 = vrot.slane %v1051, %v1139
          %v1141 = vmul.f32 %v1055, %v1140
          %v1142 = vmul.f32 %v1060, %v1140
          %v1143 = vmul.f32 %v1065, %v1140
          %v1144 = vmul.f32 %v1070, %v1140
          %v1145 = vmul.f32 %v1075, %v1140
          %v1146 = vmul.f32 %v1080, %v1140
          %v1147 = vmul.f32 %v1085, %v1140
          %v1148 = vmul.f32 %v1090, %v1140
          %v1149 = vmul.f32 %v1095, %v1140
          %v1150 = vmul.f32 %v1100, %v1140
          %v1151 = vmul.f32 %v1105, %v1140
          %v1152 = vmul.f32 %v1110, %v1140
          %v1153 = vmul.f32 %v1115, %v1140
          %v1154 = vmul.f32 %v1120, %v1140
          %v1155 = vmul.f32 %v1125, %v1140
          %v1156 = vmul.f32 %v1130, %v1140
          %v1157 = vmul.f32 %v1135, %v1140
          %v1158 = vadd.f32 %v1017, %v1141
          %v1159 = vadd.f32 %v1018, %v1142
          %v1160 = vadd.f32 %v1019, %v1143
          %v1161 = vadd.f32 %v1020, %v1144
          %v1162 = vadd.f32 %v1021, %v1145
          %v1163 = vadd.f32 %v1022, %v1146
          %v1164 = vadd.f32 %v1023, %v1147
          %v1165 = vadd.f32 %v1024, %v1148
          %v1166 = vadd.f32 %v1025, %v1149
          %v1167 = vadd.f32 %v1026, %v1150
          %v1168 = vadd.f32 %v1027, %v1151
          %v1169 = vadd.f32 %v1028, %v1152
          %v1170 = vadd.f32 %v1029, %v1153
          %v1171 = vadd.f32 %v1030, %v1154
          %v1172 = vadd.f32 %v1031, %v1155
          %v1173 = vadd.f32 %v1032, %v1156
          %v1174 = vadd.f32 %v1033, %v1157
          %v1175 = vmul.f32 %v1034, %v886
          %v1176 = vmul.f32 %v1035, %v887
          %v1177 = vmul.f32 %v1036, %v888
          %v1178 = vmul.f32 %v1037, %v889
          %v1179 = vmul.f32 %v1038, %v890
          %v1180 = vmul.f32 %v1039, %v891
          %v1181 = vmul.f32 %v1040, %v892
          %v1182 = vmul.f32 %v1041, %v893
          %v1183 = vmul.f32 %v1042, %v894
          %v1184 = vmul.f32 %v1043, %v895
          %v1185 = vmul.f32 %v1044, %v896
          %v1186 = vmul.f32 %v1045, %v897
          %v1187 = vmul.f32 %v1046, %v898
          %v1188 = vmul.f32 %v1047, %v899
          %v1189 = vmul.f32 %v1048, %v900
          %v1190 = vmul.f32 %v1049, %v901
          %v1191 = vmul.f32 %v1050, %v902
          %v1192 = vld [vmem:[%s6 + $0x2] sm:$0x1]
          %1194 = vset.pattern.permute.xlu0 0
          %1195 = vperm.xlu0 %1194, %v1175
          %v1196 = vpop.permute.xlu0 %1195
          %1199 = vset.pattern.permute.xlu0 0
          %1200 = vperm.xlu0 %1199, %v1176
          %v1201 = vpop.permute.xlu0 %1200
          %1204 = vset.pattern.permute.xlu0 0
          %1205 = vperm.xlu0 %1204, %v1177
          %v1206 = vpop.permute.xlu0 %1205
          %1209 = vset.pattern.permute.xlu0 0
          %1210 = vperm.xlu0 %1209, %v1178
          %v1211 = vpop.permute.xlu0 %1210
          %1214 = vset.pattern.permute.xlu0 0
          %1215 = vperm.xlu0 %1214, %v1179
          %v1216 = vpop.permute.xlu0 %1215
          %1219 = vset.pattern.permute.xlu0 0
          %1220 = vperm.xlu0 %1219, %v1180
          %v1221 = vpop.permute.xlu0 %1220
          %1224 = vset.pattern.permute.xlu0 0
          %1225 = vperm.xlu0 %1224, %v1181
          %v1226 = vpop.permute.xlu0 %1225
          %1229 = vset.pattern.permute.xlu0 0
          %1230 = vperm.xlu0 %1229, %v1182
          %v1231 = vpop.permute.xlu0 %1230
          %1234 = vset.pattern.permute.xlu0 0
          %1235 = vperm.xlu0 %1234, %v1183
          %v1236 = vpop.permute.xlu0 %1235
          %1239 = vset.pattern.permute.xlu0 0
          %1240 = vperm.xlu0 %1239, %v1184
          %v1241 = vpop.permute.xlu0 %1240
          %1244 = vset.pattern.permute.xlu0 0
          %1245 = vperm.xlu0 %1244, %v1185
          %v1246 = vpop.permute.xlu0 %1245
          %1249 = vset.pattern.permute.xlu0 0
          %1250 = vperm.xlu0 %1249, %v1186
          %v1251 = vpop.permute.xlu0 %1250
          %1254 = vset.pattern.permute.xlu0 0
          %1255 = vperm.xlu0 %1254, %v1187
          %v1256 = vpop.permute.xlu0 %1255
          %1259 = vset.pattern.permute.xlu0 0
          %1260 = vperm.xlu0 %1259, %v1188
          %v1261 = vpop.permute.xlu0 %1260
          %1264 = vset.pattern.permute.xlu0 0
          %1265 = vperm.xlu0 %1264, %v1189
          %v1266 = vpop.permute.xlu0 %1265
          %1269 = vset.pattern.permute.xlu0 0
          %1270 = vperm.xlu0 %1269, %v1190
          %v1271 = vpop.permute.xlu0 %1270
          %1274 = vset.pattern.permute.xlu0 0
          %1275 = vperm.xlu0 %1274, %v1191
          %v1276 = vpop.permute.xlu0 %1275
          %v1278 = vlaneseq
          %v1279 = vshrl.u32 %v1278, 7
          %v1280 = vsub.s32 0, %v1279
          %v1281 = vrot.slane %v1192, %v1280
          %v1282 = vmul.f32 %v1196, %v1281
          %v1283 = vmul.f32 %v1201, %v1281
          %v1284 = vmul.f32 %v1206, %v1281
          %v1285 = vmul.f32 %v1211, %v1281
          %v1286 = vmul.f32 %v1216, %v1281
          %v1287 = vmul.f32 %v1221, %v1281
          %v1288 = vmul.f32 %v1226, %v1281
          %v1289 = vmul.f32 %v1231, %v1281
          %v1290 = vmul.f32 %v1236, %v1281
          %v1291 = vmul.f32 %v1241, %v1281
          %v1292 = vmul.f32 %v1246, %v1281
          %v1293 = vmul.f32 %v1251, %v1281
          %v1294 = vmul.f32 %v1256, %v1281
          %v1295 = vmul.f32 %v1261, %v1281
          %v1296 = vmul.f32 %v1266, %v1281
          %v1297 = vmul.f32 %v1271, %v1281
          %v1298 = vmul.f32 %v1276, %v1281
          %v1299 = vadd.f32 %v1158, %v1282
          %v1300 = vadd.f32 %v1159, %v1283
          %v1301 = vadd.f32 %v1160, %v1284
          %v1302 = vadd.f32 %v1161, %v1285
          %v1303 = vadd.f32 %v1162, %v1286
          %v1304 = vadd.f32 %v1163, %v1287
          %v1305 = vadd.f32 %v1164, %v1288
          %v1306 = vadd.f32 %v1165, %v1289
          %v1307 = vadd.f32 %v1166, %v1290
          %v1308 = vadd.f32 %v1167, %v1291
          %v1309 = vadd.f32 %v1168, %v1292
          %v1310 = vadd.f32 %v1169, %v1293
          %v1311 = vadd.f32 %v1170, %v1294
          %v1312 = vadd.f32 %v1171, %v1295
          %v1313 = vadd.f32 %v1172, %v1296
          %v1314 = vadd.f32 %v1173, %v1297
          %v1315 = vadd.f32 %v1174, %v1298
          %v1316 = vmul.f32 %v1175, %v886
          %v1317 = vmul.f32 %v1176, %v887
          %v1318 = vmul.f32 %v1177, %v888
          %v1319 = vmul.f32 %v1178, %v889
          %v1320 = vmul.f32 %v1179, %v890
          %v1321 = vmul.f32 %v1180, %v891
          %v1322 = vmul.f32 %v1181, %v892
          %v1323 = vmul.f32 %v1182, %v893
          %v1324 = vmul.f32 %v1183, %v894
          %v1325 = vmul.f32 %v1184, %v895
          %v1326 = vmul.f32 %v1185, %v896
          %v1327 = vmul.f32 %v1186, %v897
          %v1328 = vmul.f32 %v1187, %v898
          %v1329 = vmul.f32 %v1188, %v899
          %v1330 = vmul.f32 %v1189, %v900
          %v1331 = vmul.f32 %v1190, %v901
          %v1332 = vmul.f32 %v1191, %v902
          %v1333 = vld [vmem:[%s6 + $0x3] sm:$0x1]
          %1335 = vset.pattern.permute.xlu0 0
          %1336 = vperm.xlu0 %1335, %v1316
          %v1337 = vpop.permute.xlu0 %1336
          %1340 = vset.pattern.permute.xlu0 0
          %1341 = vperm.xlu0 %1340, %v1317
          %v1342 = vpop.permute.xlu0 %1341
          %1345 = vset.pattern.permute.xlu0 0
          %1346 = vperm.xlu0 %1345, %v1318
          %v1347 = vpop.permute.xlu0 %1346
          %1350 = vset.pattern.permute.xlu0 0
          %1351 = vperm.xlu0 %1350, %v1319
          %v1352 = vpop.permute.xlu0 %1351
          %1355 = vset.pattern.permute.xlu0 0
          %1356 = vperm.xlu0 %1355, %v1320
          %v1357 = vpop.permute.xlu0 %1356
          %1360 = vset.pattern.permute.xlu0 0
          %1361 = vperm.xlu0 %1360, %v1321
          %v1362 = vpop.permute.xlu0 %1361
          %1365 = vset.pattern.permute.xlu0 0
          %1366 = vperm.xlu0 %1365, %v1322
          %v1367 = vpop.permute.xlu0 %1366
          %1370 = vset.pattern.permute.xlu0 0
          %1371 = vperm.xlu0 %1370, %v1323
          %v1372 = vpop.permute.xlu0 %1371
          %1375 = vset.pattern.permute.xlu0 0
          %1376 = vperm.xlu0 %1375, %v1324
          %v1377 = vpop.permute.xlu0 %1376
          %1380 = vset.pattern.permute.xlu0 0
          %1381 = vperm.xlu0 %1380, %v1325
          %v1382 = vpop.permute.xlu0 %1381
          %1385 = vset.pattern.permute.xlu0 0
          %1386 = vperm.xlu0 %1385, %v1326
          %v1387 = vpop.permute.xlu0 %1386
          %1390 = vset.pattern.permute.xlu0 0
          %1391 = vperm.xlu0 %1390, %v1327
          %v1392 = vpop.permute.xlu0 %1391
          %1395 = vset.pattern.permute.xlu0 0
          %1396 = vperm.xlu0 %1395, %v1328
          %v1397 = vpop.permute.xlu0 %1396
          %1400 = vset.pattern.permute.xlu0 0
          %1401 = vperm.xlu0 %1400, %v1329
          %v1402 = vpop.permute.xlu0 %1401
          %1405 = vset.pattern.permute.xlu0 0
          %1406 = vperm.xlu0 %1405, %v1330
          %v1407 = vpop.permute.xlu0 %1406
          %1410 = vset.pattern.permute.xlu0 0
          %1411 = vperm.xlu0 %1410, %v1331
          %v1412 = vpop.permute.xlu0 %1411
          %1415 = vset.pattern.permute.xlu0 0
          %1416 = vperm.xlu0 %1415, %v1332
          %v1417 = vpop.permute.xlu0 %1416
          %v1419 = vlaneseq
          %v1420 = vshrl.u32 %v1419, 7
          %v1421 = vsub.s32 0, %v1420
          %v1422 = vrot.slane %v1333, %v1421
          %v1423 = vmul.f32 %v1337, %v1422
          %v1424 = vmul.f32 %v1342, %v1422
          %v1425 = vmul.f32 %v1347, %v1422
          %v1426 = vmul.f32 %v1352, %v1422
          %v1427 = vmul.f32 %v1357, %v1422
          %v1428 = vmul.f32 %v1362, %v1422
          %v1429 = vmul.f32 %v1367, %v1422
          %v1430 = vmul.f32 %v1372, %v1422
          %v1431 = vmul.f32 %v1377, %v1422
          %v1432 = vmul.f32 %v1382, %v1422
          %v1433 = vmul.f32 %v1387, %v1422
          %v1434 = vmul.f32 %v1392, %v1422
          %v1435 = vmul.f32 %v1397, %v1422
          %v1436 = vmul.f32 %v1402, %v1422
          %v1437 = vmul.f32 %v1407, %v1422
          %v1438 = vmul.f32 %v1412, %v1422
          %v1439 = vmul.f32 %v1417, %v1422
          %v1440 = vadd.f32 %v1299, %v1423
          %v1441 = vadd.f32 %v1300, %v1424
          %v1442 = vadd.f32 %v1301, %v1425
          %v1443 = vadd.f32 %v1302, %v1426
          %v1444 = vadd.f32 %v1303, %v1427
          %v1445 = vadd.f32 %v1304, %v1428
          %v1446 = vadd.f32 %v1305, %v1429
          %v1447 = vadd.f32 %v1306, %v1430
          %v1448 = vadd.f32 %v1307, %v1431
          %v1449 = vadd.f32 %v1308, %v1432
          %v1450 = vadd.f32 %v1309, %v1433
          %v1451 = vadd.f32 %v1310, %v1434
          %v1452 = vadd.f32 %v1311, %v1435
          %v1453 = vadd.f32 %v1312, %v1436
          %v1454 = vadd.f32 %v1313, %v1437
          %v1455 = vadd.f32 %v1314, %v1438
          %v1456 = vadd.f32 %v1315, %v1439
          %v1457 = vmul.f32 %v1440, 0.5
          %v1458 = vmul.f32 %v1441, 0.5
          %v1459 = vmul.f32 %v1442, 0.5
          %v1460 = vmul.f32 %v1443, 0.5
          %v1461 = vmul.f32 %v1444, 0.5
          %v1462 = vmul.f32 %v1445, 0.5
          %v1463 = vmul.f32 %v1446, 0.5
          %v1464 = vmul.f32 %v1447, 0.5
          %v1465 = vmul.f32 %v1448, 0.5
          %v1466 = vmul.f32 %v1449, 0.5
          %v1467 = vmul.f32 %v1450, 0.5
          %v1468 = vmul.f32 %v1451, 0.5
          %v1469 = vmul.f32 %v1452, 0.5
          %v1470 = vmul.f32 %v1453, 0.5
          %v1471 = vmul.f32 %v1454, 0.5
          %v1472 = vmul.f32 %v1455, 0.5
          %v1473 = vmul.f32 %v1456, 0.5
          %v1474 = vmul.f32 %v1440, 0.044715
          %v1475 = vmul.f32 %v1441, 0.044715
          %v1476 = vmul.f32 %v1442, 0.044715
          %v1477 = vmul.f32 %v1443, 0.044715
          %v1478 = vmul.f32 %v1444, 0.044715
          %v1479 = vmul.f32 %v1445, 0.044715
          %v1480 = vmul.f32 %v1446, 0.044715
          %v1481 = vmul.f32 %v1447, 0.044715
          %v1482 = vmul.f32 %v1448, 0.044715
          %v1483 = vmul.f32 %v1449, 0.044715
          %v1484 = vmul.f32 %v1450, 0.044715
          %v1485 = vmul.f32 %v1451, 0.044715
          %v1486 = vmul.f32 %v1452, 0.044715
          %v1487 = vmul.f32 %v1453, 0.044715
          %v1488 = vmul.f32 %v1454, 0.044715
          %v1489 = vmul.f32 %v1455, 0.044715
          %v1490 = vmul.f32 %v1456, 0.044715
          %v1491 = vmul.f32 %v1474, %v1440
          %v1492 = vmul.f32 %v1475, %v1441
          %v1493 = vmul.f32 %v1476, %v1442
          %v1494 = vmul.f32 %v1477, %v1443
          %v1495 = vmul.f32 %v1478, %v1444
          %v1496 = vmul.f32 %v1479, %v1445
          %v1497 = vmul.f32 %v1480, %v1446
          %v1498 = vmul.f32 %v1481, %v1447
          %v1499 = vmul.f32 %v1482, %v1448
          %v1500 = vmul.f32 %v1483, %v1449
          %v1501 = vmul.f32 %v1484, %v1450
          %v1502 = vmul.f32 %v1485, %v1451
          %v1503 = vmul.f32 %v1486, %v1452
          %v1504 = vmul.f32 %v1487, %v1453
          %v1505 = vmul.f32 %v1488, %v1454
          %v1506 = vmul.f32 %v1489, %v1455
          %v1507 = vmul.f32 %v1490, %v1456
          %v1508 = vmul.f32 %v1491, %v1440
          %v1509 = vmul.f32 %v1492, %v1441
          %v1510 = vmul.f32 %v1493, %v1442
          %v1511 = vmul.f32 %v1494, %v1443
          %v1512 = vmul.f32 %v1495, %v1444
          %v1513 = vmul.f32 %v1496, %v1445
          %v1514 = vmul.f32 %v1497, %v1446
          %v1515 = vmul.f32 %v1498, %v1447
          %v1516 = vmul.f32 %v1499, %v1448
          %v1517 = vmul.f32 %v1500, %v1449
          %v1518 = vmul.f32 %v1501, %v1450
          %v1519 = vmul.f32 %v1502, %v1451
          %v1520 = vmul.f32 %v1503, %v1452
          %v1521 = vmul.f32 %v1504, %v1453
          %v1522 = vmul.f32 %v1505, %v1454
          %v1523 = vmul.f32 %v1506, %v1455
          %v1524 = vmul.f32 %v1507, %v1456
          %v1525 = vadd.f32 %v1440, %v1508
          %v1526 = vadd.f32 %v1441, %v1509
          %v1527 = vadd.f32 %v1442, %v1510
          %v1528 = vadd.f32 %v1443, %v1511
          %v1529 = vadd.f32 %v1444, %v1512
          %v1530 = vadd.f32 %v1445, %v1513
          %v1531 = vadd.f32 %v1446, %v1514
          %v1532 = vadd.f32 %v1447, %v1515
          %v1533 = vadd.f32 %v1448, %v1516
          %v1534 = vadd.f32 %v1449, %v1517
          %v1535 = vadd.f32 %v1450, %v1518
          %v1536 = vadd.f32 %v1451, %v1519
          %v1537 = vadd.f32 %v1452, %v1520
          %v1538 = vadd.f32 %v1453, %v1521
          %v1539 = vadd.f32 %v1454, %v1522
          %v1540 = vadd.f32 %v1455, %v1523
          %v1541 = vadd.f32 %v1456, %v1524
          %v1542 = vmul.f32 %v1525, 0.7978846
          %v1543 = vmul.f32 %v1526, 0.7978846
          %v1544 = vmul.f32 %v1527, 0.7978846
          %v1545 = vmul.f32 %v1528, 0.7978846
          %v1546 = vmul.f32 %v1529, 0.7978846
          %v1547 = vmul.f32 %v1530, 0.7978846
          %v1548 = vmul.f32 %v1531, 0.7978846
          %v1549 = vmul.f32 %v1532, 0.7978846
          %v1550 = vmul.f32 %v1533, 0.7978846
          %v1551 = vmul.f32 %v1534, 0.7978846
          %v1552 = vmul.f32 %v1535, 0.7978846
          %v1553 = vmul.f32 %v1536, 0.7978846
          %v1554 = vmul.f32 %v1537, 0.7978846
          %v1555 = vmul.f32 %v1538, 0.7978846
          %v1556 = vmul.f32 %v1539, 0.7978846
          %v1557 = vmul.f32 %v1540, 0.7978846
          %v1558 = vmul.f32 %v1541, 0.7978846
          %v1559 = vtanh.pop %v1542
          %v1560 = vtanh.pop %v1543
          %v1561 = vtanh.pop %v1544
          %v1562 = vtanh.pop %v1545
          %v1563 = vtanh.pop %v1546
          %v1564 = vtanh.pop %v1547
          %v1565 = vtanh.pop %v1548
          %v1566 = vtanh.pop %v1549
          %v1567 = vtanh.pop %v1550
          %v1568 = vtanh.pop %v1551
          %v1569 = vtanh.pop %v1552
          %v1570 = vtanh.pop %v1553
          %v1571 = vtanh.pop %v1554
          %v1572 = vtanh.pop %v1555
          %v1573 = vtanh.pop %v1556
          %v1574 = vtanh.pop %v1557
          %v1575 = vtanh.pop %v1558
          %v1576 = vadd.f32 %v1559, 1.0
          %v1577 = vadd.f32 %v1560, 1.0
          %v1578 = vadd.f32 %v1561, 1.0
          %v1579 = vadd.f32 %v1562, 1.0
          %v1580 = vadd.f32 %v1563, 1.0
          %v1581 = vadd.f32 %v1564, 1.0
          %v1582 = vadd.f32 %v1565, 1.0
          %v1583 = vadd.f32 %v1566, 1.0
          %v1584 = vadd.f32 %v1567, 1.0
          %v1585 = vadd.f32 %v1568, 1.0
          %v1586 = vadd.f32 %v1569, 1.0
          %v1587 = vadd.f32 %v1570, 1.0
          %v1588 = vadd.f32 %v1571, 1.0
          %v1589 = vadd.f32 %v1572, 1.0
          %v1590 = vadd.f32 %v1573, 1.0
          %v1591 = vadd.f32 %v1574, 1.0
          %v1592 = vadd.f32 %v1575, 1.0
          %v1593 = vmul.f32 %v1457, %v1576
          %v1594 = vmul.f32 %v1458, %v1577
          %v1595 = vmul.f32 %v1459, %v1578
          %v1596 = vmul.f32 %v1460, %v1579
          %v1597 = vmul.f32 %v1461, %v1580
          %v1598 = vmul.f32 %v1462, %v1581
          %v1599 = vmul.f32 %v1463, %v1582
          %v1600 = vmul.f32 %v1464, %v1583
          %v1601 = vmul.f32 %v1465, %v1584
          %v1602 = vmul.f32 %v1466, %v1585
          %v1603 = vmul.f32 %v1467, %v1586
          %v1604 = vmul.f32 %v1468, %v1587
          %v1605 = vmul.f32 %v1469, %v1588
          %v1606 = vmul.f32 %v1470, %v1589
          %v1607 = vmul.f32 %v1471, %v1590
          %v1608 = vmul.f32 %v1472, %v1591
          %v1609 = vmul.f32 %v1473, %v1592
          %v1610 = vpack.c.bf16 %v1594, %v1593
          %v1611 = vpack.c.bf16 %v1596, %v1595
          %v1612 = vpack.c.bf16 %v1598, %v1597
          %v1613 = vpack.c.bf16 %v1600, %v1599
          %v1614 = vpack.c.bf16 %v1602, %v1601
          %v1615 = vpack.c.bf16 %v1604, %v1603
          %v1616 = vpack.c.bf16 %v1606, %v1605
          %v1617 = vpack.c.bf16 %v1608, %v1607
          %v1618 = vpack.c.bf16 %v1609, %v1609
          %v1619 = vld [vmem:[%s8] sm:$0xf]
          %v1620 = vld [vmem:[%s8 + $0x4] sm:$0xf]
          %v1621 = vld [vmem:[%s8 + $0x8] sm:$0xf]
          %v1622 = vld [vmem:[%s8 + $0xc] sm:$0xf]
          %v1623 = vld [vmem:[%s8 + $0x10] sm:$0xf]
          %v1624 = vld [vmem:[%s8 + $0x14] sm:$0xf]
          %v1625 = vld [vmem:[%s8 + $0x18] sm:$0xf]
          %v1626 = vld [vmem:[%s8 + $0x1c] sm:$0xf]
          %v1627 = vld [vmem:[%s8 + $0x20] sm:$0xf]
          %v1628 = vld [vmem:[%s8 + $0x24] sm:$0xf]
          %v1629 = vld [vmem:[%s8 + $0x28] sm:$0xf]
          %v1630 = vld [vmem:[%s8 + $0x2c] sm:$0xf]
          %v1631 = vld [vmem:[%s8 + $0x30] sm:$0xf]
          %v1632 = vld [vmem:[%s8 + $0x34] sm:$0xf]
          %v1633 = vld [vmem:[%s8 + $0x38] sm:$0xf]
          %v1634 = vld [vmem:[%s8 + $0x3c] sm:$0xf]
          %v1635 = vld [vmem:[%s9] sm:$0x1]
          %v1637 = vlaneseq
          %v1638 = vshrl.u32 %v1637, 7
          %v1639 = vsub.s32 0, %v1638
          %v1640 = vrot.slane %v1635, %v1639
          %v1658 = vunpack.c.l.b16 %v1619
          %v1659 = vunpack.c.l.b16 %v1620
          %v1660 = vunpack.c.l.b16 %v1621
          %v1661 = vunpack.c.l.b16 %v1622
          %v1662 = vunpack.c.l.b16 %v1623
          %v1663 = vunpack.c.l.b16 %v1624
          %v1664 = vunpack.c.l.b16 %v1625
          %v1665 = vunpack.c.l.b16 %v1626
          %v1666 = vunpack.c.l.b16 %v1627
          %v1667 = vunpack.c.l.b16 %v1628
          %v1668 = vunpack.c.l.b16 %v1629
          %v1669 = vunpack.c.l.b16 %v1630
          %v1670 = vunpack.c.l.b16 %v1631
          %v1671 = vunpack.c.l.b16 %v1632
          %v1672 = vunpack.c.l.b16 %v1633
          %v1673 = vunpack.c.l.b16 %v1634
          %v1674 = vpack.c.b16 %v1659, %v1658
          %v1675 = vpack.c.b16 %v1661, %v1660
          %v1676 = vpack.c.b16 %v1663, %v1662
          %v1677 = vpack.c.b16 %v1665, %v1664
          %v1678 = vpack.c.b16 %v1667, %v1666
          %v1679 = vpack.c.b16 %v1669, %v1668
          %v1680 = vpack.c.b16 %v1671, %v1670
          %v1681 = vpack.c.b16 %v1673, %v1672
          %1690 = vmatprep.subr.bf16.mxu0 0
          %1691 = vmatpush1.bf16.msra.mxu0 %v1681
          %1692 = vmatprep.subr.bf16.mxu0 0
          %1693 = vmatpush1.bf16.msra.mxu0 %v1680
          %1694 = vmatprep.subr.bf16.mxu0 0
          %1695 = vmatpush1.bf16.msra.mxu0 %v1679
          %1696 = vmatprep.subr.bf16.mxu0 0
          %1697 = vmatpush1.bf16.msra.mxu0 %v1678
          %1698 = vmatprep.subr.bf16.mxu0 0
          %1699 = vmatpush1.bf16.msra.mxu0 %v1677
          %1700 = vmatprep.subr.bf16.mxu0 0
          %1701 = vmatpush1.bf16.msra.mxu0 %v1676
          %1702 = vmatprep.subr.bf16.mxu0 0
          %1703 = vmatpush1.bf16.msra.mxu0 %v1675
          %1704 = vmatprep.subr.bf16.mxu0 0
          %1705 = vmatpush1.bf16.msra.mxu0 %v1674
          %1706 = vmatprep.subr.bf16.mxu0 0
          %1707 = vmatpush2.bf16.msra.mxu0 0
          %1708 = vmatprep.subr.bf16.mxu0 0
          %1709 = vmatpush2.bf16.msra.mxu0 0
          %1710 = vmatprep.subr.bf16.mxu0 0
          %1711 = vmatpush2.bf16.msra.mxu0 0
          %1712 = vmatprep.subr.bf16.mxu0 0
          %1713 = vmatpush2.bf16.msra.mxu0 0
          %1714 = vmatprep.subr.bf16.mxu0 0
          %1715 = vmatpush2.bf16.msra.mxu0 0
          %1716 = vmatprep.subr.bf16.mxu0 0
          %1717 = vmatpush2.bf16.msra.mxu0 0
          %1718 = vmatprep.subr.bf16.mxu0 0
          %1719 = vmatpush2.bf16.msra.mxu0 0
          %1720 = vmatprep.subr.bf16.mxu0 0
          %1721 = vmatpush2.bf16.msra.mxu0 0
          %1722 = vmatprep.mubr.bf16.mxu0 0
          %1723 = vmatmul.mubr.bf16.gmra.mxu0 %v1610
          %v1724 = vpop.f32.mrf.mxu0
          %v1725 = vadd.f32 %v1640, %v1724
          %v1726 = vpop.f32.mrf.mxu0
          %v1727 = vpop.f32.mrf.mxu0
          %v1728 = vadd.f32 %v1640, %v1727
          %v1729 = vpop.f32.mrf.mxu0
          %1730 = vmatprep.mubr.bf16.mxu0 0
          %1731 = vmatmul.mubr.bf16.gmra.mxu0 %v1611
          %v1732 = vpop.f32.mrf.mxu0
          %v1733 = vadd.f32 %v1640, %v1732
          %v1734 = vpop.f32.mrf.mxu0
          %v1735 = vpop.f32.mrf.mxu0
          %v1736 = vadd.f32 %v1640, %v1735
          %v1737 = vpop.f32.mrf.mxu0
          %1738 = vmatprep.mubr.bf16.mxu0 0
          %1739 = vmatmul.mubr.bf16.gmra.mxu0 %v1612
          %v1740 = vpop.f32.mrf.mxu0
          %v1741 = vadd.f32 %v1640, %v1740
          %v1742 = vpop.f32.mrf.mxu0
          %v1743 = vpop.f32.mrf.mxu0
          %v1744 = vadd.f32 %v1640, %v1743
          %v1745 = vpop.f32.mrf.mxu0
          %1746 = vmatprep.mubr.bf16.mxu0 0
          %1747 = vmatmul.mubr.bf16.gmra.mxu0 %v1613
          %v1748 = vpop.f32.mrf.mxu0
          %v1749 = vadd.f32 %v1640, %v1748
          %v1750 = vpop.f32.mrf.mxu0
          %v1751 = vpop.f32.mrf.mxu0
          %v1752 = vadd.f32 %v1640, %v1751
          %v1753 = vpop.f32.mrf.mxu0
          %1754 = vmatprep.mubr.bf16.mxu0 0
          %1755 = vmatmul.mubr.bf16.gmra.mxu0 %v1614
          %v1756 = vpop.f32.mrf.mxu0
          %v1757 = vadd.f32 %v1640, %v1756
          %v1758 = vpop.f32.mrf.mxu0
          %v1759 = vpop.f32.mrf.mxu0
          %v1760 = vadd.f32 %v1640, %v1759
          %v1761 = vpop.f32.mrf.mxu0
          %1762 = vmatprep.mubr.bf16.mxu0 0
          %1763 = vmatmul.mubr.bf16.gmra.mxu0 %v1615
          %v1764 = vpop.f32.mrf.mxu0
          %v1765 = vadd.f32 %v1640, %v1764
          %v1766 = vpop.f32.mrf.mxu0
          %v1767 = vpop.f32.mrf.mxu0
          %v1768 = vadd.f32 %v1640, %v1767
          %v1769 = vpop.f32.mrf.mxu0
          %1770 = vmatprep.mubr.bf16.mxu0 0
          %1771 = vmatmul.mubr.bf16.gmra.mxu0 %v1616
          %v1772 = vpop.f32.mrf.mxu0
          %v1773 = vadd.f32 %v1640, %v1772
          %v1774 = vpop.f32.mrf.mxu0
          %v1775 = vpop.f32.mrf.mxu0
          %v1776 = vadd.f32 %v1640, %v1775
          %v1777 = vpop.f32.mrf.mxu0
          %1778 = vmatprep.mubr.bf16.mxu0 0
          %1779 = vmatmul.mubr.bf16.gmra.mxu0 %v1617
          %v1780 = vpop.f32.mrf.mxu0
          %v1781 = vadd.f32 %v1640, %v1780
          %v1782 = vpop.f32.mrf.mxu0
          %v1783 = vpop.f32.mrf.mxu0
          %v1784 = vadd.f32 %v1640, %v1783
          %v1785 = vpop.f32.mrf.mxu0
          %1786 = vmatprep.mubr.bf16.mxu0 0
          %1787 = vmatmul.mubr.bf16.gmra.mxu0 %v1618
          %v1788 = vpop.f32.mrf.mxu0
          %v1789 = vadd.f32 %v1640, %v1788
          %v1790 = vpop.f32.mrf.mxu0
          %v1791 = vpop.f32.mrf.mxu0
          %v1792 = vpop.f32.mrf.mxu0
          %1793 = vdwg.mxu0
          %v1794 = vmul.f32 %v1725, 0.5
          %v1795 = vmul.f32 %v1728, 0.5
          %v1796 = vmul.f32 %v1733, 0.5
          %v1797 = vmul.f32 %v1736, 0.5
          %v1798 = vmul.f32 %v1741, 0.5
          %v1799 = vmul.f32 %v1744, 0.5
          %v1800 = vmul.f32 %v1749, 0.5
          %v1801 = vmul.f32 %v1752, 0.5
          %v1802 = vmul.f32 %v1757, 0.5
          %v1803 = vmul.f32 %v1760, 0.5
          %v1804 = vmul.f32 %v1765, 0.5
          %v1805 = vmul.f32 %v1768, 0.5
          %v1806 = vmul.f32 %v1773, 0.5
          %v1807 = vmul.f32 %v1776, 0.5
          %v1808 = vmul.f32 %v1781, 0.5
          %v1809 = vmul.f32 %v1784, 0.5
          %v1810 = vmul.f32 %v1789, 0.5
          %v1811 = vmul.f32 %v1725, 0.044715
          %v1812 = vmul.f32 %v1728, 0.044715
          %v1813 = vmul.f32 %v1733, 0.044715
          %v1814 = vmul.f32 %v1736, 0.044715
          %v1815 = vmul.f32 %v1741, 0.044715
          %v1816 = vmul.f32 %v1744, 0.044715
          %v1817 = vmul.f32 %v1749, 0.044715
          %v1818 = vmul.f32 %v1752, 0.044715
          %v1819 = vmul.f32 %v1757, 0.044715
          %v1820 = vmul.f32 %v1760, 0.044715
          %v1821 = vmul.f32 %v1765, 0.044715
          %v1822 = vmul.f32 %v1768, 0.044715
          %v1823 = vmul.f32 %v1773, 0.044715
          %v1824 = vmul.f32 %v1776, 0.044715
          %v1825 = vmul.f32 %v1781, 0.044715
          %v1826 = vmul.f32 %v1784, 0.044715
          %v1827 = vmul.f32 %v1789, 0.044715
          %v1828 = vmul.f32 %v1811, %v1725
          %v1829 = vmul.f32 %v1812, %v1728
          %v1830 = vmul.f32 %v1813, %v1733
          %v1831 = vmul.f32 %v1814, %v1736
          %v1832 = vmul.f32 %v1815, %v1741
          %v1833 = vmul.f32 %v1816, %v1744
          %v1834 = vmul.f32 %v1817, %v1749
          %v1835 = vmul.f32 %v1818, %v1752
          %v1836 = vmul.f32 %v1819, %v1757
          %v1837 = vmul.f32 %v1820, %v1760
          %v1838 = vmul.f32 %v1821, %v1765
          %v1839 = vmul.f32 %v1822, %v1768
          %v1840 = vmul.f32 %v1823, %v1773
          %v1841 = vmul.f32 %v1824, %v1776
          %v1842 = vmul.f32 %v1825, %v1781
          %v1843 = vmul.f32 %v1826, %v1784
          %v1844 = vmul.f32 %v1827, %v1789
          %v1845 = vmul.f32 %v1828, %v1725
          %v1846 = vmul.f32 %v1829, %v1728
          %v1847 = vmul.f32 %v1830, %v1733
          %v1848 = vmul.f32 %v1831, %v1736
          %v1849 = vmul.f32 %v1832, %v1741
          %v1850 = vmul.f32 %v1833, %v1744
          %v1851 = vmul.f32 %v1834, %v1749
          %v1852 = vmul.f32 %v1835, %v1752
          %v1853 = vmul.f32 %v1836, %v1757
          %v1854 = vmul.f32 %v1837, %v1760
          %v1855 = vmul.f32 %v1838, %v1765
          %v1856 = vmul.f32 %v1839, %v1768
          %v1857 = vmul.f32 %v1840, %v1773
          %v1858 = vmul.f32 %v1841, %v1776
          %v1859 = vmul.f32 %v1842, %v1781
          %v1860 = vmul.f32 %v1843, %v1784
          %v1861 = vmul.f32 %v1844, %v1789
          %v1862 = vadd.f32 %v1725, %v1845
          %v1863 = vadd.f32 %v1728, %v1846
          %v1864 = vadd.f32 %v1733, %v1847
          %v1865 = vadd.f32 %v1736, %v1848
          %v1866 = vadd.f32 %v1741, %v1849
          %v1867 = vadd.f32 %v1744, %v1850
          %v1868 = vadd.f32 %v1749, %v1851
          %v1869 = vadd.f32 %v1752, %v1852
          %v1870 = vadd.f32 %v1757, %v1853
          %v1871 = vadd.f32 %v1760, %v1854
          %v1872 = vadd.f32 %v1765, %v1855
          %v1873 = vadd.f32 %v1768, %v1856
          %v1874 = vadd.f32 %v1773, %v1857
          %v1875 = vadd.f32 %v1776, %v1858
          %v1876 = vadd.f32 %v1781, %v1859
          %v1877 = vadd.f32 %v1784, %v1860
          %v1878 = vadd.f32 %v1789, %v1861
          %v1879 = vmul.f32 %v1862, 0.7978846
          %v1880 = vmul.f32 %v1863, 0.7978846
          %v1881 = vmul.f32 %v1864, 0.7978846
          %v1882 = vmul.f32 %v1865, 0.7978846
          %v1883 = vmul.f32 %v1866, 0.7978846
          %v1884 = vmul.f32 %v1867, 0.7978846
          %v1885 = vmul.f32 %v1868, 0.7978846
          %v1886 = vmul.f32 %v1869, 0.7978846
          %v1887 = vmul.f32 %v1870, 0.7978846
          %v1888 = vmul.f32 %v1871, 0.7978846
          %v1889 = vmul.f32 %v1872, 0.7978846
          %v1890 = vmul.f32 %v1873, 0.7978846
          %v1891 = vmul.f32 %v1874, 0.7978846
          %v1892 = vmul.f32 %v1875, 0.7978846
          %v1893 = vmul.f32 %v1876, 0.7978846
          %v1894 = vmul.f32 %v1877, 0.7978846
          %v1895 = vmul.f32 %v1878, 0.7978846
          %v1896 = vtanh.pop %v1879
          %v1897 = vtanh.pop %v1880
          %v1898 = vtanh.pop %v1881
          %v1899 = vtanh.pop %v1882
          %v1900 = vtanh.pop %v1883
          %v1901 = vtanh.pop %v1884
          %v1902 = vtanh.pop %v1885
          %v1903 = vtanh.pop %v1886
          %v1904 = vtanh.pop %v1887
          %v1905 = vtanh.pop %v1888
          %v1906 = vtanh.pop %v1889
          %v1907 = vtanh.pop %v1890
          %v1908 = vtanh.pop %v1891
          %v1909 = vtanh.pop %v1892
          %v1910 = vtanh.pop %v1893
          %v1911 = vtanh.pop %v1894
          %v1912 = vtanh.pop %v1895
          %v1913 = vadd.f32 %v1896, 1.0
          %v1914 = vadd.f32 %v1897, 1.0
          %v1915 = vadd.f32 %v1898, 1.0
          %v1916 = vadd.f32 %v1899, 1.0
          %v1917 = vadd.f32 %v1900, 1.0
          %v1918 = vadd.f32 %v1901, 1.0
          %v1919 = vadd.f32 %v1902, 1.0
          %v1920 = vadd.f32 %v1903, 1.0
          %v1921 = vadd.f32 %v1904, 1.0
          %v1922 = vadd.f32 %v1905, 1.0
          %v1923 = vadd.f32 %v1906, 1.0
          %v1924 = vadd.f32 %v1907, 1.0
          %v1925 = vadd.f32 %v1908, 1.0
          %v1926 = vadd.f32 %v1909, 1.0
          %v1927 = vadd.f32 %v1910, 1.0
          %v1928 = vadd.f32 %v1911, 1.0
          %v1929 = vadd.f32 %v1912, 1.0
          %v1930 = vmul.f32 %v1794, %v1913
          %v1931 = vmul.f32 %v1795, %v1914
          %v1932 = vmul.f32 %v1796, %v1915
          %v1933 = vmul.f32 %v1797, %v1916
          %v1934 = vmul.f32 %v1798, %v1917
          %v1935 = vmul.f32 %v1799, %v1918
          %v1936 = vmul.f32 %v1800, %v1919
          %v1937 = vmul.f32 %v1801, %v1920
          %v1938 = vmul.f32 %v1802, %v1921
          %v1939 = vmul.f32 %v1803, %v1922
          %v1940 = vmul.f32 %v1804, %v1923
          %v1941 = vmul.f32 %v1805, %v1924
          %v1942 = vmul.f32 %v1806, %v1925
          %v1943 = vmul.f32 %v1807, %v1926
          %v1944 = vmul.f32 %v1808, %v1927
          %v1945 = vmul.f32 %v1809, %v1928
          %v1946 = vmul.f32 %v1810, %v1929
          %v1947 = vmul.f32 %v886, 0.5
          %v1948 = vmul.f32 %v887, 0.5
          %v1949 = vmul.f32 %v888, 0.5
          %v1950 = vmul.f32 %v889, 0.5
          %v1951 = vmul.f32 %v890, 0.5
          %v1952 = vmul.f32 %v891, 0.5
          %v1953 = vmul.f32 %v892, 0.5
          %v1954 = vmul.f32 %v893, 0.5
          %v1955 = vmul.f32 %v894, 0.5
          %v1956 = vmul.f32 %v895, 0.5
          %v1957 = vmul.f32 %v896, 0.5
          %v1958 = vmul.f32 %v897, 0.5
          %v1959 = vmul.f32 %v898, 0.5
          %v1960 = vmul.f32 %v899, 0.5
          %v1961 = vmul.f32 %v900, 0.5
          %v1962 = vmul.f32 %v901, 0.5
          %v1963 = vmul.f32 %v902, 0.5
          %v1964 = vmul.f32 %v1947, %v1947
          %v1965 = vmul.f32 %v1948, %v1948
          %v1966 = vmul.f32 %v1949, %v1949
          %v1967 = vmul.f32 %v1950, %v1950
          %v1968 = vmul.f32 %v1951, %v1951
          %v1969 = vmul.f32 %v1952, %v1952
          %v1970 = vmul.f32 %v1953, %v1953
          %v1971 = vmul.f32 %v1954, %v1954
          %v1972 = vmul.f32 %v1955, %v1955
          %v1973 = vmul.f32 %v1956, %v1956
          %v1974 = vmul.f32 %v1957, %v1957
          %v1975 = vmul.f32 %v1958, %v1958
          %v1976 = vmul.f32 %v1959, %v1959
          %v1977 = vmul.f32 %v1960, %v1960
          %v1978 = vmul.f32 %v1961, %v1961
          %v1979 = vmul.f32 %v1962, %v1962
          %v1980 = vmul.f32 %v1963, %v1963
          %v1981 = vmul.f32 %v1964, %v1964
          %v1982 = vmul.f32 %v1965, %v1965
          %v1983 = vmul.f32 %v1966, %v1966
          %v1984 = vmul.f32 %v1967, %v1967
          %v1985 = vmul.f32 %v1968, %v1968
          %v1986 = vmul.f32 %v1969, %v1969
          %v1987 = vmul.f32 %v1970, %v1970
          %v1988 = vmul.f32 %v1971, %v1971
          %v1989 = vmul.f32 %v1972, %v1972
          %v1990 = vmul.f32 %v1973, %v1973
          %v1991 = vmul.f32 %v1974, %v1974
          %v1992 = vmul.f32 %v1975, %v1975
          %v1993 = vmul.f32 %v1976, %v1976
          %v1994 = vmul.f32 %v1977, %v1977
          %v1995 = vmul.f32 %v1978, %v1978
          %v1996 = vmul.f32 %v1979, %v1979
          %v1997 = vmul.f32 %v1980, %v1980
          %v1998 = vmul.f32 %v1981, %v1964
          %v1999 = vmul.f32 %v1982, %v1965
          %v2000 = vmul.f32 %v1983, %v1966
          %v2001 = vmul.f32 %v1984, %v1967
          %v2002 = vmul.f32 %v1985, %v1968
          %v2003 = vmul.f32 %v1986, %v1969
          %v2004 = vmul.f32 %v1987, %v1970
          %v2005 = vmul.f32 %v1988, %v1971
          %v2006 = vmul.f32 %v1989, %v1972
          %v2007 = vmul.f32 %v1990, %v1973
          %v2008 = vmul.f32 %v1991, %v1974
          %v2009 = vmul.f32 %v1992, %v1975
          %v2010 = vmul.f32 %v1993, %v1976
          %v2011 = vmul.f32 %v1994, %v1977
          %v2012 = vmul.f32 %v1995, %v1978
          %v2013 = vmul.f32 %v1996, %v1979
          %v2014 = vmul.f32 %v1997, %v1980
          %v2015 = vmul.f32 %v1998, %v1947
          %v2016 = vmul.f32 %v1999, %v1948
          %v2017 = vmul.f32 %v2000, %v1949
          %v2018 = vmul.f32 %v2001, %v1950
          %v2019 = vmul.f32 %v2002, %v1951
          %v2020 = vmul.f32 %v2003, %v1952
          %v2021 = vmul.f32 %v2004, %v1953
          %v2022 = vmul.f32 %v2005, %v1954
          %v2023 = vmul.f32 %v2006, %v1955
          %v2024 = vmul.f32 %v2007, %v1956
          %v2025 = vmul.f32 %v2008, %v1957
          %v2026 = vmul.f32 %v2009, %v1958
          %v2027 = vmul.f32 %v2010, %v1959
          %v2028 = vmul.f32 %v2011, %v1960
          %v2029 = vmul.f32 %v2012, %v1961
          %v2030 = vmul.f32 %v2013, %v1962
          %v2031 = vmul.f32 %v2014, %v1963
          %v2032 = vmul.f32 %v2015, %v1947
          %v2033 = vmul.f32 %v2016, %v1948
          %v2034 = vmul.f32 %v2017, %v1949
          %v2035 = vmul.f32 %v2018, %v1950
          %v2036 = vmul.f32 %v2019, %v1951
          %v2037 = vmul.f32 %v2020, %v1952
          %v2038 = vmul.f32 %v2021, %v1953
          %v2039 = vmul.f32 %v2022, %v1954
          %v2040 = vmul.f32 %v2023, %v1955
          %v2041 = vmul.f32 %v2024, %v1956
          %v2042 = vmul.f32 %v2025, %v1957
          %v2043 = vmul.f32 %v2026, %v1958
          %v2044 = vmul.f32 %v2027, %v1959
          %v2045 = vmul.f32 %v2028, %v1960
          %v2046 = vmul.f32 %v2029, %v1961
          %v2047 = vmul.f32 %v2030, %v1962
          %v2048 = vmul.f32 %v2031, %v1963
          %v2049 = vmul.f32 %v1998, 28.0
          %v2050 = vmul.f32 %v1999, 28.0
          %v2051 = vmul.f32 %v2000, 28.0
          %v2052 = vmul.f32 %v2001, 28.0
          %v2053 = vmul.f32 %v2002, 28.0
          %v2054 = vmul.f32 %v2003, 28.0
          %v2055 = vmul.f32 %v2004, 28.0
          %v2056 = vmul.f32 %v2005, 28.0
          %v2057 = vmul.f32 %v2006, 28.0
          %v2058 = vmul.f32 %v2007, 28.0
          %v2059 = vmul.f32 %v2008, 28.0
          %v2060 = vmul.f32 %v2009, 28.0
          %v2061 = vmul.f32 %v2010, 28.0
          %v2062 = vmul.f32 %v2011, 28.0
          %v2063 = vmul.f32 %v2012, 28.0
          %v2064 = vmul.f32 %v2013, 28.0
          %v2065 = vmul.f32 %v2014, 28.0
          %v2066 = vsub.f32 1.0, %v2049
          %v2067 = vsub.f32 1.0, %v2050
          %v2068 = vsub.f32 1.0, %v2051
          %v2069 = vsub.f32 1.0, %v2052
          %v2070 = vsub.f32 1.0, %v2053
          %v2071 = vsub.f32 1.0, %v2054
          %v2072 = vsub.f32 1.0, %v2055
          %v2073 = vsub.f32 1.0, %v2056
          %v2074 = vsub.f32 1.0, %v2057
          %v2075 = vsub.f32 1.0, %v2058
          %v2076 = vsub.f32 1.0, %v2059
          %v2077 = vsub.f32 1.0, %v2060
          %v2078 = vsub.f32 1.0, %v2061
          %v2079 = vsub.f32 1.0, %v2062
          %v2080 = vsub.f32 1.0, %v2063
          %v2081 = vsub.f32 1.0, %v2064
          %v2082 = vsub.f32 1.0, %v2065
          %v2083 = vmul.f32 %v2015, 48.0
          %v2084 = vmul.f32 %v2016, 48.0
          %v2085 = vmul.f32 %v2017, 48.0
          %v2086 = vmul.f32 %v2018, 48.0
          %v2087 = vmul.f32 %v2019, 48.0
          %v2088 = vmul.f32 %v2020, 48.0
          %v2089 = vmul.f32 %v2021, 48.0
          %v2090 = vmul.f32 %v2022, 48.0
          %v2091 = vmul.f32 %v2023, 48.0
          %v2092 = vmul.f32 %v2024, 48.0
          %v2093 = vmul.f32 %v2025, 48.0
          %v2094 = vmul.f32 %v2026, 48.0
          %v2095 = vmul.f32 %v2027, 48.0
          %v2096 = vmul.f32 %v2028, 48.0
          %v2097 = vmul.f32 %v2029, 48.0
          %v2098 = vmul.f32 %v2030, 48.0
          %v2099 = vmul.f32 %v2031, 48.0
          %v2100 = vadd.f32 %v2066, %v2083
          %v2101 = vadd.f32 %v2067, %v2084
          %v2102 = vadd.f32 %v2068, %v2085
          %v2103 = vadd.f32 %v2069, %v2086
          %v2104 = vadd.f32 %v2070, %v2087
          %v2105 = vadd.f32 %v2071, %v2088
          %v2106 = vadd.f32 %v2072, %v2089
          %v2107 = vadd.f32 %v2073, %v2090
          %v2108 = vadd.f32 %v2074, %v2091
          %v2109 = vadd.f32 %v2075, %v2092
          %v2110 = vadd.f32 %v2076, %v2093
          %v2111 = vadd.f32 %v2077, %v2094
          %v2112 = vadd.f32 %v2078, %v2095
          %v2113 = vadd.f32 %v2079, %v2096
          %v2114 = vadd.f32 %v2080, %v2097
          %v2115 = vadd.f32 %v2081, %v2098
          %v2116 = vadd.f32 %v2082, %v2099
          %v2117 = vmul.f32 %v2032, 21.0
          %v2118 = vmul.f32 %v2033, 21.0
          %v2119 = vmul.f32 %v2034, 21.0
          %v2120 = vmul.f32 %v2035, 21.0
          %v2121 = vmul.f32 %v2036, 21.0
          %v2122 = vmul.f32 %v2037, 21.0
          %v2123 = vmul.f32 %v2038, 21.0
          %v2124 = vmul.f32 %v2039, 21.0
          %v2125 = vmul.f32 %v2040, 21.0
          %v2126 = vmul.f32 %v2041, 21.0
          %v2127 = vmul.f32 %v2042, 21.0
          %v2128 = vmul.f32 %v2043, 21.0
          %v2129 = vmul.f32 %v2044, 21.0
          %v2130 = vmul.f32 %v2045, 21.0
          %v2131 = vmul.f32 %v2046, 21.0
          %v2132 = vmul.f32 %v2047, 21.0
          %v2133 = vmul.f32 %v2048, 21.0
          %v2134 = vsub.f32 %v2100, %v2117
          %v2135 = vsub.f32 %v2101, %v2118
          %v2136 = vsub.f32 %v2102, %v2119
          %v2137 = vsub.f32 %v2103, %v2120
          %v2138 = vsub.f32 %v2104, %v2121
          %v2139 = vsub.f32 %v2105, %v2122
          %v2140 = vsub.f32 %v2106, %v2123
          %v2141 = vsub.f32 %v2107, %v2124
          %v2142 = vsub.f32 %v2108, %v2125
          %v2143 = vsub.f32 %v2109, %v2126
          %v2144 = vsub.f32 %v2110, %v2127
          %v2145 = vsub.f32 %v2111, %v2128
          %v2146 = vsub.f32 %v2112, %v2129
          %v2147 = vsub.f32 %v2113, %v2130
          %v2148 = vsub.f32 %v2114, %v2131
          %v2149 = vsub.f32 %v2115, %v2132
          %v2150 = vsub.f32 %v2116, %v2133
          %vm2151 = vcmp.lt.f32.partialorder %v886, 2.0
          %vm2152 = vcmp.lt.f32.partialorder %v887, 2.0
          %vm2153 = vcmp.lt.f32.partialorder %v888, 2.0
          %vm2154 = vcmp.lt.f32.partialorder %v889, 2.0
          %vm2155 = vcmp.lt.f32.partialorder %v890, 2.0
          %vm2156 = vcmp.lt.f32.partialorder %v891, 2.0
          %vm2157 = vcmp.lt.f32.partialorder %v892, 2.0
          %vm2158 = vcmp.lt.f32.partialorder %v893, 2.0
          %vm2159 = vcmp.lt.f32.partialorder %v894, 2.0
          %vm2160 = vcmp.lt.f32.partialorder %v895, 2.0
          %vm2161 = vcmp.lt.f32.partialorder %v896, 2.0
          %vm2162 = vcmp.lt.f32.partialorder %v897, 2.0
          %vm2163 = vcmp.lt.f32.partialorder %v898, 2.0
          %vm2164 = vcmp.lt.f32.partialorder %v899, 2.0
          %vm2165 = vcmp.lt.f32.partialorder %v900, 2.0
          %vm2166 = vcmp.lt.f32.partialorder %v901, 2.0
          %vm2167 = vcmp.lt.f32.partialorder %v902, 2.0
          %v2168 = vsel %vm2151, %v2134, 0.0
          %v2169 = vsel %vm2152, %v2135, 0.0
          %v2170 = vsel %vm2153, %v2136, 0.0
          %v2171 = vsel %vm2154, %v2137, 0.0
          %v2172 = vsel %vm2155, %v2138, 0.0
          %v2173 = vsel %vm2156, %v2139, 0.0
          %v2174 = vsel %vm2157, %v2140, 0.0
          %v2175 = vsel %vm2158, %v2141, 0.0
          %v2176 = vsel %vm2159, %v2142, 0.0
          %v2177 = vsel %vm2160, %v2143, 0.0
          %v2178 = vsel %vm2161, %v2144, 0.0
          %v2179 = vsel %vm2162, %v2145, 0.0
          %v2180 = vsel %vm2163, %v2146, 0.0
          %v2181 = vsel %vm2164, %v2147, 0.0
          %v2182 = vsel %vm2165, %v2148, 0.0
          %v2183 = vsel %vm2166, %v2149, 0.0
          %v2184 = vsel %vm2167, %v2150, 0.0
          %2186 = vset.pattern.permute.xlu0 0
          %2187 = vperm.xlu0 %2186, %v2168
          %v2188 = vpop.permute.xlu0 %2187
          %2191 = vset.pattern.permute.xlu0 0
          %2192 = vperm.xlu0 %2191, %v2169
          %v2193 = vpop.permute.xlu0 %2192
          %2196 = vset.pattern.permute.xlu0 0
          %2197 = vperm.xlu0 %2196, %v2170
          %v2198 = vpop.permute.xlu0 %2197
          %2201 = vset.pattern.permute.xlu0 0
          %2202 = vperm.xlu0 %2201, %v2171
          %v2203 = vpop.permute.xlu0 %2202
          %2206 = vset.pattern.permute.xlu0 0
          %2207 = vperm.xlu0 %2206, %v2172
          %v2208 = vpop.permute.xlu0 %2207
          %2211 = vset.pattern.permute.xlu0 0
          %2212 = vperm.xlu0 %2211, %v2173
          %v2213 = vpop.permute.xlu0 %2212
          %2216 = vset.pattern.permute.xlu0 0
          %2217 = vperm.xlu0 %2216, %v2174
          %v2218 = vpop.permute.xlu0 %2217
          %2221 = vset.pattern.permute.xlu0 0
          %2222 = vperm.xlu0 %2221, %v2175
          %v2223 = vpop.permute.xlu0 %2222
          %2226 = vset.pattern.permute.xlu0 0
          %2227 = vperm.xlu0 %2226, %v2176
          %v2228 = vpop.permute.xlu0 %2227
          %2231 = vset.pattern.permute.xlu0 0
          %2232 = vperm.xlu0 %2231, %v2177
          %v2233 = vpop.permute.xlu0 %2232
          %2236 = vset.pattern.permute.xlu0 0
          %2237 = vperm.xlu0 %2236, %v2178
          %v2238 = vpop.permute.xlu0 %2237
          %2241 = vset.pattern.permute.xlu0 0
          %2242 = vperm.xlu0 %2241, %v2179
          %v2243 = vpop.permute.xlu0 %2242
          %2246 = vset.pattern.permute.xlu0 0
          %2247 = vperm.xlu0 %2246, %v2180
          %v2248 = vpop.permute.xlu0 %2247
          %2251 = vset.pattern.permute.xlu0 0
          %2252 = vperm.xlu0 %2251, %v2181
          %v2253 = vpop.permute.xlu0 %2252
          %2256 = vset.pattern.permute.xlu0 0
          %2257 = vperm.xlu0 %2256, %v2182
          %v2258 = vpop.permute.xlu0 %2257
          %2261 = vset.pattern.permute.xlu0 0
          %2262 = vperm.xlu0 %2261, %v2183
          %v2263 = vpop.permute.xlu0 %2262
          %2266 = vset.pattern.permute.xlu0 0
          %2267 = vperm.xlu0 %2266, %v2184
          %v2268 = vpop.permute.xlu0 %2267
          %v2270 = vmul.f32 %v1930, %v2188
          %v2271 = vmul.f32 %v1931, %v2193
          %v2272 = vmul.f32 %v1932, %v2198
          %v2273 = vmul.f32 %v1933, %v2203
          %v2274 = vmul.f32 %v1934, %v2208
          %v2275 = vmul.f32 %v1935, %v2213
          %v2276 = vmul.f32 %v1936, %v2218
          %v2277 = vmul.f32 %v1937, %v2223
          %v2278 = vmul.f32 %v1938, %v2228
          %v2279 = vmul.f32 %v1939, %v2233
          %v2280 = vmul.f32 %v1940, %v2238
          %v2281 = vmul.f32 %v1941, %v2243
          %v2282 = vmul.f32 %v1942, %v2248
          %v2283 = vmul.f32 %v1943, %v2253
          %v2284 = vmul.f32 %v1944, %v2258
          %v2285 = vmul.f32 %v1945, %v2263
          %v2286 = vmul.f32 %v1946, %v2268
          %v2287 = vpack.c.bf16 %v2271, %v2270
          %v2288 = vpack.c.bf16 %v2273, %v2272
          %v2289 = vpack.c.bf16 %v2275, %v2274
          %v2290 = vpack.c.bf16 %v2277, %v2276
          %v2291 = vpack.c.bf16 %v2279, %v2278
          %v2292 = vpack.c.bf16 %v2281, %v2280
          %v2293 = vpack.c.bf16 %v2283, %v2282
          %v2294 = vpack.c.bf16 %v2285, %v2284
          %v2295 = vpack.c.bf16 %v2286, %v2286
          %v2305 = vunpack.c.l.b16 %v2287
          %v2306 = vunpack.c.h.b16 %v2287
          %v2307 = vunpack.c.l.b16 %v2288
          %v2308 = vunpack.c.h.b16 %v2288
          %v2309 = vunpack.c.l.b16 %v2289
          %v2310 = vunpack.c.h.b16 %v2289
          %v2311 = vunpack.c.l.b16 %v2290
          %v2312 = vunpack.c.h.b16 %v2290
          %v2313 = vunpack.c.l.b16 %v2291
          %v2314 = vunpack.c.h.b16 %v2291
          %v2315 = vunpack.c.l.b16 %v2292
          %v2316 = vunpack.c.h.b16 %v2292
          %v2317 = vunpack.c.l.b16 %v2293
          %v2318 = vunpack.c.h.b16 %v2293
          %v2319 = vunpack.c.l.b16 %v2294
          %v2320 = vunpack.c.h.b16 %v2294
          %v2321 = vunpack.c.l.b16 %v2295
          %v2322 = vpack.c.b16 %v2305, %v2305
          %v2323 = vpack.c.b16 %v2306, %v2306
          %v2324 = vpack.c.b16 %v2307, %v2307
          %v2325 = vpack.c.b16 %v2308, %v2308
          %v2326 = vpack.c.b16 %v2309, %v2309
          %v2327 = vpack.c.b16 %v2310, %v2310
          %v2328 = vpack.c.b16 %v2311, %v2311
          %v2329 = vpack.c.b16 %v2312, %v2312
          %v2330 = vpack.c.b16 %v2313, %v2313
          %v2331 = vpack.c.b16 %v2314, %v2314
          %v2332 = vpack.c.b16 %v2315, %v2315
          %v2333 = vpack.c.b16 %v2316, %v2316
          %v2334 = vpack.c.b16 %v2317, %v2317
          %v2335 = vpack.c.b16 %v2318, %v2318
          %v2336 = vpack.c.b16 %v2319, %v2319
          %v2337 = vpack.c.b16 %v2320, %v2320
          %v2338 = vpack.c.b16 %v2321, %v2321
          %2356 = vst [vmem:[#allocation3] sm:$0xf] %v2322
          %2357 = vst [vmem:[#allocation3 + $0x4] sm:$0xf] %v2323
          %2358 = vst [vmem:[#allocation3 + $0x8] sm:$0xf] %v2324
          %2359 = vst [vmem:[#allocation3 + $0xc] sm:$0xf] %v2325
          %2360 = vst [vmem:[#allocation3 + $0x10] sm:$0xf] %v2326
          %2361 = vst [vmem:[#allocation3 + $0x14] sm:$0xf] %v2327
          %2362 = vst [vmem:[#allocation3 + $0x18] sm:$0xf] %v2328
          %2363 = vst [vmem:[#allocation3 + $0x1c] sm:$0xf] %v2329
          %2364 = vst [vmem:[#allocation3 + $0x20] sm:$0xf] %v2330
          %2365 = vst [vmem:[#allocation3 + $0x24] sm:$0xf] %v2331
          %2366 = vst [vmem:[#allocation3 + $0x28] sm:$0xf] %v2332
          %2367 = vst [vmem:[#allocation3 + $0x2c] sm:$0xf] %v2333
          %2368 = vst [vmem:[#allocation3 + $0x30] sm:$0xf] %v2334
          %2369 = vst [vmem:[#allocation3 + $0x34] sm:$0xf] %v2335
          %2370 = vst [vmem:[#allocation3 + $0x38] sm:$0xf] %v2336
          %2371 = vst [vmem:[#allocation3 + $0x3c] sm:$0xf] %v2337
          %2372 = vst [vmem:[#allocation3 + $0x40] sm:$0xf] %v2338
          %v2373 = vld [vmem:[%s823] sm:$0xff]
          %v2374 = vld [vmem:[%s823 + $0x8] sm:$0xff]
          %v2375 = vpack.c.bf16 %v2374, %v2373
          %v2376 = vld [vmem:[%s5] sm:$0x3]
          %vm2377 = vcmask 31744
          %v2379 = vsel %vm2377, %v2375, 0
          %vm2381 = vcmask 1041408
          %v2383 = vsel %vm2381, %v2376, 0
          %2385 = vmatprep.subr.bf16.mxu0 0
          %2386 = vmatpush1.bf16.msra.mxu0 0
          %2387 = vmatprep.subr.bf16.mxu0 0
          %2388 = vmatpush1.bf16.msra.mxu0 0
          %2389 = vmatprep.subr.bf16.mxu0 0
          %2390 = vmatpush1.bf16.msra.mxu0 0
          %2391 = vmatprep.subr.bf16.mxu0 0
          %2392 = vmatpush1.bf16.msra.mxu0 0
          %2393 = vmatprep.subr.bf16.mxu0 0
          %2394 = vmatpush1.bf16.msra.mxu0 0
          %2395 = vmatprep.subr.bf16.mxu0 0
          %2396 = vmatpush1.bf16.msra.mxu0 0
          %2397 = vmatprep.subr.bf16.mxu0 0
          %2398 = vmatpush1.bf16.msra.mxu0 0
          %2399 = vmatprep.subr.bf16.mxu0 0
          %2400 = vmatpush1.bf16.msra.mxu0 %v2383
          %2401 = vmatprep.subr.bf16.mxu0 0
          %2402 = vmatpush2.bf16.msra.mxu0 0
          %2403 = vmatprep.subr.bf16.mxu0 0
          %2404 = vmatpush2.bf16.msra.mxu0 0
          %2405 = vmatprep.subr.bf16.mxu0 0
          %2406 = vmatpush2.bf16.msra.mxu0 0
          %2407 = vmatprep.subr.bf16.mxu0 0
          %2408 = vmatpush2.bf16.msra.mxu0 0
          %2409 = vmatprep.subr.bf16.mxu0 0
          %2410 = vmatpush2.bf16.msra.mxu0 0
          %2411 = vmatprep.subr.bf16.mxu0 0
          %2412 = vmatpush2.bf16.msra.mxu0 0
          %2413 = vmatprep.subr.bf16.mxu0 0
          %2414 = vmatpush2.bf16.msra.mxu0 0
          %2415 = vmatprep.subr.bf16.mxu0 0
          %2416 = vmatpush2.bf16.msra.mxu0 0
          %2417 = vmatprep.mubr.bf16.mxu0 0
          %2418 = vmatmul.mubr.bf16.gmra.mxu0 %v2379
          %v2419 = vpop.f32.mrf.mxu0
          %v2420 = vadd.f32 0.0, %v2419
          %v2421 = vpop.f32.mrf.mxu0
          %v2422 = vpop.f32.mrf.mxu0
          %v2423 = vadd.f32 0.0, %v2422
          %v2424 = vpop.f32.mrf.mxu0
          %2425 = vdwg.mxu0
          %2426 = vst [vmem:[#allocation2] sm:$0xff] %v2420
          %2427 = vst [vmem:[#allocation2 + $0x8] sm:$0xff] %v2423
          %2428 = vst [vmem:[%s818] sm:$0xff] 0.0
        $region104: #{tpu_custom_call.1} parent=99 // pred_fallthru
          _
        %v2429 = vld [vmem:[#allocation2] sm:$0xff]
        %v2430 = vld [vmem:[#allocation2 + $0x8] sm:$0xff]
        %v2431 = vld [vmem:[#allocation3] sm:$0xf]
        %v2432 = vld [vmem:[#allocation3 + $0x4] sm:$0xf]
        %v2433 = vld [vmem:[#allocation3 + $0x8] sm:$0xf]
        %v2434 = vld [vmem:[#allocation3 + $0xc] sm:$0xf]
        %v2435 = vld [vmem:[#allocation3 + $0x10] sm:$0xf]
        %v2436 = vld [vmem:[#allocation3 + $0x14] sm:$0xf]
        %v2437 = vld [vmem:[#allocation3 + $0x18] sm:$0xf]
        %v2438 = vld [vmem:[#allocation3 + $0x1c] sm:$0xf]
        %v2439 = vld [vmem:[#allocation3 + $0x20] sm:$0xf]
        %v2440 = vld [vmem:[#allocation3 + $0x24] sm:$0xf]
        %v2441 = vld [vmem:[#allocation3 + $0x28] sm:$0xf]
        %v2442 = vld [vmem:[#allocation3 + $0x2c] sm:$0xf]
        %v2443 = vld [vmem:[#allocation3 + $0x30] sm:$0xf]
        %v2444 = vld [vmem:[#allocation3 + $0x34] sm:$0xf]
        %v2445 = vld [vmem:[#allocation3 + $0x38] sm:$0xf]
        %v2446 = vld [vmem:[#allocation3 + $0x3c] sm:$0xf]
        %v2447 = vld [vmem:[#allocation3 + $0x40] sm:$0xf]
        %v2448 = vld [vmem:[%s847] sm:$0xf]
        %v2449 = vld [vmem:[%s847 + $0x4] sm:$0xf]
        %v2450 = vld [vmem:[%s847 + $0x8] sm:$0xf]
        %v2451 = vld [vmem:[%s847 + $0xc] sm:$0xf]
        %v2452 = vld [vmem:[%s847 + $0x10] sm:$0xf]
        %v2453 = vld [vmem:[%s847 + $0x14] sm:$0xf]
        %v2454 = vld [vmem:[%s847 + $0x18] sm:$0xf]
        %v2455 = vld [vmem:[%s847 + $0x1c] sm:$0xf]
        %v2456 = vld [vmem:[%s847 + $0x20] sm:$0xf]
        %v2457 = vld [vmem:[%s847 + $0x24] sm:$0xf]
        %v2458 = vld [vmem:[%s847 + $0x28] sm:$0xf]
        %v2459 = vld [vmem:[%s847 + $0x2c] sm:$0xf]
        %v2460 = vld [vmem:[%s847 + $0x30] sm:$0xf]
        %v2461 = vld [vmem:[%s847 + $0x34] sm:$0xf]
        %v2462 = vld [vmem:[%s847 + $0x38] sm:$0xf]
        %v2463 = vld [vmem:[%s847 + $0x3c] sm:$0xf]
        %v2481 = vunpack.c.l.b16 %v2431
        %v2482 = vunpack.c.l.b16 %v2432
        %v2483 = vunpack.c.l.b16 %v2433
        %v2484 = vunpack.c.l.b16 %v2434
        %v2485 = vunpack.c.l.b16 %v2435
        %v2486 = vunpack.c.l.b16 %v2436
        %v2487 = vunpack.c.l.b16 %v2437
        %v2488 = vunpack.c.l.b16 %v2438
        %v2489 = vunpack.c.l.b16 %v2439
        %v2490 = vunpack.c.l.b16 %v2440
        %v2491 = vunpack.c.l.b16 %v2441
        %v2492 = vunpack.c.l.b16 %v2442
        %v2493 = vunpack.c.l.b16 %v2443
        %v2494 = vunpack.c.l.b16 %v2444
        %v2495 = vunpack.c.l.b16 %v2445
        %v2496 = vunpack.c.l.b16 %v2446
        %v2497 = vunpack.c.l.b16 %v2447
        %v2498 = vpack.c.b16 %v2482, %v2481
        %v2499 = vpack.c.b16 %v2484, %v2483
        %v2500 = vpack.c.b16 %v2486, %v2485
        %v2501 = vpack.c.b16 %v2488, %v2487
        %v2502 = vpack.c.b16 %v2490, %v2489
        %v2503 = vpack.c.b16 %v2492, %v2491
        %v2504 = vpack.c.b16 %v2494, %v2493
        %v2505 = vpack.c.b16 %v2496, %v2495
        %v2506 = vpack.c.b16 %v2497, %v2497
        %v2532 = vunpack.c.l.b16 %v2448
        %v2533 = vunpack.c.l.b16 %v2449
        %v2534 = vunpack.c.l.b16 %v2450
        %v2535 = vunpack.c.l.b16 %v2451
        %v2536 = vunpack.c.l.b16 %v2452
        %v2537 = vunpack.c.l.b16 %v2453
        %v2538 = vunpack.c.l.b16 %v2454
        %v2539 = vunpack.c.l.b16 %v2455
        %v2540 = vunpack.c.l.b16 %v2456
        %v2541 = vunpack.c.l.b16 %v2457
        %v2542 = vunpack.c.l.b16 %v2458
        %v2543 = vunpack.c.l.b16 %v2459
        %v2544 = vunpack.c.l.b16 %v2460
        %v2545 = vunpack.c.l.b16 %v2461
        %v2546 = vunpack.c.l.b16 %v2462
        %v2547 = vunpack.c.l.b16 %v2463
        %v2548 = vpack.c.b16 %v2533, %v2532
        %v2549 = vpack.c.b16 %v2535, %v2534
        %v2550 = vpack.c.b16 %v2537, %v2536
        %v2551 = vpack.c.b16 %v2539, %v2538
        %v2552 = vpack.c.b16 %v2541, %v2540
        %v2553 = vpack.c.b16 %v2543, %v2542
        %v2554 = vpack.c.b16 %v2545, %v2544
        %v2555 = vpack.c.b16 %v2547, %v2546
        %2564 = vmatprep.subr.bf16.mxu0 0
        %2565 = vmatpush1.bf16.msra.mxu0 %v2555
        %2566 = vmatprep.subr.bf16.mxu0 0
        %2567 = vmatpush1.bf16.msra.mxu0 %v2554
        %2568 = vmatprep.subr.bf16.mxu0 0
        %2569 = vmatpush1.bf16.msra.mxu0 %v2553
        %2570 = vmatprep.subr.bf16.mxu0 0
        %2571 = vmatpush1.bf16.msra.mxu0 %v2552
        %2572 = vmatprep.subr.bf16.mxu0 0
        %2573 = vmatpush1.bf16.msra.mxu0 %v2551
        %2574 = vmatprep.subr.bf16.mxu0 0
        %2575 = vmatpush1.bf16.msra.mxu0 %v2550
        %2576 = vmatprep.subr.bf16.mxu0 0
        %2577 = vmatpush1.bf16.msra.mxu0 %v2549
        %2578 = vmatprep.subr.bf16.mxu0 0
        %2579 = vmatpush1.bf16.msra.mxu0 %v2548
        %2580 = vmatprep.subr.bf16.mxu0 0
        %2581 = vmatpush2.bf16.msra.mxu0 0
        %2582 = vmatprep.subr.bf16.mxu0 0
        %2583 = vmatpush2.bf16.msra.mxu0 0
        %2584 = vmatprep.subr.bf16.mxu0 0
        %2585 = vmatpush2.bf16.msra.mxu0 0
        %2586 = vmatprep.subr.bf16.mxu0 0
        %2587 = vmatpush2.bf16.msra.mxu0 0
        %2588 = vmatprep.subr.bf16.mxu0 0
        %2589 = vmatpush2.bf16.msra.mxu0 0
        %2590 = vmatprep.subr.bf16.mxu0 0
        %2591 = vmatpush2.bf16.msra.mxu0 0
        %2592 = vmatprep.subr.bf16.mxu0 0
        %2593 = vmatpush2.bf16.msra.mxu0 0
        %2594 = vmatprep.subr.bf16.mxu0 0
        %2595 = vmatpush2.bf16.msra.mxu0 0
        %2596 = vmatprep.mubr.bf16.mxu0 0
        %2597 = vmatmul.mubr.bf16.gmra.mxu0 %v2498
        %v2598 = vpop.f32.mrf.mxu0
        %v2599 = vadd.f32 0.0, %v2598
        %v2600 = vpop.f32.mrf.mxu0
        %v2601 = vpop.f32.mrf.mxu0
        %v2602 = vadd.f32 0.0, %v2601
        %v2603 = vpop.f32.mrf.mxu0
        %2604 = vmatprep.mubr.bf16.mxu0 0
        %2605 = vmatmul.mubr.bf16.gmra.mxu0 %v2499
        %v2606 = vpop.f32.mrf.mxu0
        %v2607 = vadd.f32 0.0, %v2606
        %v2608 = vpop.f32.mrf.mxu0
        %v2609 = vpop.f32.mrf.mxu0
        %v2610 = vadd.f32 0.0, %v2609
        %v2611 = vpop.f32.mrf.mxu0
        %2612 = vmatprep.mubr.bf16.mxu0 0
        %2613 = vmatmul.mubr.bf16.gmra.mxu0 %v2500
        %v2614 = vpop.f32.mrf.mxu0
        %v2615 = vadd.f32 0.0, %v2614
        %v2616 = vpop.f32.mrf.mxu0
        %v2617 = vpop.f32.mrf.mxu0
        %v2618 = vadd.f32 0.0, %v2617
        %v2619 = vpop.f32.mrf.mxu0
        %2620 = vmatprep.mubr.bf16.mxu0 0
        %2621 = vmatmul.mubr.bf16.gmra.mxu0 %v2501
        %v2622 = vpop.f32.mrf.mxu0
        %v2623 = vadd.f32 0.0, %v2622
        %v2624 = vpop.f32.mrf.mxu0
        %v2625 = vpop.f32.mrf.mxu0
        %v2626 = vadd.f32 0.0, %v2625
        %v2627 = vpop.f32.mrf.mxu0
        %2628 = vmatprep.mubr.bf16.mxu0 0
        %2629 = vmatmul.mubr.bf16.gmra.mxu0 %v2502
        %v2630 = vpop.f32.mrf.mxu0
        %v2631 = vadd.f32 0.0, %v2630
        %v2632 = vpop.f32.mrf.mxu0
        %v2633 = vpop.f32.mrf.mxu0
        %v2634 = vadd.f32 0.0, %v2633
        %v2635 = vpop.f32.mrf.mxu0
        %2636 = vmatprep.mubr.bf16.mxu0 0
        %2637 = vmatmul.mubr.bf16.gmra.mxu0 %v2503
        %v2638 = vpop.f32.mrf.mxu0
        %v2639 = vadd.f32 0.0, %v2638
        %v2640 = vpop.f32.mrf.mxu0
        %v2641 = vpop.f32.mrf.mxu0
        %v2642 = vadd.f32 0.0, %v2641
        %v2643 = vpop.f32.mrf.mxu0
        %2644 = vmatprep.mubr.bf16.mxu0 0
        %2645 = vmatmul.mubr.bf16.gmra.mxu0 %v2504
        %v2646 = vpop.f32.mrf.mxu0
        %v2647 = vadd.f32 0.0, %v2646
        %v2648 = vpop.f32.mrf.mxu0
        %v2649 = vpop.f32.mrf.mxu0
        %v2650 = vadd.f32 0.0, %v2649
        %v2651 = vpop.f32.mrf.mxu0
        %2652 = vmatprep.mubr.bf16.mxu0 0
        %2653 = vmatmul.mubr.bf16.gmra.mxu0 %v2505
        %v2654 = vpop.f32.mrf.mxu0
        %v2655 = vadd.f32 0.0, %v2654
        %v2656 = vpop.f32.mrf.mxu0
        %v2657 = vpop.f32.mrf.mxu0
        %v2658 = vadd.f32 0.0, %v2657
        %v2659 = vpop.f32.mrf.mxu0
        %2660 = vmatprep.mubr.bf16.mxu0 0
        %2661 = vmatmul.mubr.bf16.gmra.mxu0 %v2506
        %v2662 = vpop.f32.mrf.mxu0
        %v2663 = vadd.f32 0.0, %v2662
        %v2664 = vpop.f32.mrf.mxu0
        %v2665 = vpop.f32.mrf.mxu0
        %v2666 = vpop.f32.mrf.mxu0
        %2667 = vdwg.mxu0
        %v2668 = vlaneseq
        %v2669 = vand.u32 %v2668, 127
        %v2670 = vld [vmem:[%s833] sm:$0xff]
        %v2671 = vld [vmem:[%s833 + $0x8] sm:$0xff]
        %v2672 = vld [vmem:[%s833 + $0x10] sm:$0xff]
        %v2673 = vld [vmem:[%s833 + $0x18] sm:$0xff]
        %v2674 = vld [vmem:[%s833 + $0x20] sm:$0xff]
        %v2675 = vld [vmem:[%s833 + $0x28] sm:$0xff]
        %v2676 = vld [vmem:[%s833 + $0x30] sm:$0xff]
        %v2677 = vld [vmem:[%s833 + $0x38] sm:$0xff]
        %v2678 = vld [vmem:[%s833 + $0x40] sm:$0xff]
        %v2679 = vld [vmem:[%s833 + $0x48] sm:$0xff]
        %v2680 = vld [vmem:[%s833 + $0x50] sm:$0xff]
        %v2681 = vld [vmem:[%s833 + $0x58] sm:$0xff]
        %v2682 = vld [vmem:[%s833 + $0x60] sm:$0xff]
        %v2683 = vld [vmem:[%s833 + $0x68] sm:$0xff]
        %v2684 = vld [vmem:[%s833 + $0x70] sm:$0xff]
        %v2685 = vld [vmem:[%s833 + $0x78] sm:$0xff]
        %v2686 = vld [vmem:[%s833 + $0x80] sm:$0xff]
        %2687 = vset.pattern.permute.xlu0 0
        %2688 = vperm.xlu0 %2687, %v2670
        %v2689 = vpop.permute.xlu0 %2688
        %2690 = vset.pattern.permute.xlu0 0
        %2691 = vperm.xlu0 %2690, %v2671
        %v2692 = vpop.permute.xlu0 %2691
        %2693 = vset.pattern.permute.xlu0 0
        %2694 = vperm.xlu0 %2693, %v2672
        %v2695 = vpop.permute.xlu0 %2694
        %2696 = vset.pattern.permute.xlu0 0
        %2697 = vperm.xlu0 %2696, %v2673
        %v2698 = vpop.permute.xlu0 %2697
        %2699 = vset.pattern.permute.xlu0 0
        %2700 = vperm.xlu0 %2699, %v2674
        %v2701 = vpop.permute.xlu0 %2700
        %2702 = vset.pattern.permute.xlu0 0
        %2703 = vperm.xlu0 %2702, %v2675
        %v2704 = vpop.permute.xlu0 %2703
        %2705 = vset.pattern.permute.xlu0 0
        %2706 = vperm.xlu0 %2705, %v2676
        %v2707 = vpop.permute.xlu0 %2706
        %2708 = vset.pattern.permute.xlu0 0
        %2709 = vperm.xlu0 %2708, %v2677
        %v2710 = vpop.permute.xlu0 %2709
        %2711 = vset.pattern.permute.xlu0 0
        %2712 = vperm.xlu0 %2711, %v2678
        %v2713 = vpop.permute.xlu0 %2712
        %2714 = vset.pattern.permute.xlu0 0
        %2715 = vperm.xlu0 %2714, %v2679
        %v2716 = vpop.permute.xlu0 %2715
        %2717 = vset.pattern.permute.xlu0 0
        %2718 = vperm.xlu0 %2717, %v2680
        %v2719 = vpop.permute.xlu0 %2718
        %2720 = vset.pattern.permute.xlu0 0
        %2721 = vperm.xlu0 %2720, %v2681
        %v2722 = vpop.permute.xlu0 %2721
        %2723 = vset.pattern.permute.xlu0 0
        %2724 = vperm.xlu0 %2723, %v2682
        %v2725 = vpop.permute.xlu0 %2724
        %2726 = vset.pattern.permute.xlu0 0
        %2727 = vperm.xlu0 %2726, %v2683
        %v2728 = vpop.permute.xlu0 %2727
        %2729 = vset.pattern.permute.xlu0 0
        %2730 = vperm.xlu0 %2729, %v2684
        %v2731 = vpop.permute.xlu0 %2730
        %2732 = vset.pattern.permute.xlu0 0
        %2733 = vperm.xlu0 %2732, %v2685
        %v2734 = vpop.permute.xlu0 %2733
        %2735 = vset.pattern.permute.xlu0 0
        %2736 = vperm.xlu0 %2735, %v2686
        %v2737 = vpop.permute.xlu0 %2736
        %vm2738 = vcmp.eq.s32.totalorder %v2669, %v2689
        %vm2739 = vcmp.eq.s32.totalorder %v2669, %v2692
        %vm2740 = vcmp.eq.s32.totalorder %v2669, %v2695
        %vm2741 = vcmp.eq.s32.totalorder %v2669, %v2698
        %vm2742 = vcmp.eq.s32.totalorder %v2669, %v2701
        %vm2743 = vcmp.eq.s32.totalorder %v2669, %v2704
        %vm2744 = vcmp.eq.s32.totalorder %v2669, %v2707
        %vm2745 = vcmp.eq.s32.totalorder %v2669, %v2710
        %vm2746 = vcmp.eq.s32.totalorder %v2669, %v2713
        %vm2747 = vcmp.eq.s32.totalorder %v2669, %v2716
        %vm2748 = vcmp.eq.s32.totalorder %v2669, %v2719
        %vm2749 = vcmp.eq.s32.totalorder %v2669, %v2722
        %vm2750 = vcmp.eq.s32.totalorder %v2669, %v2725
        %vm2751 = vcmp.eq.s32.totalorder %v2669, %v2728
        %vm2752 = vcmp.eq.s32.totalorder %v2669, %v2731
        %vm2753 = vcmp.eq.s32.totalorder %v2669, %v2734
        %vm2754 = vcmp.eq.s32.totalorder %v2669, %v2737
        %v2755 = vsel %vm2738, 1, 0
        %v2756 = vsel %vm2739, 1, 0
        %v2757 = vsel %vm2740, 1, 0
        %v2758 = vsel %vm2741, 1, 0
        %v2759 = vsel %vm2742, 1, 0
        %v2760 = vsel %vm2743, 1, 0
        %v2761 = vsel %vm2744, 1, 0
        %v2762 = vsel %vm2745, 1, 0
        %v2763 = vsel %vm2746, 1, 0
        %v2764 = vsel %vm2747, 1, 0
        %v2765 = vsel %vm2748, 1, 0
        %v2766 = vsel %vm2749, 1, 0
        %v2767 = vsel %vm2750, 1, 0
        %v2768 = vsel %vm2751, 1, 0
        %v2769 = vsel %vm2752, 1, 0
        %v2770 = vsel %vm2753, 1, 0
        %v2771 = vsel %vm2754, 1, 0
        %v2772 = vcvt.s32.f32 %v2755
        %v2773 = vcvt.s32.f32 %v2756
        %v2774 = vcvt.s32.f32 %v2757
        %v2775 = vcvt.s32.f32 %v2758
        %v2776 = vcvt.s32.f32 %v2759
        %v2777 = vcvt.s32.f32 %v2760
        %v2778 = vcvt.s32.f32 %v2761
        %v2779 = vcvt.s32.f32 %v2762
        %v2780 = vcvt.s32.f32 %v2763
        %v2781 = vcvt.s32.f32 %v2764
        %v2782 = vcvt.s32.f32 %v2765
        %v2783 = vcvt.s32.f32 %v2766
        %v2784 = vcvt.s32.f32 %v2767
        %v2785 = vcvt.s32.f32 %v2768
        %v2786 = vcvt.s32.f32 %v2769
        %v2787 = vcvt.s32.f32 %v2770
        %v2788 = vcvt.s32.f32 %v2771
        %v2789 = vpack.c.bf16 %v2773, %v2772
        %v2790 = vpack.c.bf16 %v2775, %v2774
        %v2791 = vpack.c.bf16 %v2777, %v2776
        %v2792 = vpack.c.bf16 %v2779, %v2778
        %v2793 = vpack.c.bf16 %v2781, %v2780
        %v2794 = vpack.c.bf16 %v2783, %v2782
        %v2795 = vpack.c.bf16 %v2785, %v2784
        %v2796 = vpack.c.bf16 %v2787, %v2786
        %v2797 = vpack.c.bf16 %v2788, %v2788
        %v2798 = vpack.c.bf16 %v2430, %v2429
        %vm2799 = vcmask 130048
        %v2801 = vsel %vm2799, %v2789, 0
        %v2804 = vsel %vm2799, %v2790, 0
        %v2807 = vsel %vm2799, %v2791, 0
        %v2810 = vsel %vm2799, %v2792, 0
        %v2813 = vsel %vm2799, %v2793, 0
        %v2816 = vsel %vm2799, %v2794, 0
        %v2819 = vsel %vm2799, %v2795, 0
        %v2822 = vsel %vm2799, %v2796, 0
        %v2825 = vsel %vm2799, %v2797, 0
        %2827 = vmatprep.subr.bf16.mxu0 0
        %2828 = vmatpush1.bf16.msra.mxu0 0
        %2829 = vmatprep.subr.bf16.mxu0 0
        %2830 = vmatpush1.bf16.msra.mxu0 0
        %2831 = vmatprep.subr.bf16.mxu0 0
        %2832 = vmatpush1.bf16.msra.mxu0 0
        %2833 = vmatprep.subr.bf16.mxu0 0
        %2834 = vmatpush1.bf16.msra.mxu0 0
        %2835 = vmatprep.subr.bf16.mxu0 0
        %2836 = vmatpush1.bf16.msra.mxu0 0
        %2837 = vmatprep.subr.bf16.mxu0 0
        %2838 = vmatpush1.bf16.msra.mxu0 0
        %2839 = vmatprep.subr.bf16.mxu0 0
        %2840 = vmatpush1.bf16.msra.mxu0 0
        %2841 = vmatprep.subr.bf16.mxu0 0
        %2842 = vmatpush1.bf16.msra.mxu0 %v2798
        %2843 = vmatprep.subr.bf16.mxu0 0
        %2844 = vmatpush2.bf16.msra.mxu0 0
        %2845 = vmatprep.subr.bf16.mxu0 0
        %2846 = vmatpush2.bf16.msra.mxu0 0
        %2847 = vmatprep.subr.bf16.mxu0 0
        %2848 = vmatpush2.bf16.msra.mxu0 0
        %2849 = vmatprep.subr.bf16.mxu0 0
        %2850 = vmatpush2.bf16.msra.mxu0 0
        %2851 = vmatprep.subr.bf16.mxu0 0
        %2852 = vmatpush2.bf16.msra.mxu0 0
        %2853 = vmatprep.subr.bf16.mxu0 0
        %2854 = vmatpush2.bf16.msra.mxu0 0
        %2855 = vmatprep.subr.bf16.mxu0 0
        %2856 = vmatpush2.bf16.msra.mxu0 0
        %2857 = vmatprep.subr.bf16.mxu0 0
        %2858 = vmatpush2.bf16.msra.mxu0 0
        %2859 = vmatprep.mubr.bf16.mxu0 0
        %2860 = vmatmul.mubr.bf16.gmra.mxu0 %v2801
        %v2861 = vpop.f32.mrf.mxu0
        %v2862 = vadd.f32 0.0, %v2861
        %v2863 = vpop.f32.mrf.mxu0
        %v2864 = vpop.f32.mrf.mxu0
        %v2865 = vadd.f32 0.0, %v2864
        %v2866 = vpop.f32.mrf.mxu0
        %2867 = vmatprep.mubr.bf16.mxu0 0
        %2868 = vmatmul.mubr.bf16.gmra.mxu0 %v2804
        %v2869 = vpop.f32.mrf.mxu0
        %v2870 = vadd.f32 0.0, %v2869
        %v2871 = vpop.f32.mrf.mxu0
        %v2872 = vpop.f32.mrf.mxu0
        %v2873 = vadd.f32 0.0, %v2872
        %v2874 = vpop.f32.mrf.mxu0
        %2875 = vmatprep.mubr.bf16.mxu0 0
        %2876 = vmatmul.mubr.bf16.gmra.mxu0 %v2807
        %v2877 = vpop.f32.mrf.mxu0
        %v2878 = vadd.f32 0.0, %v2877
        %v2879 = vpop.f32.mrf.mxu0
        %v2880 = vpop.f32.mrf.mxu0
        %v2881 = vadd.f32 0.0, %v2880
        %v2882 = vpop.f32.mrf.mxu0
        %2883 = vmatprep.mubr.bf16.mxu0 0
        %2884 = vmatmul.mubr.bf16.gmra.mxu0 %v2810
        %v2885 = vpop.f32.mrf.mxu0
        %v2886 = vadd.f32 0.0, %v2885
        %v2887 = vpop.f32.mrf.mxu0
        %v2888 = vpop.f32.mrf.mxu0
        %v2889 = vadd.f32 0.0, %v2888
        %v2890 = vpop.f32.mrf.mxu0
        %2891 = vmatprep.mubr.bf16.mxu0 0
        %2892 = vmatmul.mubr.bf16.gmra.mxu0 %v2813
        %v2893 = vpop.f32.mrf.mxu0
        %v2894 = vadd.f32 0.0, %v2893
        %v2895 = vpop.f32.mrf.mxu0
        %v2896 = vpop.f32.mrf.mxu0
        %v2897 = vadd.f32 0.0, %v2896
        %v2898 = vpop.f32.mrf.mxu0
        %2899 = vmatprep.mubr.bf16.mxu0 0
        %2900 = vmatmul.mubr.bf16.gmra.mxu0 %v2816
        %v2901 = vpop.f32.mrf.mxu0
        %v2902 = vadd.f32 0.0, %v2901
        %v2903 = vpop.f32.mrf.mxu0
        %v2904 = vpop.f32.mrf.mxu0
        %v2905 = vadd.f32 0.0, %v2904
        %v2906 = vpop.f32.mrf.mxu0
        %2907 = vmatprep.mubr.bf16.mxu0 0
        %2908 = vmatmul.mubr.bf16.gmra.mxu0 %v2819
        %v2909 = vpop.f32.mrf.mxu0
        %v2910 = vadd.f32 0.0, %v2909
        %v2911 = vpop.f32.mrf.mxu0
        %v2912 = vpop.f32.mrf.mxu0
        %v2913 = vadd.f32 0.0, %v2912
        %v2914 = vpop.f32.mrf.mxu0
        %2915 = vmatprep.mubr.bf16.mxu0 0
        %2916 = vmatmul.mubr.bf16.gmra.mxu0 %v2822
        %v2917 = vpop.f32.mrf.mxu0
        %v2918 = vadd.f32 0.0, %v2917
        %v2919 = vpop.f32.mrf.mxu0
        %v2920 = vpop.f32.mrf.mxu0
        %v2921 = vadd.f32 0.0, %v2920
        %v2922 = vpop.f32.mrf.mxu0
        %2923 = vmatprep.mubr.bf16.mxu0 0
        %2924 = vmatmul.mubr.bf16.gmra.mxu0 %v2825
        %v2925 = vpop.f32.mrf.mxu0
        %v2926 = vadd.f32 0.0, %v2925
        %v2927 = vpop.f32.mrf.mxu0
        %v2928 = vpop.f32.mrf.mxu0
        %v2929 = vpop.f32.mrf.mxu0
        %2930 = vdwg.mxu0
        %v2931 = vmul.f32 %v2599, %v2862
        %v2932 = vmul.f32 %v2602, %v2865
        %v2933 = vmul.f32 %v2607, %v2870
        %v2934 = vmul.f32 %v2610, %v2873
        %v2935 = vmul.f32 %v2615, %v2878
        %v2936 = vmul.f32 %v2618, %v2881
        %v2937 = vmul.f32 %v2623, %v2886
        %v2938 = vmul.f32 %v2626, %v2889
        %v2939 = vmul.f32 %v2631, %v2894
        %v2940 = vmul.f32 %v2634, %v2897
        %v2941 = vmul.f32 %v2639, %v2902
        %v2942 = vmul.f32 %v2642, %v2905
        %v2943 = vmul.f32 %v2647, %v2910
        %v2944 = vmul.f32 %v2650, %v2913
        %v2945 = vmul.f32 %v2655, %v2918
        %v2946 = vmul.f32 %v2658, %v2921
        %v2947 = vmul.f32 %v2663, %v2926
        %v2948 = vlaneseq
        %v2949 = vshrl.u32 %v2948, 7
        %v2950 = vadd.s32 %v2949, 8
        %v2951 = vld [vmem:[%s837] sm:$0x3]
        %v2952 = vlaneseq
        %v2953 = vshrl.u32 %v2952, 7
        %v2954 = vsub.s32 0, %v2953
        %v2955 = vrot.slane %v2951, %v2954
        %v2956 = vlaneseq
        %v2957 = vshrl.u32 %v2956, 7
        %v2958 = vsub.s32 1, %v2957
        %v2959 = vrot.slane %v2951, %v2958
        %vm2960 = vcmp.eq.s32.totalorder %v2949, %v2955
        %vm2961 = vcmp.eq.s32.totalorder %v2949, %v2959
        %vm2962 = vcmp.eq.s32.totalorder %v2950, %v2955
        %vm2963 = vcmp.eq.s32.totalorder %v2950, %v2959
        %v2964 = vsel %vm2960, 1, 0
        %v2965 = vsel %vm2961, 1, 0
        %v2966 = vsel %vm2962, 1, 0
        %v2967 = vsel %vm2963, 1, 0
        %v2968 = vcvt.s32.f32 %v2964
        %v2969 = vcvt.s32.f32 %v2965
        %v2970 = vcvt.s32.f32 %v2966
        %v2971 = vcvt.s32.f32 %v2967
        %v2972 = vpack.c.bf16 %v2970, %v2968
        %v2973 = vpack.c.bf16 %v2971, %v2969
        %v2974 = vpack.c.bf16 %v2932, %v2931
        %v2975 = vpack.c.bf16 %v2934, %v2933
        %v2976 = vpack.c.bf16 %v2936, %v2935
        %v2977 = vpack.c.bf16 %v2938, %v2937
        %v2978 = vpack.c.bf16 %v2940, %v2939
        %v2979 = vpack.c.bf16 %v2942, %v2941
        %v2980 = vpack.c.bf16 %v2944, %v2943
        %v2981 = vpack.c.bf16 %v2946, %v2945
        %v2982 = vpack.c.bf16 %v2947, %v2947
        %v2983 = vld [vmem:[%s850] sm:$0x1]
        %v2985 = vlaneseq
        %v2986 = vshrl.u32 %v2985, 7
        %v2987 = vsub.s32 0, %v2986
        %v2988 = vrot.slane %v2983, %v2987
        %vm2990 = vcmask 64512
        %v2992 = vsel %vm2990, %v2973, 0
        %vm2994 = vcmask 1043456
        %v2996 = vsel %vm2994, %v2982, 0
        %2998 = vmatprep.subr.bf16.mxu0 0
        %2999 = vmatpush1.bf16.msra.mxu0 %v2981
        %3000 = vmatprep.subr.bf16.mxu0 0
        %3001 = vmatpush1.bf16.msra.mxu0 %v2980
        %3002 = vmatprep.subr.bf16.mxu0 0
        %3003 = vmatpush1.bf16.msra.mxu0 %v2979
        %3004 = vmatprep.subr.bf16.mxu0 0
        %3005 = vmatpush1.bf16.msra.mxu0 %v2978
        %3006 = vmatprep.subr.bf16.mxu0 0
        %3007 = vmatpush1.bf16.msra.mxu0 %v2977
        %3008 = vmatprep.subr.bf16.mxu0 0
        %3009 = vmatpush1.bf16.msra.mxu0 %v2976
        %3010 = vmatprep.subr.bf16.mxu0 0
        %3011 = vmatpush1.bf16.msra.mxu0 %v2975
        %3012 = vmatprep.subr.bf16.mxu0 0
        %3013 = vmatpush1.bf16.msra.mxu0 %v2974
        %3014 = vmatprep.subr.bf16.mxu0 0
        %3015 = vmatpush2.bf16.msra.mxu0 0
        %3016 = vmatprep.subr.bf16.mxu0 0
        %3017 = vmatpush2.bf16.msra.mxu0 0
        %3018 = vmatprep.subr.bf16.mxu0 0
        %3019 = vmatpush2.bf16.msra.mxu0 0
        %3020 = vmatprep.subr.bf16.mxu0 0
        %3021 = vmatpush2.bf16.msra.mxu0 0
        %3022 = vmatprep.subr.bf16.mxu0 0
        %3023 = vmatpush2.bf16.msra.mxu0 0
        %3024 = vmatprep.subr.bf16.mxu0 0
        %3025 = vmatpush2.bf16.msra.mxu0 0
        %3026 = vmatprep.subr.bf16.mxu0 0
        %3027 = vmatpush2.bf16.msra.mxu0 0
        %3028 = vmatprep.subr.bf16.mxu0 0
        %3029 = vmatpush2.bf16.msra.mxu0 %v2996
        %3030 = vmatprep.mubr.bf16.mxu0 %v2992
        %3031 = vmatmul.mubr.bf16.gmra.mxu0 %v2972
        %v3032 = vpop.f32.mrf.mxu0
        %v3033 = vadd.f32 %v2988, %v3032
        %v3034 = vpop.f32.mrf.mxu0
        %v3035 = vpop.f32.mrf.mxu0
        %v3036 = vadd.f32 %v2988, %v3035
        %v3037 = vpop.f32.mrf.mxu0
        %3038 = vdwg.mxu0
        %vm3039 = vcmp.lt.s32.totalorder %v2669, 32
        %v3040 = vsel %vm3039, 1, 0
        %v3041 = vcvt.s32.f32 %v3040
        %3042 = vadd.xlane.f32.xlu0 %v3033
        %v3043 = vpop.xlane.xlu0 %3042
        %3044 = vadd.xlane.f32.xlu0 %v3036
        %v3045 = vpop.xlane.xlu0 %3044
        %v3046 = vmul.f32 %v3043, 0.03125
        %v3047 = vmul.f32 %v3045, 0.03125
        %v3048 = vsub.f32 %v3033, %v3046
        %v3049 = vsub.f32 %v3036, %v3047
        %v3050 = vmul.f32 %v3048, %v3048
        %v3051 = vmul.f32 %v3049, %v3049
        %v3052 = vmul.f32 %v3050, %v3041
        %v3053 = vmul.f32 %v3051, %v3041
        %3054 = vadd.xlane.f32.xlu0 %v3052
        %v3055 = vpop.xlane.xlu0 %3054
        %3056 = vadd.xlane.f32.xlu0 %v3053
        %v3057 = vpop.xlane.xlu0 %3056
        %v3058 = vmul.f32 %v3055, 0.03125
        %v3059 = vmul.f32 %v3057, 0.03125
        %v3060 = vadd.f32 %v3058, 1e-05
        %v3061 = vadd.f32 %v3059, 1e-05
        %v3062 = vrsqrt.pop %v3060
        %v3063 = vrsqrt.pop %v3061
        %v3064 = vmul.f32 %v3048, %v3062
        %v3065 = vmul.f32 %v3049, %v3063
        %v3066 = vld [vmem:[%s853] sm:$0x1]
        %v3068 = vlaneseq
        %v3069 = vshrl.u32 %v3068, 7
        %v3070 = vsub.s32 0, %v3069
        %v3071 = vrot.slane %v3066, %v3070
        %v3073 = vmul.f32 %v3064, %v3071
        %v3074 = vmul.f32 %v3065, %v3071
        %v3075 = vld [vmem:[%s856] sm:$0x1]
        %v3077 = vlaneseq
        %v3078 = vshrl.u32 %v3077, 7
        %v3079 = vsub.s32 0, %v3078
        %v3080 = vrot.slane %v3075, %v3079
        %v3082 = vadd.f32 %v3073, %v3080
        %v3083 = vadd.f32 %v3074, %v3080
        %v3084 = vpack.c.bf16 %v3083, %v3082
        %v3085 = vld [vmem:[%s861] sm:$0xf]
        %v3086 = vld [vmem:[%s861 + $0x4] sm:$0xf]
        %v3087 = vld [vmem:[%s861 + $0x8] sm:$0xf]
        %v3088 = vld [vmem:[%s861 + $0xc] sm:$0xf]
        %v3089 = vld [vmem:[%s861 + $0x10] sm:$0xf]
        %v3090 = vld [vmem:[%s861 + $0x14] sm:$0xf]
        %v3091 = vld [vmem:[%s861 + $0x18] sm:$0xf]
        %v3092 = vld [vmem:[%s861 + $0x1c] sm:$0xf]
        %v3093 = vld [vmem:[%s861 + $0x20] sm:$0xf]
        %v3094 = vld [vmem:[%s861 + $0x24] sm:$0xf]
        %v3095 = vld [vmem:[%s861 + $0x28] sm:$0xf]
        %v3096 = vld [vmem:[%s861 + $0x2c] sm:$0xf]
        %v3097 = vld [vmem:[%s861 + $0x30] sm:$0xf]
        %v3098 = vld [vmem:[%s861 + $0x34] sm:$0xf]
        %v3099 = vld [vmem:[%s861 + $0x38] sm:$0xf]
        %v3100 = vld [vmem:[%s861 + $0x3c] sm:$0xf]
        %v3101 = vld [vmem:[%s864] sm:$0x1]
        %v3103 = vlaneseq
        %v3104 = vshrl.u32 %v3103, 7
        %v3105 = vsub.s32 0, %v3104
        %v3106 = vrot.slane %v3101, %v3105
        %v3124 = vunpack.c.l.b16 %v3085
        %v3125 = vunpack.c.l.b16 %v3086
        %v3126 = vunpack.c.l.b16 %v3087
        %v3127 = vunpack.c.l.b16 %v3088
        %v3128 = vunpack.c.l.b16 %v3089
        %v3129 = vunpack.c.l.b16 %v3090
        %v3130 = vunpack.c.l.b16 %v3091
        %v3131 = vunpack.c.l.b16 %v3092
        %v3132 = vunpack.c.l.b16 %v3093
        %v3133 = vunpack.c.l.b16 %v3094
        %v3134 = vunpack.c.l.b16 %v3095
        %v3135 = vunpack.c.l.b16 %v3096
        %v3136 = vunpack.c.l.b16 %v3097
        %v3137 = vunpack.c.l.b16 %v3098
        %v3138 = vunpack.c.l.b16 %v3099
        %v3139 = vunpack.c.l.b16 %v3100
        %v3140 = vpack.c.b16 %v3125, %v3124
        %v3141 = vpack.c.b16 %v3127, %v3126
        %v3142 = vpack.c.b16 %v3129, %v3128
        %v3143 = vpack.c.b16 %v3131, %v3130
        %v3144 = vpack.c.b16 %v3133, %v3132
        %v3145 = vpack.c.b16 %v3135, %v3134
        %v3146 = vpack.c.b16 %v3137, %v3136
        %v3147 = vpack.c.b16 %v3139, %v3138
        %3156 = vmatprep.subr.bf16.mxu0 0
        %3157 = vmatpush1.bf16.msra.mxu0 %v3147
        %3158 = vmatprep.subr.bf16.mxu0 0
        %3159 = vmatpush1.bf16.msra.mxu0 %v3146
        %3160 = vmatprep.subr.bf16.mxu0 0
        %3161 = vmatpush1.bf16.msra.mxu0 %v3145
        %3162 = vmatprep.subr.bf16.mxu0 0
        %3163 = vmatpush1.bf16.msra.mxu0 %v3144
        %3164 = vmatprep.subr.bf16.mxu0 0
        %3165 = vmatpush1.bf16.msra.mxu0 %v3143
        %3166 = vmatprep.subr.bf16.mxu0 0
        %3167 = vmatpush1.bf16.msra.mxu0 %v3142
        %3168 = vmatprep.subr.bf16.mxu0 0
        %3169 = vmatpush1.bf16.msra.mxu0 %v3141
        %3170 = vmatprep.subr.bf16.mxu0 0
        %3171 = vmatpush1.bf16.msra.mxu0 %v3140
        %3172 = vmatprep.subr.bf16.mxu0 0
        %3173 = vmatpush2.bf16.msra.mxu0 0
        %3174 = vmatprep.subr.bf16.mxu0 0
        %3175 = vmatpush2.bf16.msra.mxu0 0
        %3176 = vmatprep.subr.bf16.mxu0 0
        %3177 = vmatpush2.bf16.msra.mxu0 0
        %3178 = vmatprep.subr.bf16.mxu0 0
        %3179 = vmatpush2.bf16.msra.mxu0 0
        %3180 = vmatprep.subr.bf16.mxu0 0
        %3181 = vmatpush2.bf16.msra.mxu0 0
        %3182 = vmatprep.subr.bf16.mxu0 0
        %3183 = vmatpush2.bf16.msra.mxu0 0
        %3184 = vmatprep.subr.bf16.mxu0 0
        %3185 = vmatpush2.bf16.msra.mxu0 0
        %3186 = vmatprep.subr.bf16.mxu0 0
        %3187 = vmatpush2.bf16.msra.mxu0 0
        %3188 = vmatprep.mubr.bf16.mxu0 0
        %3189 = vmatmul.mubr.bf16.gmra.mxu0 %v3084
        %v3190 = vpop.f32.mrf.mxu0
        %v3191 = vadd.f32 %v3106, %v3190
        %v3192 = vpop.f32.mrf.mxu0
        %v3193 = vpop.f32.mrf.mxu0
        %v3194 = vadd.f32 %v3106, %v3193
        %v3195 = vpop.f32.mrf.mxu0
        %3196 = vdwg.mxu0
        %v3197 = vmul.f32 %v3191, 0.5
        %v3198 = vmul.f32 %v3194, 0.5
        %v3199 = vmul.f32 %v3191, 0.044715
        %v3200 = vmul.f32 %v3194, 0.044715
        %v3201 = vmul.f32 %v3199, %v3191
        %v3202 = vmul.f32 %v3200, %v3194
        %v3203 = vmul.f32 %v3201, %v3191
        %v3204 = vmul.f32 %v3202, %v3194
        %v3205 = vadd.f32 %v3191, %v3203
        %v3206 = vadd.f32 %v3194, %v3204
        %v3207 = vmul.f32 %v3205, 0.7978846
        %v3208 = vmul.f32 %v3206, 0.7978846
        %v3209 = vtanh.pop %v3207
        %v3210 = vtanh.pop %v3208
        %v3211 = vadd.f32 %v3209, 1.0
        %v3212 = vadd.f32 %v3210, 1.0
        %v3213 = vmul.f32 %v3197, %v3211
        %v3214 = vmul.f32 %v3198, %v3212
        %v3215 = vpack.c.bf16 %v3214, %v3213
        %v3216 = vld [vmem:[%s869] sm:$0xf]
        %v3217 = vld [vmem:[%s869 + $0x4] sm:$0xf]
        %v3218 = vld [vmem:[%s869 + $0x8] sm:$0xf]
        %v3219 = vld [vmem:[%s869 + $0xc] sm:$0xf]
        %v3220 = vld [vmem:[%s869 + $0x10] sm:$0xf]
        %v3221 = vld [vmem:[%s869 + $0x14] sm:$0xf]
        %v3222 = vld [vmem:[%s869 + $0x18] sm:$0xf]
        %v3223 = vld [vmem:[%s869 + $0x1c] sm:$0xf]
        %v3224 = vld [vmem:[%s869 + $0x20] sm:$0xf]
        %v3225 = vld [vmem:[%s869 + $0x24] sm:$0xf]
        %v3226 = vld [vmem:[%s869 + $0x28] sm:$0xf]
        %v3227 = vld [vmem:[%s869 + $0x2c] sm:$0xf]
        %v3228 = vld [vmem:[%s869 + $0x30] sm:$0xf]
        %v3229 = vld [vmem:[%s869 + $0x34] sm:$0xf]
        %v3230 = vld [vmem:[%s869 + $0x38] sm:$0xf]
        %v3231 = vld [vmem:[%s869 + $0x3c] sm:$0xf]
        %v3232 = vld [vmem:[%s872] sm:$0x1]
        %v3234 = vlaneseq
        %v3235 = vshrl.u32 %v3234, 7
        %v3236 = vsub.s32 0, %v3235
        %v3237 = vrot.slane %v3232, %v3236
        %v3255 = vunpack.c.l.b16 %v3216
        %v3256 = vunpack.c.l.b16 %v3217
        %v3257 = vunpack.c.l.b16 %v3218
        %v3258 = vunpack.c.l.b16 %v3219
        %v3259 = vunpack.c.l.b16 %v3220
        %v3260 = vunpack.c.l.b16 %v3221
        %v3261 = vunpack.c.l.b16 %v3222
        %v3262 = vunpack.c.l.b16 %v3223
        %v3263 = vunpack.c.l.b16 %v3224
        %v3264 = vunpack.c.l.b16 %v3225
        %v3265 = vunpack.c.l.b16 %v3226
        %v3266 = vunpack.c.l.b16 %v3227
        %v3267 = vunpack.c.l.b16 %v3228
        %v3268 = vunpack.c.l.b16 %v3229
        %v3269 = vunpack.c.l.b16 %v3230
        %v3270 = vunpack.c.l.b16 %v3231
        %v3271 = vpack.c.b16 %v3256, %v3255
        %v3272 = vpack.c.b16 %v3258, %v3257
        %v3273 = vpack.c.b16 %v3260, %v3259
        %v3274 = vpack.c.b16 %v3262, %v3261
        %v3275 = vpack.c.b16 %v3264, %v3263
        %v3276 = vpack.c.b16 %v3266, %v3265
        %v3277 = vpack.c.b16 %v3268, %v3267
        %v3278 = vpack.c.b16 %v3270, %v3269
        %3287 = vmatprep.subr.bf16.mxu0 0
        %3288 = vmatpush1.bf16.msra.mxu0 %v3278
        %3289 = vmatprep.subr.bf16.mxu0 0
        %3290 = vmatpush1.bf16.msra.mxu0 %v3277
        %3291 = vmatprep.subr.bf16.mxu0 0
        %3292 = vmatpush1.bf16.msra.mxu0 %v3276
        %3293 = vmatprep.subr.bf16.mxu0 0
        %3294 = vmatpush1.bf16.msra.mxu0 %v3275
        %3295 = vmatprep.subr.bf16.mxu0 0
        %3296 = vmatpush1.bf16.msra.mxu0 %v3274
        %3297 = vmatprep.subr.bf16.mxu0 0
        %3298 = vmatpush1.bf16.msra.mxu0 %v3273
        %3299 = vmatprep.subr.bf16.mxu0 0
        %3300 = vmatpush1.bf16.msra.mxu0 %v3272
        %3301 = vmatprep.subr.bf16.mxu0 0
        %3302 = vmatpush1.bf16.msra.mxu0 %v3271
        %3303 = vmatprep.subr.bf16.mxu0 0
        %3304 = vmatpush2.bf16.msra.mxu0 0
        %3305 = vmatprep.subr.bf16.mxu0 0
        %3306 = vmatpush2.bf16.msra.mxu0 0
        %3307 = vmatprep.subr.bf16.mxu0 0
        %3308 = vmatpush2.bf16.msra.mxu0 0
        %3309 = vmatprep.subr.bf16.mxu0 0
        %3310 = vmatpush2.bf16.msra.mxu0 0
        %3311 = vmatprep.subr.bf16.mxu0 0
        %3312 = vmatpush2.bf16.msra.mxu0 0
        %3313 = vmatprep.subr.bf16.mxu0 0
        %3314 = vmatpush2.bf16.msra.mxu0 0
        %3315 = vmatprep.subr.bf16.mxu0 0
        %3316 = vmatpush2.bf16.msra.mxu0 0
        %3317 = vmatprep.subr.bf16.mxu0 0
        %3318 = vmatpush2.bf16.msra.mxu0 0
        %3319 = vmatprep.mubr.bf16.mxu0 0
        %3320 = vmatmul.mubr.bf16.gmra.mxu0 %v3215
        %v3321 = vpop.f32.mrf.mxu0
        %v3322 = vadd.f32 %v3237, %v3321
        %v3323 = vpop.f32.mrf.mxu0
        %v3324 = vpop.f32.mrf.mxu0
        %v3325 = vadd.f32 %v3237, %v3324
        %v3326 = vpop.f32.mrf.mxu0
        %3327 = vdwg.mxu0
        %v3328 = vadd.f32 %v2429, %v3322
        %v3329 = vadd.f32 %v2430, %v3325
        %3330 = vst [vmem:[#allocation2] sm:$0xff] %v3328
        %3331 = vst [vmem:[#allocation2 + $0x8] sm:$0xff] %v3329
        %v3332 = vld [vmem:[%s842] sm:$0xff]
        %v3333 = vld [vmem:[%s842 + $0x8] sm:$0xff]
        %3335 = vset.pattern.permute.xlu0 0
        %3336 = vperm.xlu0 %3335, %v3332
        %v3337 = vpop.permute.xlu0 %3336
        %3340 = vset.pattern.permute.xlu0 0
        %3341 = vperm.xlu0 %3340, %v3333
        %v3342 = vpop.permute.xlu0 %3341
        %v3344 = vmul.f32 %v3328, %v3337
        %v3345 = vmul.f32 %v3329, %v3342
        %v3346 = vadd.f32 %v3344, %v3345
        %v3347 = vrot.slane %v3346, 4
        %v3348 = vadd.f32 %v3346, %v3347
        %v3349 = vrot.slane %v3348, 2
        %v3350 = vadd.f32 %v3348, %v3349
        %v3351 = vrot.slane %v3350, 1
        %v3352 = vadd.f32 %v3350, %v3351
        %v3353 = vadd.f32 %v3352, 0.0
        %vm3354 = vcmask 7168
        %v3355 = vsel %vm3354, %v3332, 0.0
        %v3356 = vsel %vm3354, %v3333, 0.0
        %v3357 = vadd.f32 %v3355, %v3356
        %v3358 = vrot.slane %v3357, 4
        %v3359 = vadd.f32 %v3357, %v3358
        %v3360 = vrot.slane %v3359, 2
        %v3361 = vadd.f32 %v3359, %v3360
        %v3362 = vrot.slane %v3361, 1
        %v3363 = vadd.f32 %v3361, %v3362
        %v3364 = vpack.c.bf16 %v3353, %v3353
        %v3365 = vld [vmem:[%s877] sm:$0xf]
        %v3366 = vld [vmem:[%s877 + $0x4] sm:$0xf]
        %v3367 = vld [vmem:[%s877 + $0x8] sm:$0xf]
        %v3368 = vld [vmem:[%s877 + $0xc] sm:$0xf]
        %v3369 = vld [vmem:[%s877 + $0x10] sm:$0xf]
        %v3370 = vld [vmem:[%s877 + $0x14] sm:$0xf]
        %v3371 = vld [vmem:[%s877 + $0x18] sm:$0xf]
        %v3372 = vld [vmem:[%s877 + $0x1c] sm:$0xf]
        %v3373 = vld [vmem:[%s877 + $0x20] sm:$0xf]
        %v3374 = vld [vmem:[%s877 + $0x24] sm:$0xf]
        %v3375 = vld [vmem:[%s877 + $0x28] sm:$0xf]
        %v3376 = vld [vmem:[%s877 + $0x2c] sm:$0xf]
        %v3377 = vld [vmem:[%s877 + $0x30] sm:$0xf]
        %v3378 = vld [vmem:[%s877 + $0x34] sm:$0xf]
        %v3379 = vld [vmem:[%s877 + $0x38] sm:$0xf]
        %v3380 = vld [vmem:[%s877 + $0x3c] sm:$0xf]
        %v3381 = vld [vmem:[%s880] sm:$0x1]
        %3383 = vset.pattern.permute.xlu0 0
        %3384 = vperm.xlu0 %3383, %v3363
        %v3385 = vpop.permute.xlu0 %3384
        %v3387 = vmul.f32 %v3385, %v3381
        %v3389 = vlaneseq
        %v3390 = vshrl.u32 %v3389, 7
        %v3391 = vsub.s32 0, %v3390
        %v3392 = vrot.slane %v3387, %v3391
        %v3410 = vunpack.c.l.b16 %v3365
        %v3411 = vunpack.c.l.b16 %v3366
        %v3412 = vunpack.c.l.b16 %v3367
        %v3413 = vunpack.c.l.b16 %v3368
        %v3414 = vunpack.c.l.b16 %v3369
        %v3415 = vunpack.c.l.b16 %v3370
        %v3416 = vunpack.c.l.b16 %v3371
        %v3417 = vunpack.c.l.b16 %v3372
        %v3418 = vunpack.c.l.b16 %v3373
        %v3419 = vunpack.c.l.b16 %v3374
        %v3420 = vunpack.c.l.b16 %v3375
        %v3421 = vunpack.c.l.b16 %v3376
        %v3422 = vunpack.c.l.b16 %v3377
        %v3423 = vunpack.c.l.b16 %v3378
        %v3424 = vunpack.c.l.b16 %v3379
        %v3425 = vunpack.c.l.b16 %v3380
        %v3426 = vpack.c.b16 %v3411, %v3410
        %v3427 = vpack.c.b16 %v3413, %v3412
        %v3428 = vpack.c.b16 %v3415, %v3414
        %v3429 = vpack.c.b16 %v3417, %v3416
        %v3430 = vpack.c.b16 %v3419, %v3418
        %v3431 = vpack.c.b16 %v3421, %v3420
        %v3432 = vpack.c.b16 %v3423, %v3422
        %v3433 = vpack.c.b16 %v3425, %v3424
        %3442 = vmatprep.subr.bf16.mxu0 0
        %3443 = vmatpush1.bf16.msra.mxu0 %v3433
        %3444 = vmatprep.subr.bf16.mxu0 0
        %3445 = vmatpush1.bf16.msra.mxu0 %v3432
        %3446 = vmatprep.subr.bf16.mxu0 0
        %3447 = vmatpush1.bf16.msra.mxu0 %v3431
        %3448 = vmatprep.subr.bf16.mxu0 0
        %3449 = vmatpush1.bf16.msra.mxu0 %v3430
        %3450 = vmatprep.subr.bf16.mxu0 0
        %3451 = vmatpush1.bf16.msra.mxu0 %v3429
        %3452 = vmatprep.subr.bf16.mxu0 0
        %3453 = vmatpush1.bf16.msra.mxu0 %v3428
        %3454 = vmatprep.subr.bf16.mxu0 0
        %3455 = vmatpush1.bf16.msra.mxu0 %v3427
        %3456 = vmatprep.subr.bf16.mxu0 0
        %3457 = vmatpush1.bf16.msra.mxu0 %v3426
        %3458 = vmatprep.subr.bf16.mxu0 0
        %3459 = vmatpush2.bf16.msra.mxu0 0
        %3460 = vmatprep.subr.bf16.mxu0 0
        %3461 = vmatpush2.bf16.msra.mxu0 0
        %3462 = vmatprep.subr.bf16.mxu0 0
        %3463 = vmatpush2.bf16.msra.mxu0 0
        %3464 = vmatprep.subr.bf16.mxu0 0
        %3465 = vmatpush2.bf16.msra.mxu0 0
        %3466 = vmatprep.subr.bf16.mxu0 0
        %3467 = vmatpush2.bf16.msra.mxu0 0
        %3468 = vmatprep.subr.bf16.mxu0 0
        %3469 = vmatpush2.bf16.msra.mxu0 0
        %3470 = vmatprep.subr.bf16.mxu0 0
        %3471 = vmatpush2.bf16.msra.mxu0 0
        %3472 = vmatprep.subr.bf16.mxu0 0
        %3473 = vmatpush2.bf16.msra.mxu0 0
        %3474 = vmatprep.mubr.bf16.mxu0 0
        %3475 = vmatmul.mubr.bf16.gmra.mxu0 %v3364
        %v3476 = vpop.f32.mrf.mxu0
        %v3477 = vadd.f32 %v3392, %v3476
        %v3478 = vpop.f32.mrf.mxu0
        %v3479 = vpop.f32.mrf.mxu0
        %v3480 = vpop.f32.mrf.mxu0
        %3481 = vdwg.mxu0
        %v3482 = vld [vmem:[%s818] sm:$0xff]
        %v3483 = vadd.f32 %v3482, %v3477
        %3484 = vst [vmem:[%s818] sm:$0xff] %v3483
        %p3485 = scmp.eq.s32.totalorder %s39, 1
        // Predicated region
        $region105: #{tpu_custom_call.1} parent=99 // pred_check
          %p3486 = pneg %p3485
        $region106: #{tpu_custom_call.1} parent=99 // pred_check_branch
          %3488 = sbr.rel (%p3486) target = $region108
        $region107: #{tpu_custom_call.1} parent=99 // pred_region
          %v3489 = vld [vmem:[%s818] sm:$0xff]
          %v3490 = vmul.f32 %v3489, 0.5
          %3491 = vst [vmem:[%s818] sm:$0xff] %v3490
        $region108: #{tpu_custom_call.1} parent=99 // pred_fallthru
          _
        %s3492 = sand.u32 %s549, 1
        %s3493 = scalar_lea.sflag [#allocation5], %s3492
        %s3494 = sand.u32 %s549, 1
        %s3495 = smul.addr %s3494, 8
        %s3496 = scalar_lea.vmem [#allocation4], %s3495
        // Predicated region
        $region109: #{tpu_custom_call.1} parent=99 // pred_check
          %p3497 = pneg %p559
        $region110: #{tpu_custom_call.1} parent=99 // pred_check_branch
          %3499 = sbr.rel (%p3497) target = $region112
        $region111: #{tpu_custom_call.1} parent=99 // pred_region
          %s3501 = ssub.s32 128, 128
          %3502 = vsyncadd %s3493, %s3501
          %s3503 = smul.addr %s38, 128
          %s3504 = scalar_lea.hbm %s20, %s3503
          %s3506 = sshll.u32 %s3496, 4
          %s3507 = int_to_ptr.vmem [resolvable:$true] %s3506
          %3509 = dma.vmem_to_hbm [thread:$0]  %s3507, 128, %s3504, %s3493
        $region112: #{tpu_custom_call.1} parent=99 // pred_fallthru
          _
      $region100: #{tpu_custom_call.1} parent=5 // pred_fallthru
        _
      %p3510 = scmp.le.s32.totalorder 2, %s29
      // Predicated region
      $region113: #{tpu_custom_call.1} parent=5 // pred_check
        %p3511 = pneg %p3510
      $region114: #{tpu_custom_call.1} parent=5 // pred_check_branch
        %3513 = sbr.rel (%p3511) target = $region116
      $region115: #{tpu_custom_call.1} parent=5 // pred_region
        %s3514 = ssub.s32 %s29, 2
        // Predicated region
        $region117: #{tpu_custom_call.1} parent=115 // pred_check
          %p3515 = pneg %p565
        $region118: #{tpu_custom_call.1} parent=115 // pred_check_branch
          %3517 = sbr.rel (%p3515) target = $region120
        $region119: #{tpu_custom_call.1} parent=115 // pred_region
          %s3518 = sand.u32 %s550, 1
          %s3519 = scalar_lea.sflag [#allocation5], %s3518
          %s3520 = sand.u32 %s550, 1
          %s3521 = smul.addr %s3520, 8
          %s3522 = scalar_lea.vmem [#allocation4], %s3521
          %3523 = dma.done %s3519, 128
        $region120: #{tpu_custom_call.1} parent=115 // pred_fallthru
          _
      $region116: #{tpu_custom_call.1} parent=5 // pred_fallthru
        _
    $region6: #{tpu_custom_call.1} parent=1 // loop_footer
      %s33 = sadd.s32 1, %s29
    $region7: #{tpu_custom_call.1} parent=1 // loop_footer_branch
      %28 = sbr.rel target = $region3
    $region8: #{tpu_custom_call.1} parent=1 // loop_exit
      _
    %3524 = vsyncpa [#allocation5], 1
    %s3525 = scalar_lea.sflag [#allocation5], 1
    %3526 = vsyncpa %s3525, 1

</llo_original>
